<compile_context>
chip_gen: v7x
topology: tpu7x:2x2x1
jax: 0.10.0
libtpu: 0.0.40
codegen_flags: <defaults>
</compile_context>

<pallas_src>
import functools

import jax
import jax.numpy as jnp
from jax.experimental import pallas as pl
from jax.experimental.pallas import tpu as pltpu


# ---------------------------------------------------------------------------- helpers

def _pick_nb(N):
    """Images per grid step: amortize the ~0.35us/step cost but keep >=2 steps
    (both v7x TensorCores busy) whenever the batch allows it."""
    for nb in (8, 4, 2, 1):
        if N % nb == 0 and N // nb >= 2:
            return nb
    return 1


# ---------------------------------------------------------------------------- kernel

def _make_kernel(*, Nb, H, W, Cin, P, Cout, Ho, Wo, s, has_sc):
    Hp, Wp = H + 2, W + 2          # zero-padded conv1-activation extent (pad=1)
    M = Ho * Wo

    def kernel(*refs):
        if has_sc:
            (x_ref, xs_ref, w1_ref, w2_ref, w3_ref, wsc_ref,
             s1_ref, b1_ref, s2_ref, b2_ref, s3_ref, b3_ref, ssc_ref, bsc_ref,
             o_ref, a1p_ref, pat_ref) = refs
        else:
            (x_ref, xs_ref, w1_ref, w2_ref, w3_ref,
             s1_ref, b1_ref, s2_ref, b2_ref, s3_ref, b3_ref,
             o_ref, a1p_ref, pat_ref) = refs

        # Hoist all weight / BN-vector loads out of the per-image loop.
        w1 = w1_ref[...]
        w2 = w2_ref[...]
        w3 = w3_ref[...]
        s1 = s1_ref[...]
        b1 = b1_ref[...]
        s2 = s2_ref[...]
        b2 = b2_ref[...]
        s3 = s3_ref[...]
        b3 = b3_ref[...]
        if has_sc:
            wsc = wsc_ref[...]
            ssc = ssc_ref[...]
            bsc = bsc_ref[...]

        # Zero the padded activation scratch once: the border stays zero, the
        # interior is fully overwritten for every image below.
        a1p_ref[...] = jnp.zeros_like(a1p_ref)

        for n in range(Nb):
            # ---- conv1 (1x1) + bn1 + relu: one MXU matmul over the whole image.
            a1 = jnp.dot(x_ref[n], w1, preferred_element_type=jnp.float32)
            a1 = jnp.maximum(a1 * s1 + b1, 0.0)                    # (H*W, P) f32

            # Scatter rows into the zero-padded (flattened) VMEM scratch.
            for hh in range(H):
                a1p_ref[pl.ds((hh + 1) * Wp + 1, W), :] = a1[hh * W:(hh + 1) * W, :]

            # ---- conv2 (3x3, stride s): build the (M, 9P) im2col matrix in VMEM.
            # Strides are handled by sublane-strided loads on the f32 scratch; all
            # start offsets / sizes are static.
            for h in range(Ho):
                for ki in range(3):
                    r = h * s + ki
                    for kj in range(3):
                        t = ki * 3 + kj
                        start = r * Wp + kj
                        if s == 1:
                            tap = a1p_ref[pl.ds(start, Wo), :]
                        else:
                            tap = a1p_ref[pl.ds(start, Wo, stride=s), :]
                        pat_ref[h * Wo:(h + 1) * Wo, t * P:(t + 1) * P] = tap

            patches = pat_ref[...].astype(jnp.bfloat16)            # (M, 9P)
            a2 = jnp.dot(patches, w2, preferred_element_type=jnp.float32)
            a2 = jnp.maximum(a2 * s2 + b2, 0.0)                    # (M, P) f32

            # ---- conv3 (1x1) + bn3: straight from registers (no scratch round-trip).
            a3 = jnp.dot(a2.astype(jnp.bfloat16), w3,
                         preferred_element_type=jnp.float32)
            a3 = a3 * s3 + b3                                      # (M, Cout) f32

            # ---- shortcut branch + residual add + relu.
            if has_sc:
                sc = jnp.dot(xs_ref[n], wsc, preferred_element_type=jnp.float32)
                sc = sc * ssc + bsc
            else:
                sc = xs_ref[n]                                     # identity (f32)

            o_ref[n] = jnp.maximum(a3 + sc, 0.0).astype(o_ref.dtype)

    return kernel


def bottleneck_fused(x2d, xs2d, params, bn_name, *, N, H, W, Cin, P, Cout,
                     Ho, Wo, stride, has_sc):
    M = Ho * Wo
    Nb = _pick_nb(N)
    Csc = xs2d.shape[2]

    kernel = _make_kernel(Nb=Nb, H=H, W=W, Cin=Cin, P=P, Cout=Cout,
                          Ho=Ho, Wo=Wo, s=stride, has_sc=has_sc)

    in_specs = [
        pl.BlockSpec((Nb, H * W, Cin), lambda i: (i, 0, 0)),
        pl.BlockSpec((Nb, M, Csc), lambda i: (i, 0, 0)),
        pl.BlockSpec((Cin, P), lambda i: (0, 0)),
        pl.BlockSpec((9 * P, P), lambda i: (0, 0)),
        pl.BlockSpec((P, Cout), lambda i: (0, 0)),
    ]
    args = [x2d, xs2d, params["w1"], params["w2"], params["w3"]]
    if has_sc:
        in_specs.append(pl.BlockSpec((Cin, Cout), lambda i: (0, 0)))
        args.append(params["wsc"])

    s1, b1 = params["bn1"][bn_name]
    s2, b2 = params["bn2"][bn_name]
    s3, b3 = params["bn3"][bn_name]
    vec_specs = ([pl.BlockSpec((1, P), lambda i: (0, 0))] * 4
                 + [pl.BlockSpec((1, Cout), lambda i: (0, 0))] * 2)
    vec_args = [s1, b1, s2, b2, s3, b3]
    if has_sc:
        ssc, bsc = params["bn_sc"][bn_name]
        vec_specs += [pl.BlockSpec((1, Cout), lambda i: (0, 0))] * 2
        vec_args += [ssc, bsc]
    in_specs += vec_specs
    args += vec_args

    return pl.pallas_call(
        kernel,
        out_shape=jax.ShapeDtypeStruct((N, M, Cout), jnp.bfloat16),
        grid=(N // Nb,),
        in_specs=in_specs,
        out_specs=pl.BlockSpec((Nb, M, Cout), lambda i: (i, 0, 0)),
        scratch_shapes=[
            pltpu.VMEM(((H + 2) * (W + 2), P), jnp.float32),   # padded conv1 activation
            pltpu.VMEM((M, 9 * P), jnp.float32),               # im2col patch matrix
        ],
        compiler_params=pltpu.CompilerParams(
            dimension_semantics=("parallel",),
            vmem_limit_bytes=32 << 20,      # safe on v7x's 64 MiB/TC as well
        ),
    )(*args)


# ---------------------------------------------------------------------------- parameters

def init_raw_params(key, in_planes, planes, stride, expansion=4, bn_names=("clean", "adv")):
    keys = iter(jax.random.split(key, 64))
    nk = lambda: next(keys)

    def conv_w(cout, cin, k):
        std = (2.0 / (cin * k * k)) ** 0.5
        return std * jax.random.normal(nk(), (cout, cin, k, k), jnp.float32)

    def bn_p(c):
        k1, k2, k3, k4 = jax.random.split(nk(), 4)
        return dict(
            gamma=1.0 + 0.1 * jax.random.normal(k1, (c,), jnp.float32),
            beta=0.1 * jax.random.normal(k2, (c,), jnp.float32),
            mean=0.1 * jax.random.normal(k3, (c,), jnp.float32),
            var=jnp.abs(1.0 + 0.1 * jax.random.normal(k4, (c,), jnp.float32)),
        )

    cout = expansion * planes
    raw = {
        "conv1": conv_w(planes, in_planes, 1),
        "bn1": {n: bn_p(planes) for n in bn_names},
        "conv2": conv_w(planes, planes, 3),
        "bn2": {n: bn_p(planes) for n in bn_names},
        "conv3": conv_w(cout, planes, 1),
        "bn3": {n: bn_p(cout) for n in bn_names},
    }
    if stride != 1 or in_planes != cout:
        raw["shortcut"] = conv_w(cout, in_planes, 1)
        raw["shortcut_bn"] = {n: bn_p(cout) for n in bn_names}
    return raw


def _fold_bn(bn, eps=1e-5):
    scale = bn["gamma"] / jnp.sqrt(bn["var"] + eps)
    shift = bn["beta"] - bn["mean"] * scale
    return scale.reshape(1, -1).astype(jnp.float32), shift.reshape(1, -1).astype(jnp.float32)


def prepare_params(raw, bn_names, eps=1e-5):
    """Fold BN to scale/shift and reshape conv weights to matmul layout (done once)."""
    def wmat(w):                                   # (Cout, Cin, 1, 1) -> (Cin, Cout) bf16
        return jnp.transpose(w[:, :, 0, 0], (1, 0)).astype(jnp.bfloat16)

    # im2col weight: rows are [tap0 channels | tap1 channels | ... | tap8 channels]
    w2m = jnp.concatenate([raw["conv2"][:, :, ki, kj].T
                           for ki in range(3) for kj in range(3)],
                          axis=0).astype(jnp.bfloat16)              # (9*P, P)

    p = {
        "w1": wmat(raw["conv1"]),
        "w2": w2m,
        "w3": wmat(raw["conv3"]),
        "bn1": {n: _fold_bn(raw["bn1"][n], eps) for n in bn_names},
        "bn2": {n: _fold_bn(raw["bn2"][n], eps) for n in bn_names},
        "bn3": {n: _fold_bn(raw["bn3"][n], eps) for n in bn_names},
    }
    if "shortcut" in raw:
        p["wsc"] = wmat(raw["shortcut"])
        p["bn_sc"] = {n: _fold_bn(raw["shortcut_bn"][n], eps) for n in bn_names}
    return p


# ---------------------------------------------------------------------------- forward

@functools.partial(jax.jit, static_argnames=("stride", "bn_name"))
def _bottleneck_forward(params, x_nchw, *, stride, bn_name):
    s = stride
    # NCHW <-> NHWC conversion only mirrors the PyTorch interface; a full network
    # would keep bf16 NHWC between blocks and convert once at entry/exit.
    x = jnp.transpose(x_nchw, (0, 2, 3, 1)).astype(jnp.float32)
    N, H, W, Cin = x.shape
    P = params["w1"].shape[1]
    Cout = params["w3"].shape[1]
    Ho = (H - 1) // s + 1
    Wo = (W - 1) // s + 1
    M = Ho * Wo
    has_sc = "wsc" in params
    if not has_sc:
        # identity residual is only valid when shapes match (review correctness note)
        assert s == 1 and Cin == Cout, "identity shortcut needs stride==1 and Cin==Cout"

    x2d = x.reshape(N, H * W, Cin).astype(jnp.bfloat16)
    xs = x[:, ::s, ::s, :][:, :Ho, :Wo, :].reshape(N, M, Cin)       # shortcut input
    xs2d = xs.astype(jnp.bfloat16) if has_sc else xs                # f32 if identity

    out = bottleneck_fused(x2d, xs2d, params, bn_name,
                           N=N, H=H, W=W, Cin=Cin, P=P, Cout=Cout,
                           Ho=Ho, Wo=Wo, stride=s, has_sc=has_sc)   # (N, M, Cout) bf16
    out = out.reshape(N, Ho, Wo, Cout)
    return jnp.transpose(out, (0, 3, 1, 2)).astype(jnp.float32)     # back to NCHW f32


def bottleneck_forward(params, x_and_bn_name, stride):
    """Mirrors PyTorch Bottleneck.forward((x, bn_name)) -> (out, bn_name)."""
    x, bn_name = x_and_bn_name
    out = _bottleneck_forward(params, x, stride=stride, bn_name=bn_name)
    return out, bn_name


# ---------------------------------------------------------------------------- reference

def reference_forward(params, x_nchw, bn_name, stride):
    """Plain-JAX reference using the same folded params and bf16 rounding points."""
    hp = jax.lax.Precision.HIGHEST
    f32 = jnp.float32

    def q(a):                                      # mirror the bf16 casts fed to the MXU
        return a.astype(jnp.bfloat16).astype(f32)

    def scsh(bn):
        sc, sh = bn
        return sc.reshape(-1), sh.reshape(-1)

    x = jnp.transpose(x_nchw, (0, 2, 3, 1)).astype(f32)
    N, H, W, _ = x.shape
    s = stride
    Ho = (H - 1) // s + 1
    Wo = (W - 1) // s + 1
    P = params["w1"].shape[1]

    s1, b1 = scsh(params["bn1"][bn_name])
    a1 = jnp.einsum("nhwc,cd->nhwd", q(x), params["w1"].astype(f32), precision=hp)
    a1 = jnp.maximum(a1 * s1 + b1, 0.0)

    a1q = q(a1)
    xp = jnp.pad(a1q, ((0, 0), (1, 1), (1, 1), (0, 0)))
    acc = 0.0
    for ki in range(3):
        for kj in range(3):
            patch = xp[:, ki:ki + s * (Ho - 1) + 1:s,
                       kj:kj + s * (Wo - 1) + 1:s, :]
            t = ki * 3 + kj
            w_t = params["w2"][t * P:(t + 1) * P].astype(f32)
            acc = acc + jnp.einsum("nhwc,cd->nhwd", patch, w_t, precision=hp)
    s2, b2 = scsh(params["bn2"][bn_name])
    a2 = jnp.maximum(acc * s2 + b2, 0.0)

    s3, b3 = scsh(params["bn3"][bn_name])
    a3 = jnp.einsum("nhwc,cd->nhwd", q(a2), params["w3"].astype(f32), precision=hp)
    a3 = a3 * s3 + b3

    xs = x[:, ::s, ::s, :][:, :Ho, :Wo, :]
    if "wsc" in params:
        ssc, bsc = scsh(params["bn_sc"][bn_name])
        sc = jnp.einsum("nhwc,cd->nhwd", q(xs), params["wsc"].astype(f32), precision=hp)
        sc = sc * ssc + bsc
    else:
        sc = xs
    out = jnp.maximum(a3 + sc, 0.0)
    return jnp.transpose(out, (0, 3, 1, 2))


# ---------------------------------------------------------------------------- main

if __name__ == "__main__":
    key = jax.random.PRNGKey(0)
    kx, kp = jax.random.split(key)

    # Small Bottleneck: in_planes=16, planes=16 (expansion=4 -> 64 out channels),
    # stride=2 -> the strided 1x1 shortcut conv path is exercised.
    N, in_planes, H, W = 2, 16, 16, 16
    planes, stride, expansion = 16, 2, 4
    bn_names = ("clean", "adv")

    x = jax.random.normal(kx, (N, in_planes, H, W), jnp.float32)
    raw = init_raw_params(kp, in_planes, planes, stride, expansion, bn_names)
    params = prepare_params(raw, bn_names)

    out, name_out = bottleneck_forward(params, (x, "clean"), stride=stride)
    out = jax.block_until_ready(out)

    assert name_out == "clean"
    assert out.shape == (N, expansion * planes, H // stride, W // stride)
    assert out.dtype == jnp.float32
    assert bool(jnp.all(jnp.isfinite(out)))

    ref = jax.block_until_ready(reference_forward(params, x, "clean", stride))
    err = float(jnp.max(jnp.abs(out - ref)))
    # kernel output is bf16-rounded; allow ~4x headroom over one bf16 ulp of the range
    tol = 2.0 ** -7 * (1.0 + float(jnp.max(jnp.abs(ref))))
    assert err < tol, f"kernel vs reference mismatch: max|diff|={err} tol={tol}"

    print("KERNEL_OK")
</pallas_src>

<mosaic_0001>
module attributes {stable_mosaic.version = 11 : i64} {
  func.func @kernel(%arg0: i32, %arg1: memref<1x256x16xbf16, #tpu.memory_space<vmem>>, %arg2: memref<1x64x16xbf16, #tpu.memory_space<vmem>>, %arg3: memref<16x16xbf16, #tpu.memory_space<vmem>>, %arg4: memref<144x16xbf16, #tpu.memory_space<vmem>>, %arg5: memref<16x64xbf16, #tpu.memory_space<vmem>>, %arg6: memref<16x64xbf16, #tpu.memory_space<vmem>>, %arg7: memref<1x16xf32, #tpu.memory_space<vmem>>, %arg8: memref<1x16xf32, #tpu.memory_space<vmem>>, %arg9: memref<1x16xf32, #tpu.memory_space<vmem>>, %arg10: memref<1x16xf32, #tpu.memory_space<vmem>>, %arg11: memref<1x64xf32, #tpu.memory_space<vmem>>, %arg12: memref<1x64xf32, #tpu.memory_space<vmem>>, %arg13: memref<1x64xf32, #tpu.memory_space<vmem>>, %arg14: memref<1x64xf32, #tpu.memory_space<vmem>>, %arg15: memref<1x64x64xbf16, #tpu.memory_space<vmem>>, %arg16: memref<324x16xf32, #tpu.memory_space<vmem>>, %arg17: memref<64x144xf32, #tpu.memory_space<vmem>>) attributes {dimension_semantics = [#tpu.dimension_semantics<parallel>], iteration_bounds = array<i64: 2>, scalar_prefetch = 0 : i64, scratch_operands = 2 : i64, tpu.core_type = #tpu.core_type<tc>, window_params = [{transform_indices = @transform_0, window_bounds = array<i64: 1, 256, 16>}, {transform_indices = @transform_1, window_bounds = array<i64: 1, 64, 16>}, {pipeline_mode = #tpu.pipeline_mode<synchronous>, transform_indices = @transform_2, window_bounds = array<i64: 16, 16>}, {pipeline_mode = #tpu.pipeline_mode<synchronous>, transform_indices = @transform_3, window_bounds = array<i64: 144, 16>}, {pipeline_mode = #tpu.pipeline_mode<synchronous>, transform_indices = @transform_4, window_bounds = array<i64: 16, 64>}, {pipeline_mode = #tpu.pipeline_mode<synchronous>, transform_indices = @transform_5, window_bounds = array<i64: 16, 64>}, {pipeline_mode = #tpu.pipeline_mode<synchronous>, transform_indices = @transform_6, window_bounds = array<i64: 1, 16>}, {pipeline_mode = #tpu.pipeline_mode<synchronous>, transform_indices = @transform_7, window_bounds = array<i64: 1, 16>}, {pipeline_mode = #tpu.pipeline_mode<synchronous>, transform_indices = @transform_8, window_bounds = array<i64: 1, 16>}, {pipeline_mode = #tpu.pipeline_mode<synchronous>, transform_indices = @transform_9, window_bounds = array<i64: 1, 16>}, {pipeline_mode = #tpu.pipeline_mode<synchronous>, transform_indices = @transform_10, window_bounds = array<i64: 1, 64>}, {pipeline_mode = #tpu.pipeline_mode<synchronous>, transform_indices = @transform_11, window_bounds = array<i64: 1, 64>}, {pipeline_mode = #tpu.pipeline_mode<synchronous>, transform_indices = @transform_12, window_bounds = array<i64: 1, 64>}, {pipeline_mode = #tpu.pipeline_mode<synchronous>, transform_indices = @transform_13, window_bounds = array<i64: 1, 64>}, {transform_indices = @transform_14, window_bounds = array<i64: 1, 64, 64>}]} {
    %c0 = arith.constant 0 : index
    %c0_0 = arith.constant 0 : index
    %0 = vector.load %arg3[%c0, %c0_0] : memref<16x16xbf16, #tpu.memory_space<vmem>>, vector<16x16xbf16>
    %c0_1 = arith.constant 0 : index
    %c0_2 = arith.constant 0 : index
    %1 = vector.load %arg4[%c0_1, %c0_2] : memref<144x16xbf16, #tpu.memory_space<vmem>>, vector<144x16xbf16>
    %c0_3 = arith.constant 0 : index
    %c0_4 = arith.constant 0 : index
    %2 = vector.load %arg5[%c0_3, %c0_4] : memref<16x64xbf16, #tpu.memory_space<vmem>>, vector<16x64xbf16>
    %c0_5 = arith.constant 0 : index
    %c0_6 = arith.constant 0 : index
    %3 = vector.load %arg7[%c0_5, %c0_6] : memref<1x16xf32, #tpu.memory_space<vmem>>, vector<1x16xf32>
    %c0_7 = arith.constant 0 : index
    %c0_8 = arith.constant 0 : index
    %4 = vector.load %arg8[%c0_7, %c0_8] : memref<1x16xf32, #tpu.memory_space<vmem>>, vector<1x16xf32>
    %c0_9 = arith.constant 0 : index
    %c0_10 = arith.constant 0 : index
    %5 = vector.load %arg9[%c0_9, %c0_10] : memref<1x16xf32, #tpu.memory_space<vmem>>, vector<1x16xf32>
    %c0_11 = arith.constant 0 : index
    %c0_12 = arith.constant 0 : index
    %6 = vector.load %arg10[%c0_11, %c0_12] : memref<1x16xf32, #tpu.memory_space<vmem>>, vector<1x16xf32>
    %c0_13 = arith.constant 0 : index
    %c0_14 = arith.constant 0 : index
    %7 = vector.load %arg11[%c0_13, %c0_14] : memref<1x64xf32, #tpu.memory_space<vmem>>, vector<1x64xf32>
    %c0_15 = arith.constant 0 : index
    %c0_16 = arith.constant 0 : index
    %8 = vector.load %arg12[%c0_15, %c0_16] : memref<1x64xf32, #tpu.memory_space<vmem>>, vector<1x64xf32>
    %c0_17 = arith.constant 0 : index
    %c0_18 = arith.constant 0 : index
    %9 = vector.load %arg6[%c0_17, %c0_18] : memref<16x64xbf16, #tpu.memory_space<vmem>>, vector<16x64xbf16>
    %c0_19 = arith.constant 0 : index
    %c0_20 = arith.constant 0 : index
    %10 = vector.load %arg13[%c0_19, %c0_20] : memref<1x64xf32, #tpu.memory_space<vmem>>, vector<1x64xf32>
    %c0_21 = arith.constant 0 : index
    %c0_22 = arith.constant 0 : index
    %11 = vector.load %arg14[%c0_21, %c0_22] : memref<1x64xf32, #tpu.memory_space<vmem>>, vector<1x64xf32>
    %cst = arith.constant 0.000000e+00 : f32
    %12 = vector.broadcast %cst : f32 to vector<324x16xf32>
    %c0_23 = arith.constant 0 : index
    %c0_24 = arith.constant 0 : index
    %13 = vector.load %arg16[%c0_23, %c0_24] : memref<324x16xf32, #tpu.memory_space<vmem>>, vector<324x16xf32>
    tpu.vector_store %arg16[%c0_23, %c0_24], %12 {strides = array<i32>} : memref<324x16xf32, #tpu.memory_space<vmem>>, vector<324x16xf32>,
    %c0_25 = arith.constant 0 : index
    %c0_26 = arith.constant 0 : index
    %c0_27 = arith.constant 0 : index
    %14 = vector.load %arg1[%c0_25, %c0_26, %c0_27] : memref<1x256x16xbf16, #tpu.memory_space<vmem>>, vector<1x256x16xbf16>
    %15 = vector.shape_cast %14 : vector<1x256x16xbf16> to vector<256x16xbf16>
    %cst_28 = arith.constant dense<0.000000e+00> : vector<256x16xf32>
    %16 = tpu.matmul %15, %0, %cst_28 {dimension_numbers = #tpu.dot_dimension_numbers<[1], [0], [0], [1], [0, 0, 1, 1], [], []>} : vector<256x16xbf16>, vector<16x16xbf16>, vector<256x16xf32> -> vector<256x16xf32>
    %17 = vector.broadcast %3 : vector<1x16xf32> to vector<256x16xf32>
    %18 = arith.mulf %16, %17 : vector<256x16xf32>
    %19 = vector.broadcast %4 : vector<1x16xf32> to vector<256x16xf32>
    %20 = arith.addf %18, %19 : vector<256x16xf32>
    %cst_29 = arith.constant 0.000000e+00 : f32
    %21 = vector.broadcast %cst_29 : f32 to vector<256x16xf32>
    %22 = arith.maximumf %20, %21 : vector<256x16xf32>
    %23 = vector.extract_strided_slice %22 {offsets = [0, 0], sizes = [16, 16], strides = [1, 1]} : vector<256x16xf32> to vector<16x16xf32>
    %c19 = arith.constant 19 : index
    %c0_30 = arith.constant 0 : index
    %24 = vector.load %arg16[%c19, %c0_30] : memref<324x16xf32, #tpu.memory_space<vmem>>, vector<16x16xf32>
    tpu.vector_store %arg16[%c19, %c0_30], %23 {strides = array<i32>} : memref<324x16xf32, #tpu.memory_space<vmem>>, vector<16x16xf32>,
    %25 = vector.extract_strided_slice %22 {offsets = [16, 0], sizes = [16, 16], strides = [1, 1]} : vector<256x16xf32> to vector<16x16xf32>
    %c37 = arith.constant 37 : index
    %c0_31 = arith.constant 0 : index
    %26 = vector.load %arg16[%c37, %c0_31] : memref<324x16xf32, #tpu.memory_space<vmem>>, vector<16x16xf32>
    tpu.vector_store %arg16[%c37, %c0_31], %25 {strides = array<i32>} : memref<324x16xf32, #tpu.memory_space<vmem>>, vector<16x16xf32>,
    %27 = vector.extract_strided_slice %22 {offsets = [32, 0], sizes = [16, 16], strides = [1, 1]} : vector<256x16xf32> to vector<16x16xf32>
    %c55 = arith.constant 55 : index
    %c0_32 = arith.constant 0 : index
    %28 = vector.load %arg16[%c55, %c0_32] : memref<324x16xf32, #tpu.memory_space<vmem>>, vector<16x16xf32>
    tpu.vector_store %arg16[%c55, %c0_32], %27 {strides = array<i32>} : memref<324x16xf32, #tpu.memory_space<vmem>>, vector<16x16xf32>,
    %29 = vector.extract_strided_slice %22 {offsets = [48, 0], sizes = [16, 16], strides = [1, 1]} : vector<256x16xf32> to vector<16x16xf32>
    %c73 = arith.constant 73 : index
    %c0_33 = arith.constant 0 : index
    %30 = vector.load %arg16[%c73, %c0_33] : memref<324x16xf32, #tpu.memory_space<vmem>>, vector<16x16xf32>
    tpu.vector_store %arg16[%c73, %c0_33], %29 {strides = array<i32>} : memref<324x16xf32, #tpu.memory_space<vmem>>, vector<16x16xf32>,
    %31 = vector.extract_strided_slice %22 {offsets = [64, 0], sizes = [16, 16], strides = [1, 1]} : vector<256x16xf32> to vector<16x16xf32>
    %c91 = arith.constant 91 : index
    %c0_34 = arith.constant 0 : index
    %32 = vector.load %arg16[%c91, %c0_34] : memref<324x16xf32, #tpu.memory_space<vmem>>, vector<16x16xf32>
    tpu.vector_store %arg16[%c91, %c0_34], %31 {strides = array<i32>} : memref<324x16xf32, #tpu.memory_space<vmem>>, vector<16x16xf32>,
    %33 = vector.extract_strided_slice %22 {offsets = [80, 0], sizes = [16, 16], strides = [1, 1]} : vector<256x16xf32> to vector<16x16xf32>
    %c109 = arith.constant 109 : index
    %c0_35 = arith.constant 0 : index
    %34 = vector.load %arg16[%c109, %c0_35] : memref<324x16xf32, #tpu.memory_space<vmem>>, vector<16x16xf32>
    tpu.vector_store %arg16[%c109, %c0_35], %33 {strides = array<i32>} : memref<324x16xf32, #tpu.memory_space<vmem>>, vector<16x16xf32>,
    %35 = vector.extract_strided_slice %22 {offsets = [96, 0], sizes = [16, 16], strides = [1, 1]} : vector<256x16xf32> to vector<16x16xf32>
    %c127 = arith.constant 127 : index
    %c0_36 = arith.constant 0 : index
    %36 = vector.load %arg16[%c127, %c0_36] : memref<324x16xf32, #tpu.memory_space<vmem>>, vector<16x16xf32>
    tpu.vector_store %arg16[%c127, %c0_36], %35 {strides = array<i32>} : memref<324x16xf32, #tpu.memory_space<vmem>>, vector<16x16xf32>,
    %37 = vector.extract_strided_slice %22 {offsets = [112, 0], sizes = [16, 16], strides = [1, 1]} : vector<256x16xf32> to vector<16x16xf32>
    %c145 = arith.constant 145 : index
    %c0_37 = arith.constant 0 : index
    %38 = vector.load %arg16[%c145, %c0_37] : memref<324x16xf32, #tpu.memory_space<vmem>>, vector<16x16xf32>
    tpu.vector_store %arg16[%c145, %c0_37], %37 {strides = array<i32>} : memref<324x16xf32, #tpu.memory_space<vmem>>, vector<16x16xf32>,
    %39 = vector.extract_strided_slice %22 {offsets = [128, 0], sizes = [16, 16], strides = [1, 1]} : vector<256x16xf32> to vector<16x16xf32>
    %c163 = arith.constant 163 : index
    %c0_38 = arith.constant 0 : index
    %40 = vector.load %arg16[%c163, %c0_38] : memref<324x16xf32, #tpu.memory_space<vmem>>, vector<16x16xf32>
    tpu.vector_store %arg16[%c163, %c0_38], %39 {strides = array<i32>} : memref<324x16xf32, #tpu.memory_space<vmem>>, vector<16x16xf32>,
    %41 = vector.extract_strided_slice %22 {offsets = [144, 0], sizes = [16, 16], strides = [1, 1]} : vector<256x16xf32> to vector<16x16xf32>
    %c181 = arith.constant 181 : index
    %c0_39 = arith.constant 0 : index
    %42 = vector.load %arg16[%c181, %c0_39] : memref<324x16xf32, #tpu.memory_space<vmem>>, vector<16x16xf32>
    tpu.vector_store %arg16[%c181, %c0_39], %41 {strides = array<i32>} : memref<324x16xf32, #tpu.memory_space<vmem>>, vector<16x16xf32>,
    %43 = vector.extract_strided_slice %22 {offsets = [160, 0], sizes = [16, 16], strides = [1, 1]} : vector<256x16xf32> to vector<16x16xf32>
    %c199 = arith.constant 199 : index
    %c0_40 = arith.constant 0 : index
    %44 = vector.load %arg16[%c199, %c0_40] : memref<324x16xf32, #tpu.memory_space<vmem>>, vector<16x16xf32>
    tpu.vector_store %arg16[%c199, %c0_40], %43 {strides = array<i32>} : memref<324x16xf32, #tpu.memory_space<vmem>>, vector<16x16xf32>,
    %45 = vector.extract_strided_slice %22 {offsets = [176, 0], sizes = [16, 16], strides = [1, 1]} : vector<256x16xf32> to vector<16x16xf32>
    %c217 = arith.constant 217 : index
    %c0_41 = arith.constant 0 : index
    %46 = vector.load %arg16[%c217, %c0_41] : memref<324x16xf32, #tpu.memory_space<vmem>>, vector<16x16xf32>
    tpu.vector_store %arg16[%c217, %c0_41], %45 {strides = array<i32>} : memref<324x16xf32, #tpu.memory_space<vmem>>, vector<16x16xf32>,
    %47 = vector.extract_strided_slice %22 {offsets = [192, 0], sizes = [16, 16], strides = [1, 1]} : vector<256x16xf32> to vector<16x16xf32>
    %c235 = arith.constant 235 : index
    %c0_42 = arith.constant 0 : index
    %48 = vector.load %arg16[%c235, %c0_42] : memref<324x16xf32, #tpu.memory_space<vmem>>, vector<16x16xf32>
    tpu.vector_store %arg16[%c235, %c0_42], %47 {strides = array<i32>} : memref<324x16xf32, #tpu.memory_space<vmem>>, vector<16x16xf32>,
    %49 = vector.extract_strided_slice %22 {offsets = [208, 0], sizes = [16, 16], strides = [1, 1]} : vector<256x16xf32> to vector<16x16xf32>
    %c253 = arith.constant 253 : index
    %c0_43 = arith.constant 0 : index
    %50 = vector.load %arg16[%c253, %c0_43] : memref<324x16xf32, #tpu.memory_space<vmem>>, vector<16x16xf32>
    tpu.vector_store %arg16[%c253, %c0_43], %49 {strides = array<i32>} : memref<324x16xf32, #tpu.memory_space<vmem>>, vector<16x16xf32>,
    %51 = vector.extract_strided_slice %22 {offsets = [224, 0], sizes = [16, 16], strides = [1, 1]} : vector<256x16xf32> to vector<16x16xf32>
    %c271 = arith.constant 271 : index
    %c0_44 = arith.constant 0 : index
    %52 = vector.load %arg16[%c271, %c0_44] : memref<324x16xf32, #tpu.memory_space<vmem>>, vector<16x16xf32>
    tpu.vector_store %arg16[%c271, %c0_44], %51 {strides = array<i32>} : memref<324x16xf32, #tpu.memory_space<vmem>>, vector<16x16xf32>,
    %53 = vector.extract_strided_slice %22 {offsets = [240, 0], sizes = [16, 16], strides = [1, 1]} : vector<256x16xf32> to vector<16x16xf32>
    %c289 = arith.constant 289 : index
    %c0_45 = arith.constant 0 : index
    %54 = vector.load %arg16[%c289, %c0_45] : memref<324x16xf32, #tpu.memory_space<vmem>>, vector<16x16xf32>
    tpu.vector_store %arg16[%c289, %c0_45], %53 {strides = array<i32>} : memref<324x16xf32, #tpu.memory_space<vmem>>, vector<16x16xf32>,
    %c0_46 = arith.constant 0 : index
    %c0_47 = arith.constant 0 : index
    %55 = tpu.strided_load %arg16[%c0_46, %c0_47] {strides = array<i32: 2, 1>} : memref<324x16xf32, #tpu.memory_space<vmem>>, vector<8x16xf32>
    %c0_48 = arith.constant 0 : index
    %c0_49 = arith.constant 0 : index
    %56 = vector.load %arg17[%c0_48, %c0_49] : memref<64x144xf32, #tpu.memory_space<vmem>>, vector<8x16xf32>
    tpu.vector_store %arg17[%c0_48, %c0_49], %55 {strides = array<i32>} : memref<64x144xf32, #tpu.memory_space<vmem>>, vector<8x16xf32>,
    %c1 = arith.constant 1 : index
    %c0_50 = arith.constant 0 : index
    %57 = tpu.strided_load %arg16[%c1, %c0_50] {strides = array<i32: 2, 1>} : memref<324x16xf32, #tpu.memory_space<vmem>>, vector<8x16xf32>
    %c0_51 = arith.constant 0 : index
    %c16 = arith.constant 16 : index
    %58 = vector.load %arg17[%c0_51, %c16] : memref<64x144xf32, #tpu.memory_space<vmem>>, vector<8x16xf32>
    tpu.vector_store %arg17[%c0_51, %c16], %57 {strides = array<i32>} : memref<64x144xf32, #tpu.memory_space<vmem>>, vector<8x16xf32>,
    %c2 = arith.constant 2 : index
    %c0_52 = arith.constant 0 : index
    %59 = tpu.strided_load %arg16[%c2, %c0_52] {strides = array<i32: 2, 1>} : memref<324x16xf32, #tpu.memory_space<vmem>>, vector<8x16xf32>
    %c0_53 = arith.constant 0 : index
    %c32 = arith.constant 32 : index
    %60 = vector.load %arg17[%c0_53, %c32] : memref<64x144xf32, #tpu.memory_space<vmem>>, vector<8x16xf32>
    tpu.vector_store %arg17[%c0_53, %c32], %59 {strides = array<i32>} : memref<64x144xf32, #tpu.memory_space<vmem>>, vector<8x16xf32>,
    %c18 = arith.constant 18 : index
    %c0_54 = arith.constant 0 : index
    %61 = tpu.strided_load %arg16[%c18, %c0_54] {strides = array<i32: 2, 1>} : memref<324x16xf32, #tpu.memory_space<vmem>>, vector<8x16xf32>
    %c0_55 = arith.constant 0 : index
    %c48 = arith.constant 48 : index
    %62 = vector.load %arg17[%c0_55, %c48] : memref<64x144xf32, #tpu.memory_space<vmem>>, vector<8x16xf32>
    tpu.vector_store %arg17[%c0_55, %c48], %61 {strides = array<i32>} : memref<64x144xf32, #tpu.memory_space<vmem>>, vector<8x16xf32>,
    %c19_56 = arith.constant 19 : index
    %c0_57 = arith.constant 0 : index
    %63 = tpu.strided_load %arg16[%c19_56, %c0_57] {strides = array<i32: 2, 1>} : memref<324x16xf32, #tpu.memory_space<vmem>>, vector<8x16xf32>
    %c0_58 = arith.constant 0 : index
    %c64 = arith.constant 64 : index
    %64 = vector.load %arg17[%c0_58, %c64] : memref<64x144xf32, #tpu.memory_space<vmem>>, vector<8x16xf32>
    tpu.vector_store %arg17[%c0_58, %c64], %63 {strides = array<i32>} : memref<64x144xf32, #tpu.memory_space<vmem>>, vector<8x16xf32>,
    %c20 = arith.constant 20 : index
    %c0_59 = arith.constant 0 : index
    %65 = tpu.strided_load %arg16[%c20, %c0_59] {strides = array<i32: 2, 1>} : memref<324x16xf32, #tpu.memory_space<vmem>>, vector<8x16xf32>
    %c0_60 = arith.constant 0 : index
    %c80 = arith.constant 80 : index
    %66 = vector.load %arg17[%c0_60, %c80] : memref<64x144xf32, #tpu.memory_space<vmem>>, vector<8x16xf32>
    tpu.vector_store %arg17[%c0_60, %c80], %65 {strides = array<i32>} : memref<64x144xf32, #tpu.memory_space<vmem>>, vector<8x16xf32>,
    %c36 = arith.constant 36 : index
    %c0_61 = arith.constant 0 : index
    %67 = tpu.strided_load %arg16[%c36, %c0_61] {strides = array<i32: 2, 1>} : memref<324x16xf32, #tpu.memory_space<vmem>>, vector<8x16xf32>
    %c0_62 = arith.constant 0 : index
    %c96 = arith.constant 96 : index
    %68 = vector.load %arg17[%c0_62, %c96] : memref<64x144xf32, #tpu.memory_space<vmem>>, vector<8x16xf32>
    tpu.vector_store %arg17[%c0_62, %c96], %67 {strides = array<i32>} : memref<64x144xf32, #tpu.memory_space<vmem>>, vector<8x16xf32>,
    %c37_63 = arith.constant 37 : index
    %c0_64 = arith.constant 0 : index
    %69 = tpu.strided_load %arg16[%c37_63, %c0_64] {strides = array<i32: 2, 1>} : memref<324x16xf32, #tpu.memory_space<vmem>>, vector<8x16xf32>
    %c0_65 = arith.constant 0 : index
    %c112 = arith.constant 112 : index
    %70 = vector.load %arg17[%c0_65, %c112] : memref<64x144xf32, #tpu.memory_space<vmem>>, vector<8x16xf32>
    tpu.vector_store %arg17[%c0_65, %c112], %69 {strides = array<i32>} : memref<64x144xf32, #tpu.memory_space<vmem>>, vector<8x16xf32>,
    %c38 = arith.constant 38 : index
    %c0_66 = arith.constant 0 : index
    %71 = tpu.strided_load %arg16[%c38, %c0_66] {strides = array<i32: 2, 1>} : memref<324x16xf32, #tpu.memory_space<vmem>>, vector<8x16xf32>
    %c0_67 = arith.constant 0 : index
    %c128 = arith.constant 128 : index
    %72 = vector.load %arg17[%c0_67, %c128] : memref<64x144xf32, #tpu.memory_space<vmem>>, vector<8x16xf32>
    tpu.vector_store %arg17[%c0_67, %c128], %71 {strides = array<i32>} : memref<64x144xf32, #tpu.memory_space<vmem>>, vector<8x16xf32>,
    %c36_68 = arith.constant 36 : index
    %c0_69 = arith.constant 0 : index
    %73 = tpu.strided_load %arg16[%c36_68, %c0_69] {strides = array<i32: 2, 1>} : memref<324x16xf32, #tpu.memory_space<vmem>>, vector<8x16xf32>
    %c8 = arith.constant 8 : index
    %c0_70 = arith.constant 0 : index
    %74 = vector.load %arg17[%c8, %c0_70] : memref<64x144xf32, #tpu.memory_space<vmem>>, vector<8x16xf32>
    tpu.vector_store %arg17[%c8, %c0_70], %73 {strides = array<i32>} : memref<64x144xf32, #tpu.memory_space<vmem>>, vector<8x16xf32>,
    %c37_71 = arith.constant 37 : index
    %c0_72 = arith.constant 0 : index
    %75 = tpu.strided_load %arg16[%c37_71, %c0_72] {strides = array<i32: 2, 1>} : memref<324x16xf32, #tpu.memory_space<vmem>>, vector<8x16xf32>
    %c8_73 = arith.constant 8 : index
    %c16_74 = arith.constant 16 : index
    %76 = vector.load %arg17[%c8_73, %c16_74] : memref<64x144xf32, #tpu.memory_space<vmem>>, vector<8x16xf32>
    tpu.vector_store %arg17[%c8_73, %c16_74], %75 {strides = array<i32>} : memref<64x144xf32, #tpu.memory_space<vmem>>, vector<8x16xf32>,
    %c38_75 = arith.constant 38 : index
    %c0_76 = arith.constant 0 : index
    %77 = tpu.strided_load %arg16[%c38_75, %c0_76] {strides = array<i32: 2, 1>} : memref<324x16xf32, #tpu.memory_space<vmem>>, vector<8x16xf32>
    %c8_77 = arith.constant 8 : index
    %c32_78 = arith.constant 32 : index
    %78 = vector.load %arg17[%c8_77, %c32_78] : memref<64x144xf32, #tpu.memory_space<vmem>>, vector<8x16xf32>
    tpu.vector_store %arg17[%c8_77, %c32_78], %77 {strides = array<i32>} : memref<64x144xf32, #tpu.memory_space<vmem>>, vector<8x16xf32>,
    %c54 = arith.constant 54 : index
    %c0_79 = arith.constant 0 : index
    %79 = tpu.strided_load %arg16[%c54, %c0_79] {strides = array<i32: 2, 1>} : memref<324x16xf32, #tpu.memory_space<vmem>>, vector<8x16xf32>
    %c8_80 = arith.constant 8 : index
    %c48_81 = arith.constant 48 : index
    %80 = vector.load %arg17[%c8_80, %c48_81] : memref<64x144xf32, #tpu.memory_space<vmem>>, vector<8x16xf32>
    tpu.vector_store %arg17[%c8_80, %c48_81], %79 {strides = array<i32>} : memref<64x144xf32, #tpu.memory_space<vmem>>, vector<8x16xf32>,
    %c55_82 = arith.constant 55 : index
    %c0_83 = arith.constant 0 : index
    %81 = tpu.strided_load %arg16[%c55_82, %c0_83] {strides = array<i32: 2, 1>} : memref<324x16xf32, #tpu.memory_space<vmem>>, vector<8x16xf32>
    %c8_84 = arith.constant 8 : index
    %c64_85 = arith.constant 64 : index
    %82 = vector.load %arg17[%c8_84, %c64_85] : memref<64x144xf32, #tpu.memory_space<vmem>>, vector<8x16xf32>
    tpu.vector_store %arg17[%c8_84, %c64_85], %81 {strides = array<i32>} : memref<64x144xf32, #tpu.memory_space<vmem>>, vector<8x16xf32>,
    %c56 = arith.constant 56 : index
    %c0_86 = arith.constant 0 : index
    %83 = tpu.strided_load %arg16[%c56, %c0_86] {strides = array<i32: 2, 1>} : memref<324x16xf32, #tpu.memory_space<vmem>>, vector<8x16xf32>
    %c8_87 = arith.constant 8 : index
    %c80_88 = arith.constant 80 : index
    %84 = vector.load %arg17[%c8_87, %c80_88] : memref<64x144xf32, #tpu.memory_space<vmem>>, vector<8x16xf32>
    tpu.vector_store %arg17[%c8_87, %c80_88], %83 {strides = array<i32>} : memref<64x144xf32, #tpu.memory_space<vmem>>, vector<8x16xf32>,
    %c72 = arith.constant 72 : index
    %c0_89 = arith.constant 0 : index
    %85 = tpu.strided_load %arg16[%c72, %c0_89] {strides = array<i32: 2, 1>} : memref<324x16xf32, #tpu.memory_space<vmem>>, vector<8x16xf32>
    %c8_90 = arith.constant 8 : index
    %c96_91 = arith.constant 96 : index
    %86 = vector.load %arg17[%c8_90, %c96_91] : memref<64x144xf32, #tpu.memory_space<vmem>>, vector<8x16xf32>
    tpu.vector_store %arg17[%c8_90, %c96_91], %85 {strides = array<i32>} : memref<64x144xf32, #tpu.memory_space<vmem>>, vector<8x16xf32>,
    %c73_92 = arith.constant 73 : index
    %c0_93 = arith.constant 0 : index
    %87 = tpu.strided_load %arg16[%c73_92, %c0_93] {strides = array<i32: 2, 1>} : memref<324x16xf32, #tpu.memory_space<vmem>>, vector<8x16xf32>
    %c8_94 = arith.constant 8 : index
    %c112_95 = arith.constant 112 : index
    %88 = vector.load %arg17[%c8_94, %c112_95] : memref<64x144xf32, #tpu.memory_space<vmem>>, vector<8x16xf32>
    tpu.vector_store %arg17[%c8_94, %c112_95], %87 {strides = array<i32>} : memref<64x144xf32, #tpu.memory_space<vmem>>, vector<8x16xf32>,
    %c74 = arith.constant 74 : index
    %c0_96 = arith.constant 0 : index
    %89 = tpu.strided_load %arg16[%c74, %c0_96] {strides = array<i32: 2, 1>} : memref<324x16xf32, #tpu.memory_space<vmem>>, vector<8x16xf32>
    %c8_97 = arith.constant 8 : index
    %c128_98 = arith.constant 128 : index
    %90 = vector.load %arg17[%c8_97, %c128_98] : memref<64x144xf32, #tpu.memory_space<vmem>>, vector<8x16xf32>
    tpu.vector_store %arg17[%c8_97, %c128_98], %89 {strides = array<i32>} : memref<64x144xf32, #tpu.memory_space<vmem>>, vector<8x16xf32>,
    %c72_99 = arith.constant 72 : index
    %c0_100 = arith.constant 0 : index
    %91 = tpu.strided_load %arg16[%c72_99, %c0_100] {strides = array<i32: 2, 1>} : memref<324x16xf32, #tpu.memory_space<vmem>>, vector<8x16xf32>
    %c16_101 = arith.constant 16 : index
    %c0_102 = arith.constant 0 : index
    %92 = vector.load %arg17[%c16_101, %c0_102] : memref<64x144xf32, #tpu.memory_space<vmem>>, vector<8x16xf32>
    tpu.vector_store %arg17[%c16_101, %c0_102], %91 {strides = array<i32>} : memref<64x144xf32, #tpu.memory_space<vmem>>, vector<8x16xf32>,
    %c73_103 = arith.constant 73 : index
    %c0_104 = arith.constant 0 : index
    %93 = tpu.strided_load %arg16[%c73_103, %c0_104] {strides = array<i32: 2, 1>} : memref<324x16xf32, #tpu.memory_space<vmem>>, vector<8x16xf32>
    %c16_105 = arith.constant 16 : index
    %c16_106 = arith.constant 16 : index
    %94 = vector.load %arg17[%c16_105, %c16_106] : memref<64x144xf32, #tpu.memory_space<vmem>>, vector<8x16xf32>
    tpu.vector_store %arg17[%c16_105, %c16_106], %93 {strides = array<i32>} : memref<64x144xf32, #tpu.memory_space<vmem>>, vector<8x16xf32>,
    %c74_107 = arith.constant 74 : index
    %c0_108 = arith.constant 0 : index
    %95 = tpu.strided_load %arg16[%c74_107, %c0_108] {strides = array<i32: 2, 1>} : memref<324x16xf32, #tpu.memory_space<vmem>>, vector<8x16xf32>
    %c16_109 = arith.constant 16 : index
    %c32_110 = arith.constant 32 : index
    %96 = vector.load %arg17[%c16_109, %c32_110] : memref<64x144xf32, #tpu.memory_space<vmem>>, vector<8x16xf32>
    tpu.vector_store %arg17[%c16_109, %c32_110], %95 {strides = array<i32>} : memref<64x144xf32, #tpu.memory_space<vmem>>, vector<8x16xf32>,
    %c90 = arith.constant 90 : index
    %c0_111 = arith.constant 0 : index
    %97 = tpu.strided_load %arg16[%c90, %c0_111] {strides = array<i32: 2, 1>} : memref<324x16xf32, #tpu.memory_space<vmem>>, vector<8x16xf32>
    %c16_112 = arith.constant 16 : index
    %c48_113 = arith.constant 48 : index
    %98 = vector.load %arg17[%c16_112, %c48_113] : memref<64x144xf32, #tpu.memory_space<vmem>>, vector<8x16xf32>
    tpu.vector_store %arg17[%c16_112, %c48_113], %97 {strides = array<i32>} : memref<64x144xf32, #tpu.memory_space<vmem>>, vector<8x16xf32>,
    %c91_114 = arith.constant 91 : index
    %c0_115 = arith.constant 0 : index
    %99 = tpu.strided_load %arg16[%c91_114, %c0_115] {strides = array<i32: 2, 1>} : memref<324x16xf32, #tpu.memory_space<vmem>>, vector<8x16xf32>
    %c16_116 = arith.constant 16 : index
    %c64_117 = arith.constant 64 : index
    %100 = vector.load %arg17[%c16_116, %c64_117] : memref<64x144xf32, #tpu.memory_space<vmem>>, vector<8x16xf32>
    tpu.vector_store %arg17[%c16_116, %c64_117], %99 {strides = array<i32>} : memref<64x144xf32, #tpu.memory_space<vmem>>, vector<8x16xf32>,
    %c92 = arith.constant 92 : index
    %c0_118 = arith.constant 0 : index
    %101 = tpu.strided_load %arg16[%c92, %c0_118] {strides = array<i32: 2, 1>} : memref<324x16xf32, #tpu.memory_space<vmem>>, vector<8x16xf32>
    %c16_119 = arith.constant 16 : index
    %c80_120 = arith.constant 80 : index
    %102 = vector.load %arg17[%c16_119, %c80_120] : memref<64x144xf32, #tpu.memory_space<vmem>>, vector<8x16xf32>
    tpu.vector_store %arg17[%c16_119, %c80_120], %101 {strides = array<i32>} : memref<64x144xf32, #tpu.memory_space<vmem>>, vector<8x16xf32>,
    %c108 = arith.constant 108 : index
    %c0_121 = arith.constant 0 : index
    %103 = tpu.strided_load %arg16[%c108, %c0_121] {strides = array<i32: 2, 1>} : memref<324x16xf32, #tpu.memory_space<vmem>>, vector<8x16xf32>
    %c16_122 = arith.constant 16 : index
    %c96_123 = arith.constant 96 : index
    %104 = vector.load %arg17[%c16_122, %c96_123] : memref<64x144xf32, #tpu.memory_space<vmem>>, vector<8x16xf32>
    tpu.vector_store %arg17[%c16_122, %c96_123], %103 {strides = array<i32>} : memref<64x144xf32, #tpu.memory_space<vmem>>, vector<8x16xf32>,
    %c109_124 = arith.constant 109 : index
    %c0_125 = arith.constant 0 : index
    %105 = tpu.strided_load %arg16[%c109_124, %c0_125] {strides = array<i32: 2, 1>} : memref<324x16xf32, #tpu.memory_space<vmem>>, vector<8x16xf32>
    %c16_126 = arith.constant 16 : index
    %c112_127 = arith.constant 112 : index
    %106 = vector.load %arg17[%c16_126, %c112_127] : memref<64x144xf32, #tpu.memory_space<vmem>>, vector<8x16xf32>
    tpu.vector_store %arg17[%c16_126, %c112_127], %105 {strides = array<i32>} : memref<64x144xf32, #tpu.memory_space<vmem>>, vector<8x16xf32>,
    %c110 = arith.constant 110 : index
    %c0_128 = arith.constant 0 : index
    %107 = tpu.strided_load %arg16[%c110, %c0_128] {strides = array<i32: 2, 1>} : memref<324x16xf32, #tpu.memory_space<vmem>>, vector<8x16xf32>
    %c16_129 = arith.constant 16 : index
    %c128_130 = arith.constant 128 : index
    %108 = vector.load %arg17[%c16_129, %c128_130] : memref<64x144xf32, #tpu.memory_space<vmem>>, vector<8x16xf32>
    tpu.vector_store %arg17[%c16_129, %c128_130], %107 {strides = array<i32>} : memref<64x144xf32, #tpu.memory_space<vmem>>, vector<8x16xf32>,
    %c108_131 = arith.constant 108 : index
    %c0_132 = arith.constant 0 : index
    %109 = tpu.strided_load %arg16[%c108_131, %c0_132] {strides = array<i32: 2, 1>} : memref<324x16xf32, #tpu.memory_space<vmem>>, vector<8x16xf32>
    %c24 = arith.constant 24 : index
    %c0_133 = arith.constant 0 : index
    %110 = vector.load %arg17[%c24, %c0_133] : memref<64x144xf32, #tpu.memory_space<vmem>>, vector<8x16xf32>
    tpu.vector_store %arg17[%c24, %c0_133], %109 {strides = array<i32>} : memref<64x144xf32, #tpu.memory_space<vmem>>, vector<8x16xf32>,
    %c109_134 = arith.constant 109 : index
    %c0_135 = arith.constant 0 : index
    %111 = tpu.strided_load %arg16[%c109_134, %c0_135] {strides = array<i32: 2, 1>} : memref<324x16xf32, #tpu.memory_space<vmem>>, vector<8x16xf32>
    %c24_136 = arith.constant 24 : index
    %c16_137 = arith.constant 16 : index
    %112 = vector.load %arg17[%c24_136, %c16_137] : memref<64x144xf32, #tpu.memory_space<vmem>>, vector<8x16xf32>
    tpu.vector_store %arg17[%c24_136, %c16_137], %111 {strides = array<i32>} : memref<64x144xf32, #tpu.memory_space<vmem>>, vector<8x16xf32>,
    %c110_138 = arith.constant 110 : index
    %c0_139 = arith.constant 0 : index
    %113 = tpu.strided_load %arg16[%c110_138, %c0_139] {strides = array<i32: 2, 1>} : memref<324x16xf32, #tpu.memory_space<vmem>>, vector<8x16xf32>
    %c24_140 = arith.constant 24 : index
    %c32_141 = arith.constant 32 : index
    %114 = vector.load %arg17[%c24_140, %c32_141] : memref<64x144xf32, #tpu.memory_space<vmem>>, vector<8x16xf32>
    tpu.vector_store %arg17[%c24_140, %c32_141], %113 {strides = array<i32>} : memref<64x144xf32, #tpu.memory_space<vmem>>, vector<8x16xf32>,
    %c126 = arith.constant 126 : index
    %c0_142 = arith.constant 0 : index
    %115 = tpu.strided_load %arg16[%c126, %c0_142] {strides = array<i32: 2, 1>} : memref<324x16xf32, #tpu.memory_space<vmem>>, vector<8x16xf32>
    %c24_143 = arith.constant 24 : index
    %c48_144 = arith.constant 48 : index
    %116 = vector.load %arg17[%c24_143, %c48_144] : memref<64x144xf32, #tpu.memory_space<vmem>>, vector<8x16xf32>
    tpu.vector_store %arg17[%c24_143, %c48_144], %115 {strides = array<i32>} : memref<64x144xf32, #tpu.memory_space<vmem>>, vector<8x16xf32>,
    %c127_145 = arith.constant 127 : index
    %c0_146 = arith.constant 0 : index
    %117 = tpu.strided_load %arg16[%c127_145, %c0_146] {strides = array<i32: 2, 1>} : memref<324x16xf32, #tpu.memory_space<vmem>>, vector<8x16xf32>
    %c24_147 = arith.constant 24 : index
    %c64_148 = arith.constant 64 : index
    %118 = vector.load %arg17[%c24_147, %c64_148] : memref<64x144xf32, #tpu.memory_space<vmem>>, vector<8x16xf32>
    tpu.vector_store %arg17[%c24_147, %c64_148], %117 {strides = array<i32>} : memref<64x144xf32, #tpu.memory_space<vmem>>, vector<8x16xf32>,
    %c128_149 = arith.constant 128 : index
    %c0_150 = arith.constant 0 : index
    %119 = tpu.strided_load %arg16[%c128_149, %c0_150] {strides = array<i32: 2, 1>} : memref<324x16xf32, #tpu.memory_space<vmem>>, vector<8x16xf32>
    %c24_151 = arith.constant 24 : index
    %c80_152 = arith.constant 80 : index
    %120 = vector.load %arg17[%c24_151, %c80_152] : memref<64x144xf32, #tpu.memory_space<vmem>>, vector<8x16xf32>
    tpu.vector_store %arg17[%c24_151, %c80_152], %119 {strides = array<i32>} : memref<64x144xf32, #tpu.memory_space<vmem>>, vector<8x16xf32>,
    %c144 = arith.constant 144 : index
    %c0_153 = arith.constant 0 : index
    %121 = tpu.strided_load %arg16[%c144, %c0_153] {strides = array<i32: 2, 1>} : memref<324x16xf32, #tpu.memory_space<vmem>>, vector<8x16xf32>
    %c24_154 = arith.constant 24 : index
    %c96_155 = arith.constant 96 : index
    %122 = vector.load %arg17[%c24_154, %c96_155] : memref<64x144xf32, #tpu.memory_space<vmem>>, vector<8x16xf32>
    tpu.vector_store %arg17[%c24_154, %c96_155], %121 {strides = array<i32>} : memref<64x144xf32, #tpu.memory_space<vmem>>, vector<8x16xf32>,
    %c145_156 = arith.constant 145 : index
    %c0_157 = arith.constant 0 : index
    %123 = tpu.strided_load %arg16[%c145_156, %c0_157] {strides = array<i32: 2, 1>} : memref<324x16xf32, #tpu.memory_space<vmem>>, vector<8x16xf32>
    %c24_158 = arith.constant 24 : index
    %c112_159 = arith.constant 112 : index
    %124 = vector.load %arg17[%c24_158, %c112_159] : memref<64x144xf32, #tpu.memory_space<vmem>>, vector<8x16xf32>
    tpu.vector_store %arg17[%c24_158, %c112_159], %123 {strides = array<i32>} : memref<64x144xf32, #tpu.memory_space<vmem>>, vector<8x16xf32>,
    %c146 = arith.constant 146 : index
    %c0_160 = arith.constant 0 : index
    %125 = tpu.strided_load %arg16[%c146, %c0_160] {strides = array<i32: 2, 1>} : memref<324x16xf32, #tpu.memory_space<vmem>>, vector<8x16xf32>
    %c24_161 = arith.constant 24 : index
    %c128_162 = arith.constant 128 : index
    %126 = vector.load %arg17[%c24_161, %c128_162] : memref<64x144xf32, #tpu.memory_space<vmem>>, vector<8x16xf32>
    tpu.vector_store %arg17[%c24_161, %c128_162], %125 {strides = array<i32>} : memref<64x144xf32, #tpu.memory_space<vmem>>, vector<8x16xf32>,
    %c144_163 = arith.constant 144 : index
    %c0_164 = arith.constant 0 : index
    %127 = tpu.strided_load %arg16[%c144_163, %c0_164] {strides = array<i32: 2, 1>} : memref<324x16xf32, #tpu.memory_space<vmem>>, vector<8x16xf32>
    %c32_165 = arith.constant 32 : index
    %c0_166 = arith.constant 0 : index
    %128 = vector.load %arg17[%c32_165, %c0_166] : memref<64x144xf32, #tpu.memory_space<vmem>>, vector<8x16xf32>
    tpu.vector_store %arg17[%c32_165, %c0_166], %127 {strides = array<i32>} : memref<64x144xf32, #tpu.memory_space<vmem>>, vector<8x16xf32>,
    %c145_167 = arith.constant 145 : index
    %c0_168 = arith.constant 0 : index
    %129 = tpu.strided_load %arg16[%c145_167, %c0_168] {strides = array<i32: 2, 1>} : memref<324x16xf32, #tpu.memory_space<vmem>>, vector<8x16xf32>
    %c32_169 = arith.constant 32 : index
    %c16_170 = arith.constant 16 : index
    %130 = vector.load %arg17[%c32_169, %c16_170] : memref<64x144xf32, #tpu.memory_space<vmem>>, vector<8x16xf32>
    tpu.vector_store %arg17[%c32_169, %c16_170], %129 {strides = array<i32>} : memref<64x144xf32, #tpu.memory_space<vmem>>, vector<8x16xf32>,
    %c146_171 = arith.constant 146 : index
    %c0_172 = arith.constant 0 : index
    %131 = tpu.strided_load %arg16[%c146_171, %c0_172] {strides = array<i32: 2, 1>} : memref<324x16xf32, #tpu.memory_space<vmem>>, vector<8x16xf32>
    %c32_173 = arith.constant 32 : index
    %c32_174 = arith.constant 32 : index
    %132 = vector.load %arg17[%c32_173, %c32_174] : memref<64x144xf32, #tpu.memory_space<vmem>>, vector<8x16xf32>
    tpu.vector_store %arg17[%c32_173, %c32_174], %131 {strides = array<i32>} : memref<64x144xf32, #tpu.memory_space<vmem>>, vector<8x16xf32>,
    %c162 = arith.constant 162 : index
    %c0_175 = arith.constant 0 : index
    %133 = tpu.strided_load %arg16[%c162, %c0_175] {strides = array<i32: 2, 1>} : memref<324x16xf32, #tpu.memory_space<vmem>>, vector<8x16xf32>
    %c32_176 = arith.constant 32 : index
    %c48_177 = arith.constant 48 : index
    %134 = vector.load %arg17[%c32_176, %c48_177] : memref<64x144xf32, #tpu.memory_space<vmem>>, vector<8x16xf32>
    tpu.vector_store %arg17[%c32_176, %c48_177], %133 {strides = array<i32>} : memref<64x144xf32, #tpu.memory_space<vmem>>, vector<8x16xf32>,
    %c163_178 = arith.constant 163 : index
    %c0_179 = arith.constant 0 : index
    %135 = tpu.strided_load %arg16[%c163_178, %c0_179] {strides = array<i32: 2, 1>} : memref<324x16xf32, #tpu.memory_space<vmem>>, vector<8x16xf32>
    %c32_180 = arith.constant 32 : index
    %c64_181 = arith.constant 64 : index
    %136 = vector.load %arg17[%c32_180, %c64_181] : memref<64x144xf32, #tpu.memory_space<vmem>>, vector<8x16xf32>
    tpu.vector_store %arg17[%c32_180, %c64_181], %135 {strides = array<i32>} : memref<64x144xf32, #tpu.memory_space<vmem>>, vector<8x16xf32>,
    %c164 = arith.constant 164 : index
    %c0_182 = arith.constant 0 : index
    %137 = tpu.strided_load %arg16[%c164, %c0_182] {strides = array<i32: 2, 1>} : memref<324x16xf32, #tpu.memory_space<vmem>>, vector<8x16xf32>
    %c32_183 = arith.constant 32 : index
    %c80_184 = arith.constant 80 : index
    %138 = vector.load %arg17[%c32_183, %c80_184] : memref<64x144xf32, #tpu.memory_space<vmem>>, vector<8x16xf32>
    tpu.vector_store %arg17[%c32_183, %c80_184], %137 {strides = array<i32>} : memref<64x144xf32, #tpu.memory_space<vmem>>, vector<8x16xf32>,
    %c180 = arith.constant 180 : index
    %c0_185 = arith.constant 0 : index
    %139 = tpu.strided_load %arg16[%c180, %c0_185] {strides = array<i32: 2, 1>} : memref<324x16xf32, #tpu.memory_space<vmem>>, vector<8x16xf32>
    %c32_186 = arith.constant 32 : index
    %c96_187 = arith.constant 96 : index
    %140 = vector.load %arg17[%c32_186, %c96_187] : memref<64x144xf32, #tpu.memory_space<vmem>>, vector<8x16xf32>
    tpu.vector_store %arg17[%c32_186, %c96_187], %139 {strides = array<i32>} : memref<64x144xf32, #tpu.memory_space<vmem>>, vector<8x16xf32>,
    %c181_188 = arith.constant 181 : index
    %c0_189 = arith.constant 0 : index
    %141 = tpu.strided_load %arg16[%c181_188, %c0_189] {strides = array<i32: 2, 1>} : memref<324x16xf32, #tpu.memory_space<vmem>>, vector<8x16xf32>
    %c32_190 = arith.constant 32 : index
    %c112_191 = arith.constant 112 : index
    %142 = vector.load %arg17[%c32_190, %c112_191] : memref<64x144xf32, #tpu.memory_space<vmem>>, vector<8x16xf32>
    tpu.vector_store %arg17[%c32_190, %c112_191], %141 {strides = array<i32>} : memref<64x144xf32, #tpu.memory_space<vmem>>, vector<8x16xf32>,
    %c182 = arith.constant 182 : index
    %c0_192 = arith.constant 0 : index
    %143 = tpu.strided_load %arg16[%c182, %c0_192] {strides = array<i32: 2, 1>} : memref<324x16xf32, #tpu.memory_space<vmem>>, vector<8x16xf32>
    %c32_193 = arith.constant 32 : index
    %c128_194 = arith.constant 128 : index
    %144 = vector.load %arg17[%c32_193, %c128_194] : memref<64x144xf32, #tpu.memory_space<vmem>>, vector<8x16xf32>
    tpu.vector_store %arg17[%c32_193, %c128_194], %143 {strides = array<i32>} : memref<64x144xf32, #tpu.memory_space<vmem>>, vector<8x16xf32>,
    %c180_195 = arith.constant 180 : index
    %c0_196 = arith.constant 0 : index
    %145 = tpu.strided_load %arg16[%c180_195, %c0_196] {strides = array<i32: 2, 1>} : memref<324x16xf32, #tpu.memory_space<vmem>>, vector<8x16xf32>
    %c40 = arith.constant 40 : index
    %c0_197 = arith.constant 0 : index
    %146 = vector.load %arg17[%c40, %c0_197] : memref<64x144xf32, #tpu.memory_space<vmem>>, vector<8x16xf32>
    tpu.vector_store %arg17[%c40, %c0_197], %145 {strides = array<i32>} : memref<64x144xf32, #tpu.memory_space<vmem>>, vector<8x16xf32>,
    %c181_198 = arith.constant 181 : index
    %c0_199 = arith.constant 0 : index
    %147 = tpu.strided_load %arg16[%c181_198, %c0_199] {strides = array<i32: 2, 1>} : memref<324x16xf32, #tpu.memory_space<vmem>>, vector<8x16xf32>
    %c40_200 = arith.constant 40 : index
    %c16_201 = arith.constant 16 : index
    %148 = vector.load %arg17[%c40_200, %c16_201] : memref<64x144xf32, #tpu.memory_space<vmem>>, vector<8x16xf32>
    tpu.vector_store %arg17[%c40_200, %c16_201], %147 {strides = array<i32>} : memref<64x144xf32, #tpu.memory_space<vmem>>, vector<8x16xf32>,
    %c182_202 = arith.constant 182 : index
    %c0_203 = arith.constant 0 : index
    %149 = tpu.strided_load %arg16[%c182_202, %c0_203] {strides = array<i32: 2, 1>} : memref<324x16xf32, #tpu.memory_space<vmem>>, vector<8x16xf32>
    %c40_204 = arith.constant 40 : index
    %c32_205 = arith.constant 32 : index
    %150 = vector.load %arg17[%c40_204, %c32_205] : memref<64x144xf32, #tpu.memory_space<vmem>>, vector<8x16xf32>
    tpu.vector_store %arg17[%c40_204, %c32_205], %149 {strides = array<i32>} : memref<64x144xf32, #tpu.memory_space<vmem>>, vector<8x16xf32>,
    %c198 = arith.constant 198 : index
    %c0_206 = arith.constant 0 : index
    %151 = tpu.strided_load %arg16[%c198, %c0_206] {strides = array<i32: 2, 1>} : memref<324x16xf32, #tpu.memory_space<vmem>>, vector<8x16xf32>
    %c40_207 = arith.constant 40 : index
    %c48_208 = arith.constant 48 : index
    %152 = vector.load %arg17[%c40_207, %c48_208] : memref<64x144xf32, #tpu.memory_space<vmem>>, vector<8x16xf32>
    tpu.vector_store %arg17[%c40_207, %c48_208], %151 {strides = array<i32>} : memref<64x144xf32, #tpu.memory_space<vmem>>, vector<8x16xf32>,
    %c199_209 = arith.constant 199 : index
    %c0_210 = arith.constant 0 : index
    %153 = tpu.strided_load %arg16[%c199_209, %c0_210] {strides = array<i32: 2, 1>} : memref<324x16xf32, #tpu.memory_space<vmem>>, vector<8x16xf32>
    %c40_211 = arith.constant 40 : index
    %c64_212 = arith.constant 64 : index
    %154 = vector.load %arg17[%c40_211, %c64_212] : memref<64x144xf32, #tpu.memory_space<vmem>>, vector<8x16xf32>
    tpu.vector_store %arg17[%c40_211, %c64_212], %153 {strides = array<i32>} : memref<64x144xf32, #tpu.memory_space<vmem>>, vector<8x16xf32>,
    %c200 = arith.constant 200 : index
    %c0_213 = arith.constant 0 : index
    %155 = tpu.strided_load %arg16[%c200, %c0_213] {strides = array<i32: 2, 1>} : memref<324x16xf32, #tpu.memory_space<vmem>>, vector<8x16xf32>
    %c40_214 = arith.constant 40 : index
    %c80_215 = arith.constant 80 : index
    %156 = vector.load %arg17[%c40_214, %c80_215] : memref<64x144xf32, #tpu.memory_space<vmem>>, vector<8x16xf32>
    tpu.vector_store %arg17[%c40_214, %c80_215], %155 {strides = array<i32>} : memref<64x144xf32, #tpu.memory_space<vmem>>, vector<8x16xf32>,
    %c216 = arith.constant 216 : index
    %c0_216 = arith.constant 0 : index
    %157 = tpu.strided_load %arg16[%c216, %c0_216] {strides = array<i32: 2, 1>} : memref<324x16xf32, #tpu.memory_space<vmem>>, vector<8x16xf32>
    %c40_217 = arith.constant 40 : index
    %c96_218 = arith.constant 96 : index
    %158 = vector.load %arg17[%c40_217, %c96_218] : memref<64x144xf32, #tpu.memory_space<vmem>>, vector<8x16xf32>
    tpu.vector_store %arg17[%c40_217, %c96_218], %157 {strides = array<i32>} : memref<64x144xf32, #tpu.memory_space<vmem>>, vector<8x16xf32>,
    %c217_219 = arith.constant 217 : index
    %c0_220 = arith.constant 0 : index
    %159 = tpu.strided_load %arg16[%c217_219, %c0_220] {strides = array<i32: 2, 1>} : memref<324x16xf32, #tpu.memory_space<vmem>>, vector<8x16xf32>
    %c40_221 = arith.constant 40 : index
    %c112_222 = arith.constant 112 : index
    %160 = vector.load %arg17[%c40_221, %c112_222] : memref<64x144xf32, #tpu.memory_space<vmem>>, vector<8x16xf32>
    tpu.vector_store %arg17[%c40_221, %c112_222], %159 {strides = array<i32>} : memref<64x144xf32, #tpu.memory_space<vmem>>, vector<8x16xf32>,
    %c218 = arith.constant 218 : index
    %c0_223 = arith.constant 0 : index
    %161 = tpu.strided_load %arg16[%c218, %c0_223] {strides = array<i32: 2, 1>} : memref<324x16xf32, #tpu.memory_space<vmem>>, vector<8x16xf32>
    %c40_224 = arith.constant 40 : index
    %c128_225 = arith.constant 128 : index
    %162 = vector.load %arg17[%c40_224, %c128_225] : memref<64x144xf32, #tpu.memory_space<vmem>>, vector<8x16xf32>
    tpu.vector_store %arg17[%c40_224, %c128_225], %161 {strides = array<i32>} : memref<64x144xf32, #tpu.memory_space<vmem>>, vector<8x16xf32>,
    %c216_226 = arith.constant 216 : index
    %c0_227 = arith.constant 0 : index
    %163 = tpu.strided_load %arg16[%c216_226, %c0_227] {strides = array<i32: 2, 1>} : memref<324x16xf32, #tpu.memory_space<vmem>>, vector<8x16xf32>
    %c48_228 = arith.constant 48 : index
    %c0_229 = arith.constant 0 : index
    %164 = vector.load %arg17[%c48_228, %c0_229] : memref<64x144xf32, #tpu.memory_space<vmem>>, vector<8x16xf32>
    tpu.vector_store %arg17[%c48_228, %c0_229], %163 {strides = array<i32>} : memref<64x144xf32, #tpu.memory_space<vmem>>, vector<8x16xf32>,
    %c217_230 = arith.constant 217 : index
    %c0_231 = arith.constant 0 : index
    %165 = tpu.strided_load %arg16[%c217_230, %c0_231] {strides = array<i32: 2, 1>} : memref<324x16xf32, #tpu.memory_space<vmem>>, vector<8x16xf32>
    %c48_232 = arith.constant 48 : index
    %c16_233 = arith.constant 16 : index
    %166 = vector.load %arg17[%c48_232, %c16_233] : memref<64x144xf32, #tpu.memory_space<vmem>>, vector<8x16xf32>
    tpu.vector_store %arg17[%c48_232, %c16_233], %165 {strides = array<i32>} : memref<64x144xf32, #tpu.memory_space<vmem>>, vector<8x16xf32>,
    %c218_234 = arith.constant 218 : index
    %c0_235 = arith.constant 0 : index
    %167 = tpu.strided_load %arg16[%c218_234, %c0_235] {strides = array<i32: 2, 1>} : memref<324x16xf32, #tpu.memory_space<vmem>>, vector<8x16xf32>
    %c48_236 = arith.constant 48 : index
    %c32_237 = arith.constant 32 : index
    %168 = vector.load %arg17[%c48_236, %c32_237] : memref<64x144xf32, #tpu.memory_space<vmem>>, vector<8x16xf32>
    tpu.vector_store %arg17[%c48_236, %c32_237], %167 {strides = array<i32>} : memref<64x144xf32, #tpu.memory_space<vmem>>, vector<8x16xf32>,
    %c234 = arith.constant 234 : index
    %c0_238 = arith.constant 0 : index
    %169 = tpu.strided_load %arg16[%c234, %c0_238] {strides = array<i32: 2, 1>} : memref<324x16xf32, #tpu.memory_space<vmem>>, vector<8x16xf32>
    %c48_239 = arith.constant 48 : index
    %c48_240 = arith.constant 48 : index
    %170 = vector.load %arg17[%c48_239, %c48_240] : memref<64x144xf32, #tpu.memory_space<vmem>>, vector<8x16xf32>
    tpu.vector_store %arg17[%c48_239, %c48_240], %169 {strides = array<i32>} : memref<64x144xf32, #tpu.memory_space<vmem>>, vector<8x16xf32>,
    %c235_241 = arith.constant 235 : index
    %c0_242 = arith.constant 0 : index
    %171 = tpu.strided_load %arg16[%c235_241, %c0_242] {strides = array<i32: 2, 1>} : memref<324x16xf32, #tpu.memory_space<vmem>>, vector<8x16xf32>
    %c48_243 = arith.constant 48 : index
    %c64_244 = arith.constant 64 : index
    %172 = vector.load %arg17[%c48_243, %c64_244] : memref<64x144xf32, #tpu.memory_space<vmem>>, vector<8x16xf32>
    tpu.vector_store %arg17[%c48_243, %c64_244], %171 {strides = array<i32>} : memref<64x144xf32, #tpu.memory_space<vmem>>, vector<8x16xf32>,
    %c236 = arith.constant 236 : index
    %c0_245 = arith.constant 0 : index
    %173 = tpu.strided_load %arg16[%c236, %c0_245] {strides = array<i32: 2, 1>} : memref<324x16xf32, #tpu.memory_space<vmem>>, vector<8x16xf32>
    %c48_246 = arith.constant 48 : index
    %c80_247 = arith.constant 80 : index
    %174 = vector.load %arg17[%c48_246, %c80_247] : memref<64x144xf32, #tpu.memory_space<vmem>>, vector<8x16xf32>
    tpu.vector_store %arg17[%c48_246, %c80_247], %173 {strides = array<i32>} : memref<64x144xf32, #tpu.memory_space<vmem>>, vector<8x16xf32>,
    %c252 = arith.constant 252 : index
    %c0_248 = arith.constant 0 : index
    %175 = tpu.strided_load %arg16[%c252, %c0_248] {strides = array<i32: 2, 1>} : memref<324x16xf32, #tpu.memory_space<vmem>>, vector<8x16xf32>
    %c48_249 = arith.constant 48 : index
    %c96_250 = arith.constant 96 : index
    %176 = vector.load %arg17[%c48_249, %c96_250] : memref<64x144xf32, #tpu.memory_space<vmem>>, vector<8x16xf32>
    tpu.vector_store %arg17[%c48_249, %c96_250], %175 {strides = array<i32>} : memref<64x144xf32, #tpu.memory_space<vmem>>, vector<8x16xf32>,
    %c253_251 = arith.constant 253 : index
    %c0_252 = arith.constant 0 : index
    %177 = tpu.strided_load %arg16[%c253_251, %c0_252] {strides = array<i32: 2, 1>} : memref<324x16xf32, #tpu.memory_space<vmem>>, vector<8x16xf32>
    %c48_253 = arith.constant 48 : index
    %c112_254 = arith.constant 112 : index
    %178 = vector.load %arg17[%c48_253, %c112_254] : memref<64x144xf32, #tpu.memory_space<vmem>>, vector<8x16xf32>
    tpu.vector_store %arg17[%c48_253, %c112_254], %177 {strides = array<i32>} : memref<64x144xf32, #tpu.memory_space<vmem>>, vector<8x16xf32>,
    %c254 = arith.constant 254 : index
    %c0_255 = arith.constant 0 : index
    %179 = tpu.strided_load %arg16[%c254, %c0_255] {strides = array<i32: 2, 1>} : memref<324x16xf32, #tpu.memory_space<vmem>>, vector<8x16xf32>
    %c48_256 = arith.constant 48 : index
    %c128_257 = arith.constant 128 : index
    %180 = vector.load %arg17[%c48_256, %c128_257] : memref<64x144xf32, #tpu.memory_space<vmem>>, vector<8x16xf32>
    tpu.vector_store %arg17[%c48_256, %c128_257], %179 {strides = array<i32>} : memref<64x144xf32, #tpu.memory_space<vmem>>, vector<8x16xf32>,
    %c252_258 = arith.constant 252 : index
    %c0_259 = arith.constant 0 : index
    %181 = tpu.strided_load %arg16[%c252_258, %c0_259] {strides = array<i32: 2, 1>} : memref<324x16xf32, #tpu.memory_space<vmem>>, vector<8x16xf32>
    %c56_260 = arith.constant 56 : index
    %c0_261 = arith.constant 0 : index
    %182 = vector.load %arg17[%c56_260, %c0_261] : memref<64x144xf32, #tpu.memory_space<vmem>>, vector<8x16xf32>
    tpu.vector_store %arg17[%c56_260, %c0_261], %181 {strides = array<i32>} : memref<64x144xf32, #tpu.memory_space<vmem>>, vector<8x16xf32>,
    %c253_262 = arith.constant 253 : index
    %c0_263 = arith.constant 0 : index
    %183 = tpu.strided_load %arg16[%c253_262, %c0_263] {strides = array<i32: 2, 1>} : memref<324x16xf32, #tpu.memory_space<vmem>>, vector<8x16xf32>
    %c56_264 = arith.constant 56 : index
    %c16_265 = arith.constant 16 : index
    %184 = vector.load %arg17[%c56_264, %c16_265] : memref<64x144xf32, #tpu.memory_space<vmem>>, vector<8x16xf32>
    tpu.vector_store %arg17[%c56_264, %c16_265], %183 {strides = array<i32>} : memref<64x144xf32, #tpu.memory_space<vmem>>, vector<8x16xf32>,
    %c254_266 = arith.constant 254 : index
    %c0_267 = arith.constant 0 : index
    %185 = tpu.strided_load %arg16[%c254_266, %c0_267] {strides = array<i32: 2, 1>} : memref<324x16xf32, #tpu.memory_space<vmem>>, vector<8x16xf32>
    %c56_268 = arith.constant 56 : index
    %c32_269 = arith.constant 32 : index
    %186 = vector.load %arg17[%c56_268, %c32_269] : memref<64x144xf32, #tpu.memory_space<vmem>>, vector<8x16xf32>
    tpu.vector_store %arg17[%c56_268, %c32_269], %185 {strides = array<i32>} : memref<64x144xf32, #tpu.memory_space<vmem>>, vector<8x16xf32>,
    %c270 = arith.constant 270 : index
    %c0_270 = arith.constant 0 : index
    %187 = tpu.strided_load %arg16[%c270, %c0_270] {strides = array<i32: 2, 1>} : memref<324x16xf32, #tpu.memory_space<vmem>>, vector<8x16xf32>
    %c56_271 = arith.constant 56 : index
    %c48_272 = arith.constant 48 : index
    %188 = vector.load %arg17[%c56_271, %c48_272] : memref<64x144xf32, #tpu.memory_space<vmem>>, vector<8x16xf32>
    tpu.vector_store %arg17[%c56_271, %c48_272], %187 {strides = array<i32>} : memref<64x144xf32, #tpu.memory_space<vmem>>, vector<8x16xf32>,
    %c271_273 = arith.constant 271 : index
    %c0_274 = arith.constant 0 : index
    %189 = tpu.strided_load %arg16[%c271_273, %c0_274] {strides = array<i32: 2, 1>} : memref<324x16xf32, #tpu.memory_space<vmem>>, vector<8x16xf32>
    %c56_275 = arith.constant 56 : index
    %c64_276 = arith.constant 64 : index
    %190 = vector.load %arg17[%c56_275, %c64_276] : memref<64x144xf32, #tpu.memory_space<vmem>>, vector<8x16xf32>
    tpu.vector_store %arg17[%c56_275, %c64_276], %189 {strides = array<i32>} : memref<64x144xf32, #tpu.memory_space<vmem>>, vector<8x16xf32>,
    %c272 = arith.constant 272 : index
    %c0_277 = arith.constant 0 : index
    %191 = tpu.strided_load %arg16[%c272, %c0_277] {strides = array<i32: 2, 1>} : memref<324x16xf32, #tpu.memory_space<vmem>>, vector<8x16xf32>
    %c56_278 = arith.constant 56 : index
    %c80_279 = arith.constant 80 : index
    %192 = vector.load %arg17[%c56_278, %c80_279] : memref<64x144xf32, #tpu.memory_space<vmem>>, vector<8x16xf32>
    tpu.vector_store %arg17[%c56_278, %c80_279], %191 {strides = array<i32>} : memref<64x144xf32, #tpu.memory_space<vmem>>, vector<8x16xf32>,
    %c288 = arith.constant 288 : index
    %c0_280 = arith.constant 0 : index
    %193 = tpu.strided_load %arg16[%c288, %c0_280] {strides = array<i32: 2, 1>} : memref<324x16xf32, #tpu.memory_space<vmem>>, vector<8x16xf32>
    %c56_281 = arith.constant 56 : index
    %c96_282 = arith.constant 96 : index
    %194 = vector.load %arg17[%c56_281, %c96_282] : memref<64x144xf32, #tpu.memory_space<vmem>>, vector<8x16xf32>
    tpu.vector_store %arg17[%c56_281, %c96_282], %193 {strides = array<i32>} : memref<64x144xf32, #tpu.memory_space<vmem>>, vector<8x16xf32>,
    %c289_283 = arith.constant 289 : index
    %c0_284 = arith.constant 0 : index
    %195 = tpu.strided_load %arg16[%c289_283, %c0_284] {strides = array<i32: 2, 1>} : memref<324x16xf32, #tpu.memory_space<vmem>>, vector<8x16xf32>
    %c56_285 = arith.constant 56 : index
    %c112_286 = arith.constant 112 : index
    %196 = vector.load %arg17[%c56_285, %c112_286] : memref<64x144xf32, #tpu.memory_space<vmem>>, vector<8x16xf32>
    tpu.vector_store %arg17[%c56_285, %c112_286], %195 {strides = array<i32>} : memref<64x144xf32, #tpu.memory_space<vmem>>, vector<8x16xf32>,
    %c290 = arith.constant 290 : index
    %c0_287 = arith.constant 0 : index
    %197 = tpu.strided_load %arg16[%c290, %c0_287] {strides = array<i32: 2, 1>} : memref<324x16xf32, #tpu.memory_space<vmem>>, vector<8x16xf32>
    %c56_288 = arith.constant 56 : index
    %c128_289 = arith.constant 128 : index
    %198 = vector.load %arg17[%c56_288, %c128_289] : memref<64x144xf32, #tpu.memory_space<vmem>>, vector<8x16xf32>
    tpu.vector_store %arg17[%c56_288, %c128_289], %197 {strides = array<i32>} : memref<64x144xf32, #tpu.memory_space<vmem>>, vector<8x16xf32>,
    %c0_290 = arith.constant 0 : index
    %c0_291 = arith.constant 0 : index
    %199 = vector.load %arg17[%c0_290, %c0_291] : memref<64x144xf32, #tpu.memory_space<vmem>>, vector<64x144xf32>
    %200 = arith.truncf %199 : vector<64x144xf32> to vector<64x144xbf16>
    %cst_292 = arith.constant dense<0.000000e+00> : vector<64x16xf32>
    %201 = tpu.matmul %200, %1, %cst_292 {dimension_numbers = #tpu.dot_dimension_numbers<[1], [0], [0], [1], [0, 0, 1, 1], [], []>} : vector<64x144xbf16>, vector<144x16xbf16>, vector<64x16xf32> -> vector<64x16xf32>
    %202 = vector.broadcast %5 : vector<1x16xf32> to vector<64x16xf32>
    %203 = arith.mulf %201, %202 : vector<64x16xf32>
    %204 = vector.broadcast %6 : vector<1x16xf32> to vector<64x16xf32>
    %205 = arith.addf %203, %204 : vector<64x16xf32>
    %cst_293 = arith.constant 0.000000e+00 : f32
    %206 = vector.broadcast %cst_293 : f32 to vector<64x16xf32>
    %207 = arith.maximumf %205, %206 : vector<64x16xf32>
    %208 = arith.truncf %207 : vector<64x16xf32> to vector<64x16xbf16>
    %cst_294 = arith.constant dense<0.000000e+00> : vector<64x64xf32>
    %209 = tpu.matmul %208, %2, %cst_294 {dimension_numbers = #tpu.dot_dimension_numbers<[1], [0], [0], [1], [0, 0, 1, 1], [], []>} : vector<64x16xbf16>, vector<16x64xbf16>, vector<64x64xf32> -> vector<64x64xf32>
    %210 = vector.broadcast %7 : vector<1x64xf32> to vector<64x64xf32>
    %211 = arith.mulf %209, %210 : vector<64x64xf32>
    %212 = vector.broadcast %8 : vector<1x64xf32> to vector<64x64xf32>
    %213 = arith.addf %211, %212 : vector<64x64xf32>
    %c0_295 = arith.constant 0 : index
    %c0_296 = arith.constant 0 : index
    %c0_297 = arith.constant 0 : index
    %214 = vector.load %arg2[%c0_295, %c0_296, %c0_297] : memref<1x64x16xbf16, #tpu.memory_space<vmem>>, vector<1x64x16xbf16>
    %215 = vector.shape_cast %214 : vector<1x64x16xbf16> to vector<64x16xbf16>
    %cst_298 = arith.constant dense<0.000000e+00> : vector<64x64xf32>
    %216 = tpu.matmul %215, %9, %cst_298 {dimension_numbers = #tpu.dot_dimension_numbers<[1], [0], [0], [1], [0, 0, 1, 1], [], []>} : vector<64x16xbf16>, vector<16x64xbf16>, vector<64x64xf32> -> vector<64x64xf32>
    %217 = vector.broadcast %10 : vector<1x64xf32> to vector<64x64xf32>
    %218 = arith.mulf %216, %217 : vector<64x64xf32>
    %219 = vector.broadcast %11 : vector<1x64xf32> to vector<64x64xf32>
    %220 = arith.addf %218, %219 : vector<64x64xf32>
    %221 = arith.addf %213, %220 : vector<64x64xf32>
    %cst_299 = arith.constant 0.000000e+00 : f32
    %222 = vector.broadcast %cst_299 : f32 to vector<64x64xf32>
    %223 = arith.maximumf %221, %222 : vector<64x64xf32>
    %224 = arith.truncf %223 : vector<64x64xf32> to vector<64x64xbf16>
    %c0_300 = arith.constant 0 : index
    %c0_301 = arith.constant 0 : index
    %c0_302 = arith.constant 0 : index
    %225 = vector.load %arg15[%c0_300, %c0_301, %c0_302] : memref<1x64x64xbf16, #tpu.memory_space<vmem>>, vector<1x64x64xbf16>
    %226 = vector.shape_cast %225 : vector<1x64x64xbf16> to vector<64x64xbf16>
    %227 = vector.shape_cast %224 : vector<64x64xbf16> to vector<1x64x64xbf16>
    tpu.vector_store %arg15[%c0_300, %c0_301, %c0_302], %227 {strides = array<i32>} : memref<1x64x64xbf16, #tpu.memory_space<vmem>>, vector<1x64x64xbf16>,
    return
  }
  func.func @transform_0(%arg0: i32) -> (i32, i32, i32) {
    %c0_i32 = arith.constant 0 : i32
    %c0_i32_0 = arith.constant 0 : i32
    %c0_i32_1 = arith.constant 0 : i32
    return %arg0, %c0_i32, %c0_i32_0 : i32, i32, i32
  }
  func.func @transform_1(%arg0: i32) -> (i32, i32, i32) {
    %c0_i32 = arith.constant 0 : i32
    %c0_i32_0 = arith.constant 0 : i32
    %c0_i32_1 = arith.constant 0 : i32
    return %arg0, %c0_i32, %c0_i32_0 : i32, i32, i32
  }
  func.func @transform_2(%arg0: i32) -> (i32, i32) {
    %c0_i32 = arith.constant 0 : i32
    %c0_i32_0 = arith.constant 0 : i32
    %c0_i32_1 = arith.constant 0 : i32
    return %c0_i32, %c0_i32_0 : i32, i32
  }
  func.func @transform_3(%arg0: i32) -> (i32, i32) {
    %c0_i32 = arith.constant 0 : i32
    %c0_i32_0 = arith.constant 0 : i32
    %c0_i32_1 = arith.constant 0 : i32
    return %c0_i32, %c0_i32_0 : i32, i32
  }
  func.func @transform_4(%arg0: i32) -> (i32, i32) {
    %c0_i32 = arith.constant 0 : i32
    %c0_i32_0 = arith.constant 0 : i32
    %c0_i32_1 = arith.constant 0 : i32
    return %c0_i32, %c0_i32_0 : i32, i32
  }
  func.func @transform_5(%arg0: i32) -> (i32, i32) {
    %c0_i32 = arith.constant 0 : i32
    %c0_i32_0 = arith.constant 0 : i32
    %c0_i32_1 = arith.constant 0 : i32
    return %c0_i32, %c0_i32_0 : i32, i32
  }
  func.func @transform_6(%arg0: i32) -> (i32, i32) {
    %c0_i32 = arith.constant 0 : i32
    %c0_i32_0 = arith.constant 0 : i32
    %c0_i32_1 = arith.constant 0 : i32
    return %c0_i32, %c0_i32_0 : i32, i32
  }
  func.func @transform_7(%arg0: i32) -> (i32, i32) {
    %c0_i32 = arith.constant 0 : i32
    %c0_i32_0 = arith.constant 0 : i32
    %c0_i32_1 = arith.constant 0 : i32
    return %c0_i32, %c0_i32_0 : i32, i32
  }
  func.func @transform_8(%arg0: i32) -> (i32, i32) {
    %c0_i32 = arith.constant 0 : i32
    %c0_i32_0 = arith.constant 0 : i32
    %c0_i32_1 = arith.constant 0 : i32
    return %c0_i32, %c0_i32_0 : i32, i32
  }
  func.func @transform_9(%arg0: i32) -> (i32, i32) {
    %c0_i32 = arith.constant 0 : i32
    %c0_i32_0 = arith.constant 0 : i32
    %c0_i32_1 = arith.constant 0 : i32
    return %c0_i32, %c0_i32_0 : i32, i32
  }
  func.func @transform_10(%arg0: i32) -> (i32, i32) {
    %c0_i32 = arith.constant 0 : i32
    %c0_i32_0 = arith.constant 0 : i32
    %c0_i32_1 = arith.constant 0 : i32
    return %c0_i32, %c0_i32_0 : i32, i32
  }
  func.func @transform_11(%arg0: i32) -> (i32, i32) {
    %c0_i32 = arith.constant 0 : i32
    %c0_i32_0 = arith.constant 0 : i32
    %c0_i32_1 = arith.constant 0 : i32
    return %c0_i32, %c0_i32_0 : i32, i32
  }
  func.func @transform_12(%arg0: i32) -> (i32, i32) {
    %c0_i32 = arith.constant 0 : i32
    %c0_i32_0 = arith.constant 0 : i32
    %c0_i32_1 = arith.constant 0 : i32
    return %c0_i32, %c0_i32_0 : i32, i32
  }
  func.func @transform_13(%arg0: i32) -> (i32, i32) {
    %c0_i32 = arith.constant 0 : i32
    %c0_i32_0 = arith.constant 0 : i32
    %c0_i32_1 = arith.constant 0 : i32
    return %c0_i32, %c0_i32_0 : i32, i32
  }
  func.func @transform_14(%arg0: i32) -> (i32, i32, i32) {
    %c0_i32 = arith.constant 0 : i32
    %c0_i32_0 = arith.constant 0 : i32
    %c0_i32_1 = arith.constant 0 : i32
    return %arg0, %c0_i32, %c0_i32_0 : i32, i32, i32
  }
}

</mosaic_0001>

<llo_original>
// kernel: _bottleneck_forward.1
$region0: #{_bottleneck_forward.1}
  #allocation0 [shape = 'u32[]', space=smem, size = 0x4, offset = 0x4, fixed_abs, tag = 'smem constant byte address 0x4 - core index']
  #allocation1 [shape = 'u32[144,128]{1,0:T(1,128)}', space=vmem, size = 0x12000, scoped, tag = 'internal scratch']
  #allocation2 [shape = 'f32[324,16]{1,0:T(8,128)}', space=vmem, size = 0x29000, scoped, tag = 'scratch operand']
  #allocation3 [shape = 'f32[64,144]{1,0:T(8,128)}', space=vmem, size = 0x10000, scoped, tag = 'scratch operand']
  %s0 = inlined_call_operand.vmem [shape: bf16[2,256,16], index: 0, kind: input, shape index: {}]
  %s1 = inlined_call_operand.vmem [shape: bf16[2,64,16], index: 1, kind: input, shape index: {}]
  %s2 = inlined_call_operand.vmem [shape: bf16[16,16], index: 2, kind: input, shape index: {}]
  %s3 = inlined_call_operand.vmem [shape: bf16[144,16], index: 3, kind: input, shape index: {}]
  %s4 = inlined_call_operand.vmem [shape: bf16[16,64], index: 4, kind: input, shape index: {}]
  %s5 = inlined_call_operand.vmem [shape: bf16[16,64], index: 5, kind: input, shape index: {}]
  %s6 = inlined_call_operand.vmem [shape: f32[1,16], index: 6, kind: input, shape index: {}]
  %s7 = inlined_call_operand.vmem [shape: f32[1,16], index: 7, kind: input, shape index: {}]
  %s8 = inlined_call_operand.vmem [shape: f32[1,16], index: 8, kind: input, shape index: {}]
  %s9 = inlined_call_operand.vmem [shape: f32[1,16], index: 9, kind: input, shape index: {}]
  %s10 = inlined_call_operand.vmem [shape: f32[1,64], index: 10, kind: input, shape index: {}]
  %s11 = inlined_call_operand.vmem [shape: f32[1,64], index: 11, kind: input, shape index: {}]
  %s12 = inlined_call_operand.vmem [shape: f32[1,64], index: 12, kind: input, shape index: {}]
  %s13 = inlined_call_operand.vmem [shape: f32[1,64], index: 13, kind: input, shape index: {}]
  %s14 = inlined_call_operand.vmem [shape: bf16[2,64,64], index: 14, kind: output, shape index: {}]
  %s15 = sld [smem:[#allocation0]]
  $region89: #{_bottleneck_forward.1} parent=0
    _
  %s17 = ssub.s32 1, %s15
  %s18 = scalar_select 0, %s17, %s15
  loop: start=0, step=1, limit=4
  $region2: #{_bottleneck_forward.1} parent=0 // loop_pre_header
    _
  $region3: #{_bottleneck_forward.1} parent=0 // loop_header
    %s20 = sphi 0, %s24
    %p21 = scmp.ge.s32.totalorder %s20, 4
    %s30 = sphi 0, %s32
    %s33 = sphi 0, %s30
    %s34 = sphi 0, %s33
    %s50 = sphi 0, %s34
    %s56 = sphi 0, %s58
    %s59 = sphi 0, %s56
    %s60 = sphi 0, %s59
    %s76 = sphi 0, %s60
    %s80 = sphi 0, %s80
    %s82 = sphi 0, %s80
    %s83 = sphi 0, %s82
    %s97 = sphi 0, %s83
    %s101 = sphi 0, %s101
    %s103 = sphi 0, %s101
    %s104 = sphi 0, %s103
    %s118 = sphi 0, %s104
    %s122 = sphi 0, %s122
    %s124 = sphi 0, %s122
    %s125 = sphi 0, %s124
    %s139 = sphi 0, %s125
    %s143 = sphi 0, %s143
    %s145 = sphi 0, %s143
    %s146 = sphi 0, %s145
    %s160 = sphi 0, %s146
    %s164 = sphi 0, %s164
    %s166 = sphi 0, %s164
    %s167 = sphi 0, %s166
    %s181 = sphi 0, %s167
    %s185 = sphi 0, %s185
    %s187 = sphi 0, %s185
    %s188 = sphi 0, %s187
    %s202 = sphi 0, %s188
    %s206 = sphi 0, %s206
    %s208 = sphi 0, %s206
    %s209 = sphi 0, %s208
    %s223 = sphi 0, %s209
    %s227 = sphi 0, %s227
    %s229 = sphi 0, %s227
    %s230 = sphi 0, %s229
    %s244 = sphi 0, %s230
    %s248 = sphi 0, %s248
    %s250 = sphi 0, %s248
    %s251 = sphi 0, %s250
    %s265 = sphi 0, %s251
    %s269 = sphi 0, %s269
    %s271 = sphi 0, %s269
    %s272 = sphi 0, %s271
    %s286 = sphi 0, %s272
    %s290 = sphi 0, %s290
    %s292 = sphi 0, %s290
    %s293 = sphi 0, %s292
    %s307 = sphi 0, %s293
    %s311 = sphi 0, %s311
    %s313 = sphi 0, %s311
    %s314 = sphi 0, %s313
    %s328 = sphi 0, %s314
    %s334 = sphi 0, %s336
    %s337 = sphi 0, %s334
    %s338 = sphi 0, %s337
    %s354 = sphi 0, %s338
  $region4: #{_bottleneck_forward.1} parent=0 // loop_header_branch
    %23 = sbr.rel (%p21) target = $region8
  $region5: #{_bottleneck_forward.1} parent=0 // loop_body
    %s25 = ssub.s32 %s20, 1
    %s26 = ssub.s32 %s20, 2
    %s27 = sadd.s32 %s20, 1
    %s28 = ssub.s32 %s20, %s27
    %p29 = scmp.eq.s32.totalorder %s28, 0
    %s31 = sadd.s32 %s30, 1
    %s32 = scalar_select %p29, %s30, %s31
    %p35 = pneg %p29
    %p36 = scmp.eq.s32.totalorder %s20, 1
    %p37 = por %p35, %p36
    %p38 = scmp.ne.s32.totalorder %s30, %s33
    %p39 = scmp.eq.s32.totalorder %s20, 0
    %p40 = por %p38, %p39
    %p41 = scmp.ne.s32.totalorder %s30, %s33
    %p42 = scmp.eq.s32.totalorder %s25, 1
    %p43 = por %p41, %p42
    %p44 = scmp.ne.s32.totalorder %s33, %s34
    %p45 = scmp.eq.s32.totalorder %s25, 0
    %p46 = por %p44, %p45
    %p47 = scmp.ne.s32.totalorder %s33, %s34
    %p48 = scmp.eq.s32.totalorder %s26, 1
    %p49 = por %p47, %p48
    %p51 = scmp.ne.s32.totalorder %s34, %s50
    %p52 = scmp.eq.s32.totalorder %s26, 0
    %p53 = por %p51, %p52
    %s54 = ssub.s32 %s20, %s27
    %p55 = scmp.eq.s32.totalorder %s54, 0
    %s57 = sadd.s32 %s56, 1
    %s58 = scalar_select %p55, %s56, %s57
    %p61 = pneg %p55
    %p62 = scmp.eq.s32.totalorder %s20, 1
    %p63 = por %p61, %p62
    %p64 = scmp.ne.s32.totalorder %s56, %s59
    %p65 = scmp.eq.s32.totalorder %s20, 0
    %p66 = por %p64, %p65
    %p67 = scmp.ne.s32.totalorder %s56, %s59
    %p68 = scmp.eq.s32.totalorder %s25, 1
    %p69 = por %p67, %p68
    %p70 = scmp.ne.s32.totalorder %s59, %s60
    %p71 = scmp.eq.s32.totalorder %s25, 0
    %p72 = por %p70, %p71
    %p73 = scmp.ne.s32.totalorder %s59, %s60
    %p74 = scmp.eq.s32.totalorder %s26, 1
    %p75 = por %p73, %p74
    %p77 = scmp.ne.s32.totalorder %s60, %s76
    %p78 = scmp.eq.s32.totalorder %s26, 0
    %p79 = por %p77, %p78
    %s81 = sadd.s32 %s80, 1
    %p84 = scmp.eq.s32.totalorder %s20, 1
    %p85 = scmp.ne.s32.totalorder %s80, %s82
    %p86 = scmp.eq.s32.totalorder %s20, 0
    %p87 = por %p85, %p86
    %p88 = scmp.ne.s32.totalorder %s80, %s82
    %p89 = scmp.eq.s32.totalorder %s25, 1
    %p90 = por %p88, %p89
    %p91 = scmp.ne.s32.totalorder %s82, %s83
    %p92 = scmp.eq.s32.totalorder %s25, 0
    %p93 = por %p91, %p92
    %p94 = scmp.ne.s32.totalorder %s82, %s83
    %p95 = scmp.eq.s32.totalorder %s26, 1
    %p96 = por %p94, %p95
    %p98 = scmp.ne.s32.totalorder %s83, %s97
    %p99 = scmp.eq.s32.totalorder %s26, 0
    %p100 = por %p98, %p99
    %s102 = sadd.s32 %s101, 1
    %p105 = scmp.eq.s32.totalorder %s20, 1
    %p106 = scmp.ne.s32.totalorder %s101, %s103
    %p107 = scmp.eq.s32.totalorder %s20, 0
    %p108 = por %p106, %p107
    %p109 = scmp.ne.s32.totalorder %s101, %s103
    %p110 = scmp.eq.s32.totalorder %s25, 1
    %p111 = por %p109, %p110
    %p112 = scmp.ne.s32.totalorder %s103, %s104
    %p113 = scmp.eq.s32.totalorder %s25, 0
    %p114 = por %p112, %p113
    %p115 = scmp.ne.s32.totalorder %s103, %s104
    %p116 = scmp.eq.s32.totalorder %s26, 1
    %p117 = por %p115, %p116
    %p119 = scmp.ne.s32.totalorder %s104, %s118
    %p120 = scmp.eq.s32.totalorder %s26, 0
    %p121 = por %p119, %p120
    %s123 = sadd.s32 %s122, 1
    %p126 = scmp.eq.s32.totalorder %s20, 1
    %p127 = scmp.ne.s32.totalorder %s122, %s124
    %p128 = scmp.eq.s32.totalorder %s20, 0
    %p129 = por %p127, %p128
    %p130 = scmp.ne.s32.totalorder %s122, %s124
    %p131 = scmp.eq.s32.totalorder %s25, 1
    %p132 = por %p130, %p131
    %p133 = scmp.ne.s32.totalorder %s124, %s125
    %p134 = scmp.eq.s32.totalorder %s25, 0
    %p135 = por %p133, %p134
    %p136 = scmp.ne.s32.totalorder %s124, %s125
    %p137 = scmp.eq.s32.totalorder %s26, 1
    %p138 = por %p136, %p137
    %p140 = scmp.ne.s32.totalorder %s125, %s139
    %p141 = scmp.eq.s32.totalorder %s26, 0
    %p142 = por %p140, %p141
    %s144 = sadd.s32 %s143, 1
    %p147 = scmp.eq.s32.totalorder %s20, 1
    %p148 = scmp.ne.s32.totalorder %s143, %s145
    %p149 = scmp.eq.s32.totalorder %s20, 0
    %p150 = por %p148, %p149
    %p151 = scmp.ne.s32.totalorder %s143, %s145
    %p152 = scmp.eq.s32.totalorder %s25, 1
    %p153 = por %p151, %p152
    %p154 = scmp.ne.s32.totalorder %s145, %s146
    %p155 = scmp.eq.s32.totalorder %s25, 0
    %p156 = por %p154, %p155
    %p157 = scmp.ne.s32.totalorder %s145, %s146
    %p158 = scmp.eq.s32.totalorder %s26, 1
    %p159 = por %p157, %p158
    %p161 = scmp.ne.s32.totalorder %s146, %s160
    %p162 = scmp.eq.s32.totalorder %s26, 0
    %p163 = por %p161, %p162
    %s165 = sadd.s32 %s164, 1
    %p168 = scmp.eq.s32.totalorder %s20, 1
    %p169 = scmp.ne.s32.totalorder %s164, %s166
    %p170 = scmp.eq.s32.totalorder %s20, 0
    %p171 = por %p169, %p170
    %p172 = scmp.ne.s32.totalorder %s164, %s166
    %p173 = scmp.eq.s32.totalorder %s25, 1
    %p174 = por %p172, %p173
    %p175 = scmp.ne.s32.totalorder %s166, %s167
    %p176 = scmp.eq.s32.totalorder %s25, 0
    %p177 = por %p175, %p176
    %p178 = scmp.ne.s32.totalorder %s166, %s167
    %p179 = scmp.eq.s32.totalorder %s26, 1
    %p180 = por %p178, %p179
    %p182 = scmp.ne.s32.totalorder %s167, %s181
    %p183 = scmp.eq.s32.totalorder %s26, 0
    %p184 = por %p182, %p183
    %s186 = sadd.s32 %s185, 1
    %p189 = scmp.eq.s32.totalorder %s20, 1
    %p190 = scmp.ne.s32.totalorder %s185, %s187
    %p191 = scmp.eq.s32.totalorder %s20, 0
    %p192 = por %p190, %p191
    %p193 = scmp.ne.s32.totalorder %s185, %s187
    %p194 = scmp.eq.s32.totalorder %s25, 1
    %p195 = por %p193, %p194
    %p196 = scmp.ne.s32.totalorder %s187, %s188
    %p197 = scmp.eq.s32.totalorder %s25, 0
    %p198 = por %p196, %p197
    %p199 = scmp.ne.s32.totalorder %s187, %s188
    %p200 = scmp.eq.s32.totalorder %s26, 1
    %p201 = por %p199, %p200
    %p203 = scmp.ne.s32.totalorder %s188, %s202
    %p204 = scmp.eq.s32.totalorder %s26, 0
    %p205 = por %p203, %p204
    %s207 = sadd.s32 %s206, 1
    %p210 = scmp.eq.s32.totalorder %s20, 1
    %p211 = scmp.ne.s32.totalorder %s206, %s208
    %p212 = scmp.eq.s32.totalorder %s20, 0
    %p213 = por %p211, %p212
    %p214 = scmp.ne.s32.totalorder %s206, %s208
    %p215 = scmp.eq.s32.totalorder %s25, 1
    %p216 = por %p214, %p215
    %p217 = scmp.ne.s32.totalorder %s208, %s209
    %p218 = scmp.eq.s32.totalorder %s25, 0
    %p219 = por %p217, %p218
    %p220 = scmp.ne.s32.totalorder %s208, %s209
    %p221 = scmp.eq.s32.totalorder %s26, 1
    %p222 = por %p220, %p221
    %p224 = scmp.ne.s32.totalorder %s209, %s223
    %p225 = scmp.eq.s32.totalorder %s26, 0
    %p226 = por %p224, %p225
    %s228 = sadd.s32 %s227, 1
    %p231 = scmp.eq.s32.totalorder %s20, 1
    %p232 = scmp.ne.s32.totalorder %s227, %s229
    %p233 = scmp.eq.s32.totalorder %s20, 0
    %p234 = por %p232, %p233
    %p235 = scmp.ne.s32.totalorder %s227, %s229
    %p236 = scmp.eq.s32.totalorder %s25, 1
    %p237 = por %p235, %p236
    %p238 = scmp.ne.s32.totalorder %s229, %s230
    %p239 = scmp.eq.s32.totalorder %s25, 0
    %p240 = por %p238, %p239
    %p241 = scmp.ne.s32.totalorder %s229, %s230
    %p242 = scmp.eq.s32.totalorder %s26, 1
    %p243 = por %p241, %p242
    %p245 = scmp.ne.s32.totalorder %s230, %s244
    %p246 = scmp.eq.s32.totalorder %s26, 0
    %p247 = por %p245, %p246
    %s249 = sadd.s32 %s248, 1
    %p252 = scmp.eq.s32.totalorder %s20, 1
    %p253 = scmp.ne.s32.totalorder %s248, %s250
    %p254 = scmp.eq.s32.totalorder %s20, 0
    %p255 = por %p253, %p254
    %p256 = scmp.ne.s32.totalorder %s248, %s250
    %p257 = scmp.eq.s32.totalorder %s25, 1
    %p258 = por %p256, %p257
    %p259 = scmp.ne.s32.totalorder %s250, %s251
    %p260 = scmp.eq.s32.totalorder %s25, 0
    %p261 = por %p259, %p260
    %p262 = scmp.ne.s32.totalorder %s250, %s251
    %p263 = scmp.eq.s32.totalorder %s26, 1
    %p264 = por %p262, %p263
    %p266 = scmp.ne.s32.totalorder %s251, %s265
    %p267 = scmp.eq.s32.totalorder %s26, 0
    %p268 = por %p266, %p267
    %s270 = sadd.s32 %s269, 1
    %p273 = scmp.eq.s32.totalorder %s20, 1
    %p274 = scmp.ne.s32.totalorder %s269, %s271
    %p275 = scmp.eq.s32.totalorder %s20, 0
    %p276 = por %p274, %p275
    %p277 = scmp.ne.s32.totalorder %s269, %s271
    %p278 = scmp.eq.s32.totalorder %s25, 1
    %p279 = por %p277, %p278
    %p280 = scmp.ne.s32.totalorder %s271, %s272
    %p281 = scmp.eq.s32.totalorder %s25, 0
    %p282 = por %p280, %p281
    %p283 = scmp.ne.s32.totalorder %s271, %s272
    %p284 = scmp.eq.s32.totalorder %s26, 1
    %p285 = por %p283, %p284
    %p287 = scmp.ne.s32.totalorder %s272, %s286
    %p288 = scmp.eq.s32.totalorder %s26, 0
    %p289 = por %p287, %p288
    %s291 = sadd.s32 %s290, 1
    %p294 = scmp.eq.s32.totalorder %s20, 1
    %p295 = scmp.ne.s32.totalorder %s290, %s292
    %p296 = scmp.eq.s32.totalorder %s20, 0
    %p297 = por %p295, %p296
    %p298 = scmp.ne.s32.totalorder %s290, %s292
    %p299 = scmp.eq.s32.totalorder %s25, 1
    %p300 = por %p298, %p299
    %p301 = scmp.ne.s32.totalorder %s292, %s293
    %p302 = scmp.eq.s32.totalorder %s25, 0
    %p303 = por %p301, %p302
    %p304 = scmp.ne.s32.totalorder %s292, %s293
    %p305 = scmp.eq.s32.totalorder %s26, 1
    %p306 = por %p304, %p305
    %p308 = scmp.ne.s32.totalorder %s293, %s307
    %p309 = scmp.eq.s32.totalorder %s26, 0
    %p310 = por %p308, %p309
    %s312 = sadd.s32 %s311, 1
    %p315 = scmp.eq.s32.totalorder %s20, 1
    %p316 = scmp.ne.s32.totalorder %s311, %s313
    %p317 = scmp.eq.s32.totalorder %s20, 0
    %p318 = por %p316, %p317
    %p319 = scmp.ne.s32.totalorder %s311, %s313
    %p320 = scmp.eq.s32.totalorder %s25, 1
    %p321 = por %p319, %p320
    %p322 = scmp.ne.s32.totalorder %s313, %s314
    %p323 = scmp.eq.s32.totalorder %s25, 0
    %p324 = por %p322, %p323
    %p325 = scmp.ne.s32.totalorder %s313, %s314
    %p326 = scmp.eq.s32.totalorder %s26, 1
    %p327 = por %p325, %p326
    %p329 = scmp.ne.s32.totalorder %s314, %s328
    %p330 = scmp.eq.s32.totalorder %s26, 0
    %p331 = por %p329, %p330
    %s332 = ssub.s32 %s20, %s27
    %p333 = scmp.eq.s32.totalorder %s332, 0
    %s335 = sadd.s32 %s334, 1
    %s336 = scalar_select %p333, %s334, %s335
    %p339 = pneg %p333
    %p340 = scmp.eq.s32.totalorder %s20, 1
    %p341 = por %p339, %p340
    %p342 = scmp.ne.s32.totalorder %s334, %s337
    %p343 = scmp.eq.s32.totalorder %s20, 0
    %p344 = por %p342, %p343
    %p345 = scmp.ne.s32.totalorder %s334, %s337
    %p346 = scmp.eq.s32.totalorder %s25, 1
    %p347 = por %p345, %p346
    %p348 = scmp.ne.s32.totalorder %s337, %s338
    %p349 = scmp.eq.s32.totalorder %s25, 0
    %p350 = por %p348, %p349
    %p351 = scmp.ne.s32.totalorder %s337, %s338
    %p352 = scmp.eq.s32.totalorder %s26, 1
    %p353 = por %p351, %p352
    %p355 = scmp.ne.s32.totalorder %s338, %s354
    %p356 = scmp.eq.s32.totalorder %s26, 0
    %p357 = por %p355, %p356
    %p358 = scmp.le.s32.totalorder 1, %s20
    %p359 = scmp.lt.s32.totalorder %s20, 3
    %p360 = pnand %p358, %p359
    %p361 = pneg %p360
    // Predicated region
    $region9: #{_bottleneck_forward.1} parent=5 // pred_check
      _
    $region10: #{_bottleneck_forward.1} parent=5 // pred_check_branch
      %363 = sbr.rel (%p360) target = $region12
    $region11: #{_bottleneck_forward.1} parent=5 // pred_region
      %s364 = ssub.s32 %s20, 1
      // Predicated region
      $region13: #{_bottleneck_forward.1} parent=11 // pred_check
        %p365 = pneg %p93
      $region14: #{_bottleneck_forward.1} parent=11 // pred_check_branch
        %367 = sbr.rel (%p365) target = $region16
      $region15: #{_bottleneck_forward.1} parent=11 // pred_region
        _
      $region16: #{_bottleneck_forward.1} parent=11 // pred_fallthru
        _
      // Predicated region
      $region17: #{_bottleneck_forward.1} parent=11 // pred_check
        %p368 = pneg %p114
      $region18: #{_bottleneck_forward.1} parent=11 // pred_check_branch
        %370 = sbr.rel (%p368) target = $region20
      $region19: #{_bottleneck_forward.1} parent=11 // pred_region
        _
      $region20: #{_bottleneck_forward.1} parent=11 // pred_fallthru
        _
      // Predicated region
      $region21: #{_bottleneck_forward.1} parent=11 // pred_check
        %p371 = pneg %p135
      $region22: #{_bottleneck_forward.1} parent=11 // pred_check_branch
        %373 = sbr.rel (%p371) target = $region24
      $region23: #{_bottleneck_forward.1} parent=11 // pred_region
        _
      $region24: #{_bottleneck_forward.1} parent=11 // pred_fallthru
        _
      // Predicated region
      $region25: #{_bottleneck_forward.1} parent=11 // pred_check
        %p374 = pneg %p156
      $region26: #{_bottleneck_forward.1} parent=11 // pred_check_branch
        %376 = sbr.rel (%p374) target = $region28
      $region27: #{_bottleneck_forward.1} parent=11 // pred_region
        _
      $region28: #{_bottleneck_forward.1} parent=11 // pred_fallthru
        _
      // Predicated region
      $region29: #{_bottleneck_forward.1} parent=11 // pred_check
        %p377 = pneg %p177
      $region30: #{_bottleneck_forward.1} parent=11 // pred_check_branch
        %379 = sbr.rel (%p377) target = $region32
      $region31: #{_bottleneck_forward.1} parent=11 // pred_region
        _
      $region32: #{_bottleneck_forward.1} parent=11 // pred_fallthru
        _
      // Predicated region
      $region33: #{_bottleneck_forward.1} parent=11 // pred_check
        %p380 = pneg %p198
      $region34: #{_bottleneck_forward.1} parent=11 // pred_check_branch
        %382 = sbr.rel (%p380) target = $region36
      $region35: #{_bottleneck_forward.1} parent=11 // pred_region
        _
      $region36: #{_bottleneck_forward.1} parent=11 // pred_fallthru
        _
      // Predicated region
      $region37: #{_bottleneck_forward.1} parent=11 // pred_check
        %p383 = pneg %p219
      $region38: #{_bottleneck_forward.1} parent=11 // pred_check_branch
        %385 = sbr.rel (%p383) target = $region40
      $region39: #{_bottleneck_forward.1} parent=11 // pred_region
        _
      $region40: #{_bottleneck_forward.1} parent=11 // pred_fallthru
        _
      // Predicated region
      $region41: #{_bottleneck_forward.1} parent=11 // pred_check
        %p386 = pneg %p240
      $region42: #{_bottleneck_forward.1} parent=11 // pred_check_branch
        %388 = sbr.rel (%p386) target = $region44
      $region43: #{_bottleneck_forward.1} parent=11 // pred_region
        _
      $region44: #{_bottleneck_forward.1} parent=11 // pred_fallthru
        _
      // Predicated region
      $region45: #{_bottleneck_forward.1} parent=11 // pred_check
        %p389 = pneg %p261
      $region46: #{_bottleneck_forward.1} parent=11 // pred_check_branch
        %391 = sbr.rel (%p389) target = $region48
      $region47: #{_bottleneck_forward.1} parent=11 // pred_region
        _
      $region48: #{_bottleneck_forward.1} parent=11 // pred_fallthru
        _
      // Predicated region
      $region49: #{_bottleneck_forward.1} parent=11 // pred_check
        %p392 = pneg %p282
      $region50: #{_bottleneck_forward.1} parent=11 // pred_check_branch
        %394 = sbr.rel (%p392) target = $region52
      $region51: #{_bottleneck_forward.1} parent=11 // pred_region
        _
      $region52: #{_bottleneck_forward.1} parent=11 // pred_fallthru
        _
      // Predicated region
      $region53: #{_bottleneck_forward.1} parent=11 // pred_check
        %p395 = pneg %p303
      $region54: #{_bottleneck_forward.1} parent=11 // pred_check_branch
        %397 = sbr.rel (%p395) target = $region56
      $region55: #{_bottleneck_forward.1} parent=11 // pred_region
        _
      $region56: #{_bottleneck_forward.1} parent=11 // pred_fallthru
        _
      // Predicated region
      $region57: #{_bottleneck_forward.1} parent=11 // pred_check
        %p398 = pneg %p324
      $region58: #{_bottleneck_forward.1} parent=11 // pred_check_branch
        %400 = sbr.rel (%p398) target = $region60
      $region59: #{_bottleneck_forward.1} parent=11 // pred_region
        _
      $region60: #{_bottleneck_forward.1} parent=11 // pred_fallthru
        _
    $region12: #{_bottleneck_forward.1} parent=5 // pred_fallthru
      _
    %p401 = scmp.lt.s32.totalorder %s20, 2
    // Predicated region
    $region61: #{_bottleneck_forward.1} parent=5 // pred_check
      %p402 = pneg %p401
    $region62: #{_bottleneck_forward.1} parent=5 // pred_check_branch
      %404 = sbr.rel (%p402) target = $region64
    $region63: #{_bottleneck_forward.1} parent=5 // pred_region
      // Predicated region
      $region65: #{_bottleneck_forward.1} parent=63 // pred_check
        %p405 = pneg %p40
      $region66: #{_bottleneck_forward.1} parent=63 // pred_check_branch
        %407 = sbr.rel (%p405) target = $region68
      $region67: #{_bottleneck_forward.1} parent=63 // pred_region
        %p408 = scmp.lt.s32.totalorder %s20, 1
        %s409 = scalar_select %p408, %s20, 1
        %s410 = smul.addr %s409, 32
        %s411 = smul.addr %s410, 4
        %s412 = scalar_lea.vmem %s0, %s411
      $region68: #{_bottleneck_forward.1} parent=63 // pred_fallthru
        _
      // Predicated region
      $region69: #{_bottleneck_forward.1} parent=63 // pred_check
        %p413 = pneg %p66
      $region70: #{_bottleneck_forward.1} parent=63 // pred_check_branch
        %415 = sbr.rel (%p413) target = $region72
      $region71: #{_bottleneck_forward.1} parent=63 // pred_region
        %p416 = scmp.lt.s32.totalorder %s20, 1
        %s417 = scalar_select %p416, %s20, 1
        %s418 = smul.addr %s417, 8
        %s419 = smul.addr %s418, 4
        %s420 = scalar_lea.vmem %s1, %s419
      $region72: #{_bottleneck_forward.1} parent=63 // pred_fallthru
        _
    $region64: #{_bottleneck_forward.1} parent=5 // pred_fallthru
      _
    %p421 = scmp.le.s32.totalorder 1, %s20
    %p422 = scmp.lt.s32.totalorder %s20, 3
    %p423 = pnand %p421, %p422
    %p424 = pneg %p423
    // Predicated region
    $region73: #{_bottleneck_forward.1} parent=5 // pred_check
      _
    $region74: #{_bottleneck_forward.1} parent=5 // pred_check_branch
      %426 = sbr.rel (%p423) target = $region76
    $region75: #{_bottleneck_forward.1} parent=5 // pred_region
      %s427 = ssub.s32 %s20, 1
      %p428 = scmp.lt.s32.totalorder %s25, 1
      %s429 = scalar_select %p428, %s25, 1
      %s430 = smul.addr %s429, 32
      %s431 = smul.addr %s430, 4
      %s432 = scalar_lea.vmem %s0, %s431
      %p433 = pneg %p46
      %p434 = pneg %p43
      %p435 = scmp.lt.s32.totalorder %s25, 1
      %s436 = scalar_select %p435, %s25, 1
      %s437 = smul.addr %s436, 8
      %s438 = smul.addr %s437, 4
      %s439 = scalar_lea.vmem %s1, %s438
      %p440 = pneg %p72
      %p441 = pneg %p69
      %p442 = pneg %p93
      %p443 = pneg %p90
      %p444 = pneg %p114
      %p445 = pneg %p111
      %p446 = pneg %p135
      %p447 = pneg %p132
      %p448 = pneg %p156
      %p449 = pneg %p153
      %p450 = pneg %p177
      %p451 = pneg %p174
      %p452 = pneg %p198
      %p453 = pneg %p195
      %p454 = pneg %p219
      %p455 = pneg %p216
      %p456 = pneg %p240
      %p457 = pneg %p237
      %p458 = pneg %p261
      %p459 = pneg %p258
      %p460 = pneg %p282
      %p461 = pneg %p279
      %p462 = pneg %p303
      %p463 = pneg %p300
      %p464 = pneg %p324
      %p465 = pneg %p321
      %p466 = pneg %p350
      %p467 = pneg %p347
      %p468 = scmp.lt.s32.totalorder %s25, 1
      %s469 = scalar_select %p468, %s25, 1
      %s470 = smul.addr %s469, 8
      %s471 = smul.addr %s470, 4
      %s472 = scalar_lea.vmem %s14, %s471
      %p473 = scmp.lt.s32.totalorder %s25, 1
      %s474 = scalar_select %p473, %s25, 1
      %s475 = smul.addr %s474, 32
      %s476 = smul.addr %s475, 4
      %s477 = scalar_lea.vmem %s0, %s476
      %p478 = scmp.lt.s32.totalorder %s25, 1
      %s479 = scalar_select %p478, %s25, 1
      %s480 = smul.addr %s479, 8
      %s481 = smul.addr %s480, 4
      %s482 = scalar_lea.vmem %s1, %s481
      %p483 = scmp.lt.s32.totalorder %s25, 1
      %s484 = scalar_select %p483, %s25, 1
      %s485 = smul.addr %s484, 8
      %s486 = smul.addr %s485, 4
      %s487 = scalar_lea.vmem %s14, %s486
      %v489 = vld [vmem:[%s2] sm:$0xf]
      %v490 = vld [vmem:[%s2 + $0x4] sm:$0xf]
      %v491 = vld [vmem:[%s3] sm:$0xf]
      %v492 = vld [vmem:[%s3 + $0x4] sm:$0xf]
      %v493 = vld [vmem:[%s3 + $0x8] sm:$0xf]
      %v494 = vld [vmem:[%s3 + $0xc] sm:$0xf]
      %v495 = vld [vmem:[%s3 + $0x10] sm:$0xf]
      %v496 = vld [vmem:[%s3 + $0x14] sm:$0xf]
      %v497 = vld [vmem:[%s3 + $0x18] sm:$0xf]
      %v498 = vld [vmem:[%s3 + $0x1c] sm:$0xf]
      %v499 = vld [vmem:[%s3 + $0x20] sm:$0xf]
      %v500 = vld [vmem:[%s3 + $0x24] sm:$0xf]
      %v501 = vld [vmem:[%s3 + $0x28] sm:$0xf]
      %v502 = vld [vmem:[%s3 + $0x2c] sm:$0xf]
      %v503 = vld [vmem:[%s3 + $0x30] sm:$0xf]
      %v504 = vld [vmem:[%s3 + $0x34] sm:$0xf]
      %v505 = vld [vmem:[%s3 + $0x38] sm:$0xf]
      %v506 = vld [vmem:[%s3 + $0x3c] sm:$0xf]
      %v507 = vld [vmem:[%s3 + $0x40] sm:$0xf]
      %v508 = vld [vmem:[%s3 + $0x44] sm:$0xf]
      %v509 = vld [vmem:[%s4] sm:$0xf]
      %v510 = vld [vmem:[%s4 + $0x4] sm:$0xf]
      %v511 = vld [vmem:[%s6] sm:$0x1]
      %v512 = vld [vmem:[%s7] sm:$0x1]
      %v513 = vld [vmem:[%s8] sm:$0x1]
      %v514 = vld [vmem:[%s9] sm:$0x1]
      %v515 = vld [vmem:[%s10] sm:$0x1]
      %v516 = vld [vmem:[%s11] sm:$0x1]
      %v517 = vld [vmem:[%s5] sm:$0xf]
      %v518 = vld [vmem:[%s5 + $0x4] sm:$0xf]
      %v519 = vld [vmem:[%s12] sm:$0x1]
      %v520 = vld [vmem:[%s13] sm:$0x1]
      %vm521 = vcmask 130048
      %522 = vst.msk [vmem:[#allocation2] sm:$0xff] %vm521, 0.0
      %523 = vst.msk [vmem:[#allocation2 + $0x8] sm:$0xff] %vm521, 0.0
      %524 = vst.msk [vmem:[#allocation2 + $0x10] sm:$0xff] %vm521, 0.0
      %525 = vst.msk [vmem:[#allocation2 + $0x18] sm:$0xff] %vm521, 0.0
      %526 = vst.msk [vmem:[#allocation2 + $0x20] sm:$0xff] %vm521, 0.0
      %527 = vst.msk [vmem:[#allocation2 + $0x28] sm:$0xff] %vm521, 0.0
      %528 = vst.msk [vmem:[#allocation2 + $0x30] sm:$0xff] %vm521, 0.0
      %529 = vst.msk [vmem:[#allocation2 + $0x38] sm:$0xff] %vm521, 0.0
      %530 = vst.msk [vmem:[#allocation2 + $0x40] sm:$0xff] %vm521, 0.0
      %531 = vst.msk [vmem:[#allocation2 + $0x48] sm:$0xff] %vm521, 0.0
      %532 = vst.msk [vmem:[#allocation2 + $0x50] sm:$0xff] %vm521, 0.0
      %533 = vst.msk [vmem:[#allocation2 + $0x58] sm:$0xff] %vm521, 0.0
      %534 = vst.msk [vmem:[#allocation2 + $0x60] sm:$0xff] %vm521, 0.0
      %535 = vst.msk [vmem:[#allocation2 + $0x68] sm:$0xff] %vm521, 0.0
      %536 = vst.msk [vmem:[#allocation2 + $0x70] sm:$0xff] %vm521, 0.0
      %537 = vst.msk [vmem:[#allocation2 + $0x78] sm:$0xff] %vm521, 0.0
      %538 = vst.msk [vmem:[#allocation2 + $0x80] sm:$0xff] %vm521, 0.0
      %539 = vst.msk [vmem:[#allocation2 + $0x88] sm:$0xff] %vm521, 0.0
      %540 = vst.msk [vmem:[#allocation2 + $0x90] sm:$0xff] %vm521, 0.0
      %541 = vst.msk [vmem:[#allocation2 + $0x98] sm:$0xff] %vm521, 0.0
      %542 = vst.msk [vmem:[#allocation2 + $0xa0] sm:$0xff] %vm521, 0.0
      %543 = vst.msk [vmem:[#allocation2 + $0xa8] sm:$0xff] %vm521, 0.0
      %544 = vst.msk [vmem:[#allocation2 + $0xb0] sm:$0xff] %vm521, 0.0
      %545 = vst.msk [vmem:[#allocation2 + $0xb8] sm:$0xff] %vm521, 0.0
      %546 = vst.msk [vmem:[#allocation2 + $0xc0] sm:$0xff] %vm521, 0.0
      %547 = vst.msk [vmem:[#allocation2 + $0xc8] sm:$0xff] %vm521, 0.0
      %548 = vst.msk [vmem:[#allocation2 + $0xd0] sm:$0xff] %vm521, 0.0
      %549 = vst.msk [vmem:[#allocation2 + $0xd8] sm:$0xff] %vm521, 0.0
      %550 = vst.msk [vmem:[#allocation2 + $0xe0] sm:$0xff] %vm521, 0.0
      %551 = vst.msk [vmem:[#allocation2 + $0xe8] sm:$0xff] %vm521, 0.0
      %552 = vst.msk [vmem:[#allocation2 + $0xf0] sm:$0xff] %vm521, 0.0
      %553 = vst.msk [vmem:[#allocation2 + $0xf8] sm:$0xff] %vm521, 0.0
      %554 = vst.msk [vmem:[#allocation2 + $0x100] sm:$0xff] %vm521, 0.0
      %555 = vst.msk [vmem:[#allocation2 + $0x108] sm:$0xff] %vm521, 0.0
      %556 = vst.msk [vmem:[#allocation2 + $0x110] sm:$0xff] %vm521, 0.0
      %557 = vst.msk [vmem:[#allocation2 + $0x118] sm:$0xff] %vm521, 0.0
      %558 = vst.msk [vmem:[#allocation2 + $0x120] sm:$0xff] %vm521, 0.0
      %559 = vst.msk [vmem:[#allocation2 + $0x128] sm:$0xff] %vm521, 0.0
      %560 = vst.msk [vmem:[#allocation2 + $0x130] sm:$0xff] %vm521, 0.0
      %561 = vst.msk [vmem:[#allocation2 + $0x138] sm:$0xff] %vm521, 0.0
      %vm562 = vcmask 125952
      %563 = vst.msk [vmem:[#allocation2 + $0x140] sm:$0xf] %vm562, 0.0
      %v564 = vld [vmem:[%s477] sm:$0xf]
      %v565 = vld [vmem:[%s477 + $0x4] sm:$0xf]
      %v566 = vld [vmem:[%s477 + $0x8] sm:$0xf]
      %v567 = vld [vmem:[%s477 + $0xc] sm:$0xf]
      %v568 = vld [vmem:[%s477 + $0x10] sm:$0xf]
      %v569 = vld [vmem:[%s477 + $0x14] sm:$0xf]
      %v570 = vld [vmem:[%s477 + $0x18] sm:$0xf]
      %v571 = vld [vmem:[%s477 + $0x1c] sm:$0xf]
      %v572 = vld [vmem:[%s477 + $0x20] sm:$0xf]
      %v573 = vld [vmem:[%s477 + $0x24] sm:$0xf]
      %v574 = vld [vmem:[%s477 + $0x28] sm:$0xf]
      %v575 = vld [vmem:[%s477 + $0x2c] sm:$0xf]
      %v576 = vld [vmem:[%s477 + $0x30] sm:$0xf]
      %v577 = vld [vmem:[%s477 + $0x34] sm:$0xf]
      %v578 = vld [vmem:[%s477 + $0x38] sm:$0xf]
      %v579 = vld [vmem:[%s477 + $0x3c] sm:$0xf]
      %v580 = vld [vmem:[%s477 + $0x40] sm:$0xf]
      %v581 = vld [vmem:[%s477 + $0x44] sm:$0xf]
      %v582 = vld [vmem:[%s477 + $0x48] sm:$0xf]
      %v583 = vld [vmem:[%s477 + $0x4c] sm:$0xf]
      %v584 = vld [vmem:[%s477 + $0x50] sm:$0xf]
      %v585 = vld [vmem:[%s477 + $0x54] sm:$0xf]
      %v586 = vld [vmem:[%s477 + $0x58] sm:$0xf]
      %v587 = vld [vmem:[%s477 + $0x5c] sm:$0xf]
      %v588 = vld [vmem:[%s477 + $0x60] sm:$0xf]
      %v589 = vld [vmem:[%s477 + $0x64] sm:$0xf]
      %v590 = vld [vmem:[%s477 + $0x68] sm:$0xf]
      %v591 = vld [vmem:[%s477 + $0x6c] sm:$0xf]
      %v592 = vld [vmem:[%s477 + $0x70] sm:$0xf]
      %v593 = vld [vmem:[%s477 + $0x74] sm:$0xf]
      %v594 = vld [vmem:[%s477 + $0x78] sm:$0xf]
      %v595 = vld [vmem:[%s477 + $0x7c] sm:$0xf]
      %v628 = vunpack.c.l.b16 %v564
      %v629 = vunpack.c.l.b16 %v565
      %v630 = vunpack.c.l.b16 %v566
      %v631 = vunpack.c.l.b16 %v567
      %v632 = vunpack.c.l.b16 %v568
      %v633 = vunpack.c.l.b16 %v569
      %v634 = vunpack.c.l.b16 %v570
      %v635 = vunpack.c.l.b16 %v571
      %v636 = vunpack.c.l.b16 %v572
      %v637 = vunpack.c.l.b16 %v573
      %v638 = vunpack.c.l.b16 %v574
      %v639 = vunpack.c.l.b16 %v575
      %v640 = vunpack.c.l.b16 %v576
      %v641 = vunpack.c.l.b16 %v577
      %v642 = vunpack.c.l.b16 %v578
      %v643 = vunpack.c.l.b16 %v579
      %v644 = vunpack.c.l.b16 %v580
      %v645 = vunpack.c.l.b16 %v581
      %v646 = vunpack.c.l.b16 %v582
      %v647 = vunpack.c.l.b16 %v583
      %v648 = vunpack.c.l.b16 %v584
      %v649 = vunpack.c.l.b16 %v585
      %v650 = vunpack.c.l.b16 %v586
      %v651 = vunpack.c.l.b16 %v587
      %v652 = vunpack.c.l.b16 %v588
      %v653 = vunpack.c.l.b16 %v589
      %v654 = vunpack.c.l.b16 %v590
      %v655 = vunpack.c.l.b16 %v591
      %v656 = vunpack.c.l.b16 %v592
      %v657 = vunpack.c.l.b16 %v593
      %v658 = vunpack.c.l.b16 %v594
      %v659 = vunpack.c.l.b16 %v595
      %v660 = vpack.c.b16 %v629, %v628
      %v661 = vpack.c.b16 %v631, %v630
      %v662 = vpack.c.b16 %v633, %v632
      %v663 = vpack.c.b16 %v635, %v634
      %v664 = vpack.c.b16 %v637, %v636
      %v665 = vpack.c.b16 %v639, %v638
      %v666 = vpack.c.b16 %v641, %v640
      %v667 = vpack.c.b16 %v643, %v642
      %v668 = vpack.c.b16 %v645, %v644
      %v669 = vpack.c.b16 %v647, %v646
      %v670 = vpack.c.b16 %v649, %v648
      %v671 = vpack.c.b16 %v651, %v650
      %v672 = vpack.c.b16 %v653, %v652
      %v673 = vpack.c.b16 %v655, %v654
      %v674 = vpack.c.b16 %v657, %v656
      %v675 = vpack.c.b16 %v659, %v658
      %v678 = vunpack.c.l.b16 %v489
      %v679 = vunpack.c.l.b16 %v490
      %v680 = vpack.c.b16 %v679, %v678
      %v683 = vsel %vm521, %v660, 0
      %v686 = vsel %vm521, %v661, 0
      %v689 = vsel %vm521, %v662, 0
      %v692 = vsel %vm521, %v663, 0
      %v695 = vsel %vm521, %v664, 0
      %v698 = vsel %vm521, %v665, 0
      %v701 = vsel %vm521, %v666, 0
      %v704 = vsel %vm521, %v667, 0
      %v707 = vsel %vm521, %v668, 0
      %v710 = vsel %vm521, %v669, 0
      %v713 = vsel %vm521, %v670, 0
      %v716 = vsel %vm521, %v671, 0
      %v719 = vsel %vm521, %v672, 0
      %v722 = vsel %vm521, %v673, 0
      %v725 = vsel %vm521, %v674, 0
      %v728 = vsel %vm521, %v675, 0
      %730 = vmatprep.subr.bf16.mxu0 0
      %731 = vmatpush1.bf16.msra.mxu0 %v680
      %732 = vmatprep.subr.bf16.mxu0 0
      %733 = vmatpush1.bf16.msra.mxu0 0
      %734 = vmatprep.subr.bf16.mxu0 0
      %735 = vmatpush1.bf16.msra.mxu0 0
      %736 = vmatprep.subr.bf16.mxu0 0
      %737 = vmatpush1.bf16.msra.mxu0 0
      %738 = vmatprep.subr.bf16.mxu0 0
      %739 = vmatpush1.bf16.msra.mxu0 0
      %740 = vmatprep.subr.bf16.mxu0 0
      %741 = vmatpush1.bf16.msra.mxu0 0
      %742 = vmatprep.subr.bf16.mxu0 0
      %743 = vmatpush1.bf16.msra.mxu0 0
      %744 = vmatprep.subr.bf16.mxu0 0
      %745 = vmatpush1.bf16.msra.mxu0 0
      %746 = vmatprep.subr.bf16.mxu0 0
      %747 = vmatpush1.bf16.msra.mxu0 0
      %748 = vmatprep.subr.bf16.mxu0 0
      %749 = vmatpush1.bf16.msra.mxu0 0
      %750 = vmatprep.subr.bf16.mxu0 0
      %751 = vmatpush1.bf16.msra.mxu0 0
      %752 = vmatprep.subr.bf16.mxu0 0
      %753 = vmatpush1.bf16.msra.mxu0 0
      %754 = vmatprep.subr.bf16.mxu0 0
      %755 = vmatpush1.bf16.msra.mxu0 0
      %756 = vmatprep.subr.bf16.mxu0 0
      %757 = vmatpush1.bf16.msra.mxu0 0
      %758 = vmatprep.subr.bf16.mxu0 0
      %759 = vmatpush1.bf16.msra.mxu0 0
      %760 = vmatprep.subr.bf16.mxu0 0
      %761 = vmatpush1.bf16.msra.mxu0 0
      %762 = vmatprep.mubr.bf16.mxu0 0
      %763 = vmatmul.mubr.bf16.gmra.mrb[0].mxu0 %v683
      %v764 = vpop.f32.mrb[0].mxu0
      %v765 = vadd.f32 0.0, %v764
      %v766 = vpop.f32.mrb[0].mxu0
      %v767 = vpop.f32.mrb[0].mxu0
      %v768 = vadd.f32 0.0, %v767
      %v769 = vpop.f32.mrb[0].mxu0
      %770 = vmatprep.mubr.bf16.mxu0 0
      %771 = vmatmul.mubr.bf16.gmra.mrb[0].mxu0 %v686
      %v772 = vpop.f32.mrb[0].mxu0
      %v773 = vadd.f32 0.0, %v772
      %v774 = vpop.f32.mrb[0].mxu0
      %v775 = vpop.f32.mrb[0].mxu0
      %v776 = vadd.f32 0.0, %v775
      %v777 = vpop.f32.mrb[0].mxu0
      %778 = vmatprep.mubr.bf16.mxu0 0
      %779 = vmatmul.mubr.bf16.gmra.mrb[0].mxu0 %v689
      %v780 = vpop.f32.mrb[0].mxu0
      %v781 = vadd.f32 0.0, %v780
      %v782 = vpop.f32.mrb[0].mxu0
      %v783 = vpop.f32.mrb[0].mxu0
      %v784 = vadd.f32 0.0, %v783
      %v785 = vpop.f32.mrb[0].mxu0
      %786 = vmatprep.mubr.bf16.mxu0 0
      %787 = vmatmul.mubr.bf16.gmra.mrb[0].mxu0 %v692
      %v788 = vpop.f32.mrb[0].mxu0
      %v789 = vadd.f32 0.0, %v788
      %v790 = vpop.f32.mrb[0].mxu0
      %v791 = vpop.f32.mrb[0].mxu0
      %v792 = vadd.f32 0.0, %v791
      %v793 = vpop.f32.mrb[0].mxu0
      %794 = vmatprep.mubr.bf16.mxu0 0
      %795 = vmatmul.mubr.bf16.gmra.mrb[0].mxu0 %v695
      %v796 = vpop.f32.mrb[0].mxu0
      %v797 = vadd.f32 0.0, %v796
      %v798 = vpop.f32.mrb[0].mxu0
      %v799 = vpop.f32.mrb[0].mxu0
      %v800 = vadd.f32 0.0, %v799
      %v801 = vpop.f32.mrb[0].mxu0
      %802 = vmatprep.mubr.bf16.mxu0 0
      %803 = vmatmul.mubr.bf16.gmra.mrb[0].mxu0 %v698
      %v804 = vpop.f32.mrb[0].mxu0
      %v805 = vadd.f32 0.0, %v804
      %v806 = vpop.f32.mrb[0].mxu0
      %v807 = vpop.f32.mrb[0].mxu0
      %v808 = vadd.f32 0.0, %v807
      %v809 = vpop.f32.mrb[0].mxu0
      %810 = vmatprep.mubr.bf16.mxu0 0
      %811 = vmatmul.mubr.bf16.gmra.mrb[0].mxu0 %v701
      %v812 = vpop.f32.mrb[0].mxu0
      %v813 = vadd.f32 0.0, %v812
      %v814 = vpop.f32.mrb[0].mxu0
      %v815 = vpop.f32.mrb[0].mxu0
      %v816 = vadd.f32 0.0, %v815
      %v817 = vpop.f32.mrb[0].mxu0
      %818 = vmatprep.mubr.bf16.mxu0 0
      %819 = vmatmul.mubr.bf16.gmra.mrb[0].mxu0 %v704
      %v820 = vpop.f32.mrb[0].mxu0
      %v821 = vadd.f32 0.0, %v820
      %v822 = vpop.f32.mrb[0].mxu0
      %v823 = vpop.f32.mrb[0].mxu0
      %v824 = vadd.f32 0.0, %v823
      %v825 = vpop.f32.mrb[0].mxu0
      %826 = vmatprep.mubr.bf16.mxu0 0
      %827 = vmatmul.mubr.bf16.gmra.mrb[0].mxu0 %v707
      %v828 = vpop.f32.mrb[0].mxu0
      %v829 = vadd.f32 0.0, %v828
      %v830 = vpop.f32.mrb[0].mxu0
      %v831 = vpop.f32.mrb[0].mxu0
      %v832 = vadd.f32 0.0, %v831
      %v833 = vpop.f32.mrb[0].mxu0
      %834 = vmatprep.mubr.bf16.mxu0 0
      %835 = vmatmul.mubr.bf16.gmra.mrb[0].mxu0 %v710
      %v836 = vpop.f32.mrb[0].mxu0
      %v837 = vadd.f32 0.0, %v836
      %v838 = vpop.f32.mrb[0].mxu0
      %v839 = vpop.f32.mrb[0].mxu0
      %v840 = vadd.f32 0.0, %v839
      %v841 = vpop.f32.mrb[0].mxu0
      %842 = vmatprep.mubr.bf16.mxu0 0
      %843 = vmatmul.mubr.bf16.gmra.mrb[0].mxu0 %v713
      %v844 = vpop.f32.mrb[0].mxu0
      %v845 = vadd.f32 0.0, %v844
      %v846 = vpop.f32.mrb[0].mxu0
      %v847 = vpop.f32.mrb[0].mxu0
      %v848 = vadd.f32 0.0, %v847
      %v849 = vpop.f32.mrb[0].mxu0
      %850 = vmatprep.mubr.bf16.mxu0 0
      %851 = vmatmul.mubr.bf16.gmra.mrb[0].mxu0 %v716
      %v852 = vpop.f32.mrb[0].mxu0
      %v853 = vadd.f32 0.0, %v852
      %v854 = vpop.f32.mrb[0].mxu0
      %v855 = vpop.f32.mrb[0].mxu0
      %v856 = vadd.f32 0.0, %v855
      %v857 = vpop.f32.mrb[0].mxu0
      %858 = vmatprep.mubr.bf16.mxu0 0
      %859 = vmatmul.mubr.bf16.gmra.mrb[0].mxu0 %v719
      %v860 = vpop.f32.mrb[0].mxu0
      %v861 = vadd.f32 0.0, %v860
      %v862 = vpop.f32.mrb[0].mxu0
      %v863 = vpop.f32.mrb[0].mxu0
      %v864 = vadd.f32 0.0, %v863
      %v865 = vpop.f32.mrb[0].mxu0
      %866 = vmatprep.mubr.bf16.mxu0 0
      %867 = vmatmul.mubr.bf16.gmra.mrb[0].mxu0 %v722
      %v868 = vpop.f32.mrb[0].mxu0
      %v869 = vadd.f32 0.0, %v868
      %v870 = vpop.f32.mrb[0].mxu0
      %v871 = vpop.f32.mrb[0].mxu0
      %v872 = vadd.f32 0.0, %v871
      %v873 = vpop.f32.mrb[0].mxu0
      %874 = vmatprep.mubr.bf16.mxu0 0
      %875 = vmatmul.mubr.bf16.gmra.mrb[0].mxu0 %v725
      %v876 = vpop.f32.mrb[0].mxu0
      %v877 = vadd.f32 0.0, %v876
      %v878 = vpop.f32.mrb[0].mxu0
      %v879 = vpop.f32.mrb[0].mxu0
      %v880 = vadd.f32 0.0, %v879
      %v881 = vpop.f32.mrb[0].mxu0
      %882 = vmatprep.mubr.bf16.mxu0 0
      %883 = vmatmul.mubr.bf16.gmra.mrb[0].mxu0 %v728
      %v884 = vpop.f32.mrb[0].mxu0
      %v885 = vadd.f32 0.0, %v884
      %v886 = vpop.f32.mrb[0].mxu0
      %v887 = vpop.f32.mrb[0].mxu0
      %v888 = vadd.f32 0.0, %v887
      %v889 = vpop.f32.mrb[0].mxu0
      %890 = vdwg.mxu0
      %v892 = vlaneseq
      %v893 = vshrl.u32 %v892, 7
      %v894 = vsub.s32 0, %v893
      %v895 = vrot.slane %v511, %v894
      %v897 = vmul.f32 %v765, %v895
      %v898 = vmul.f32 %v768, %v895
      %v899 = vmul.f32 %v773, %v895
      %v900 = vmul.f32 %v776, %v895
      %v901 = vmul.f32 %v781, %v895
      %v902 = vmul.f32 %v784, %v895
      %v903 = vmul.f32 %v789, %v895
      %v904 = vmul.f32 %v792, %v895
      %v905 = vmul.f32 %v797, %v895
      %v906 = vmul.f32 %v800, %v895
      %v907 = vmul.f32 %v805, %v895
      %v908 = vmul.f32 %v808, %v895
      %v909 = vmul.f32 %v813, %v895
      %v910 = vmul.f32 %v816, %v895
      %v911 = vmul.f32 %v821, %v895
      %v912 = vmul.f32 %v824, %v895
      %v913 = vmul.f32 %v829, %v895
      %v914 = vmul.f32 %v832, %v895
      %v915 = vmul.f32 %v837, %v895
      %v916 = vmul.f32 %v840, %v895
      %v917 = vmul.f32 %v845, %v895
      %v918 = vmul.f32 %v848, %v895
      %v919 = vmul.f32 %v853, %v895
      %v920 = vmul.f32 %v856, %v895
      %v921 = vmul.f32 %v861, %v895
      %v922 = vmul.f32 %v864, %v895
      %v923 = vmul.f32 %v869, %v895
      %v924 = vmul.f32 %v872, %v895
      %v925 = vmul.f32 %v877, %v895
      %v926 = vmul.f32 %v880, %v895
      %v927 = vmul.f32 %v885, %v895
      %v928 = vmul.f32 %v888, %v895
      %v930 = vlaneseq
      %v931 = vshrl.u32 %v930, 7
      %v932 = vsub.s32 0, %v931
      %v933 = vrot.slane %v512, %v932
      %v935 = vadd.f32 %v897, %v933
      %v936 = vadd.f32 %v898, %v933
      %v937 = vadd.f32 %v899, %v933
      %v938 = vadd.f32 %v900, %v933
      %v939 = vadd.f32 %v901, %v933
      %v940 = vadd.f32 %v902, %v933
      %v941 = vadd.f32 %v903, %v933
      %v942 = vadd.f32 %v904, %v933
      %v943 = vadd.f32 %v905, %v933
      %v944 = vadd.f32 %v906, %v933
      %v945 = vadd.f32 %v907, %v933
      %v946 = vadd.f32 %v908, %v933
      %v947 = vadd.f32 %v909, %v933
      %v948 = vadd.f32 %v910, %v933
      %v949 = vadd.f32 %v911, %v933
      %v950 = vadd.f32 %v912, %v933
      %v951 = vadd.f32 %v913, %v933
      %v952 = vadd.f32 %v914, %v933
      %v953 = vadd.f32 %v915, %v933
      %v954 = vadd.f32 %v916, %v933
      %v955 = vadd.f32 %v917, %v933
      %v956 = vadd.f32 %v918, %v933
      %v957 = vadd.f32 %v919, %v933
      %v958 = vadd.f32 %v920, %v933
      %v959 = vadd.f32 %v921, %v933
      %v960 = vadd.f32 %v922, %v933
      %v961 = vadd.f32 %v923, %v933
      %v962 = vadd.f32 %v924, %v933
      %v963 = vadd.f32 %v925, %v933
      %v964 = vadd.f32 %v926, %v933
      %v965 = vadd.f32 %v927, %v933
      %v966 = vadd.f32 %v928, %v933
      %v967 = vmax.f32 %v935, 0.0
      %v968 = vmax.f32 %v936, 0.0
      %v969 = vmax.f32 %v937, 0.0
      %v970 = vmax.f32 %v938, 0.0
      %v971 = vmax.f32 %v939, 0.0
      %v972 = vmax.f32 %v940, 0.0
      %v973 = vmax.f32 %v941, 0.0
      %v974 = vmax.f32 %v942, 0.0
      %v975 = vmax.f32 %v943, 0.0
      %v976 = vmax.f32 %v944, 0.0
      %v977 = vmax.f32 %v945, 0.0
      %v978 = vmax.f32 %v946, 0.0
      %v979 = vmax.f32 %v947, 0.0
      %v980 = vmax.f32 %v948, 0.0
      %v981 = vmax.f32 %v949, 0.0
      %v982 = vmax.f32 %v950, 0.0
      %v983 = vmax.f32 %v951, 0.0
      %v984 = vmax.f32 %v952, 0.0
      %v985 = vmax.f32 %v953, 0.0
      %v986 = vmax.f32 %v954, 0.0
      %v987 = vmax.f32 %v955, 0.0
      %v988 = vmax.f32 %v956, 0.0
      %v989 = vmax.f32 %v957, 0.0
      %v990 = vmax.f32 %v958, 0.0
      %v991 = vmax.f32 %v959, 0.0
      %v992 = vmax.f32 %v960, 0.0
      %v993 = vmax.f32 %v961, 0.0
      %v994 = vmax.f32 %v962, 0.0
      %v995 = vmax.f32 %v963, 0.0
      %v996 = vmax.f32 %v964, 0.0
      %v997 = vmax.f32 %v965, 0.0
      %v998 = vmax.f32 %v966, 0.0
      %999 = vst.msk [vmem:[#allocation2 + $0x13] sm:$0xff] %vm521, %v967
      %1000 = vst.msk [vmem:[#allocation2 + $0x1b] sm:$0xff] %vm521, %v968
      %1001 = vst.msk [vmem:[#allocation2 + $0x25] sm:$0xff] %vm521, %v969
      %1002 = vst.msk [vmem:[#allocation2 + $0x2d] sm:$0xff] %vm521, %v970
      %1003 = vst.msk [vmem:[#allocation2 + $0x37] sm:$0xff] %vm521, %v971
      %1004 = vst.msk [vmem:[#allocation2 + $0x3f] sm:$0xff] %vm521, %v972
      %1005 = vst.msk [vmem:[#allocation2 + $0x49] sm:$0xff] %vm521, %v973
      %1006 = vst.msk [vmem:[#allocation2 + $0x51] sm:$0xff] %vm521, %v974
      %1007 = vst.msk [vmem:[#allocation2 + $0x5b] sm:$0xff] %vm521, %v975
      %1008 = vst.msk [vmem:[#allocation2 + $0x63] sm:$0xff] %vm521, %v976
      %1009 = vst.msk [vmem:[#allocation2 + $0x6d] sm:$0xff] %vm521, %v977
      %1010 = vst.msk [vmem:[#allocation2 + $0x75] sm:$0xff] %vm521, %v978
      %1011 = vst.msk [vmem:[#allocation2 + $0x7f] sm:$0xff] %vm521, %v979
      %1012 = vst.msk [vmem:[#allocation2 + $0x87] sm:$0xff] %vm521, %v980
      %1013 = vst.msk [vmem:[#allocation2 + $0x91] sm:$0xff] %vm521, %v981
      %1014 = vst.msk [vmem:[#allocation2 + $0x99] sm:$0xff] %vm521, %v982
      %1015 = vst.msk [vmem:[#allocation2 + $0xa3] sm:$0xff] %vm521, %v983
      %1016 = vst.msk [vmem:[#allocation2 + $0xab] sm:$0xff] %vm521, %v984
      %1017 = vst.msk [vmem:[#allocation2 + $0xb5] sm:$0xff] %vm521, %v985
      %1018 = vst.msk [vmem:[#allocation2 + $0xbd] sm:$0xff] %vm521, %v986
      %1019 = vst.msk [vmem:[#allocation2 + $0xc7] sm:$0xff] %vm521, %v987
      %1020 = vst.msk [vmem:[#allocation2 + $0xcf] sm:$0xff] %vm521, %v988
      %1021 = vst.msk [vmem:[#allocation2 + $0xd9] sm:$0xff] %vm521, %v989
      %1022 = vst.msk [vmem:[#allocation2 + $0xe1] sm:$0xff] %vm521, %v990
      %1023 = vst.msk [vmem:[#allocation2 + $0xeb] sm:$0xff] %vm521, %v991
      %1024 = vst.msk [vmem:[#allocation2 + $0xf3] sm:$0xff] %vm521, %v992
      %1025 = vst.msk [vmem:[#allocation2 + $0xfd] sm:$0xff] %vm521, %v993
      %1026 = vst.msk [vmem:[#allocation2 + $0x105] sm:$0xff] %vm521, %v994
      %1027 = vst.msk [vmem:[#allocation2 + $0x10f] sm:$0xff] %vm521, %v995
      %1028 = vst.msk [vmem:[#allocation2 + $0x117] sm:$0xff] %vm521, %v996
      %1029 = vst.msk [vmem:[#allocation2 + $0x121] sm:$0xff] %vm521, %v997
      %1030 = vst.msk [vmem:[#allocation2 + $0x129] sm:$0xff] %vm521, %v998
      %v1031 = vld [vmem:[#allocation2] ss:$2 sm:$0xff]
      %1032 = vst.msk [vmem:[#allocation3] sm:$0xff] %vm521, %v1031
      %s1033 = scalar_lea.vmem [#allocation2], 1
      %v1034 = vld [vmem:[%s1033] ss:$2 sm:$0xff]
      %1036 = vrot.lane.b32.xlu0 %v1034, 16
      %v1037 = vpop.permute.xlu0 %1036
      %vm1039 = vcmask 261248
      %1040 = vst.msk [vmem:[#allocation3] sm:$0xff] %vm1039, %v1037
      %s1041 = scalar_lea.vmem [#allocation2], 2
      %v1042 = vld [vmem:[%s1041] ss:$2 sm:$0xff]
      %1044 = vrot.lane.b32.xlu0 %v1042, 32
      %v1045 = vpop.permute.xlu0 %1044
      %vm1047 = vcmask 392448
      %1048 = vst.msk [vmem:[#allocation3] sm:$0xff] %vm1047, %v1045
      %s1049 = scalar_lea.vmem [#allocation2], 18
      %v1050 = vld [vmem:[%s1049] ss:$2 sm:$0xff]
      %1052 = vrot.lane.b32.xlu0 %v1050, 48
      %v1053 = vpop.permute.xlu0 %1052
      %vm1055 = vcmask 523648
      %1056 = vst.msk [vmem:[#allocation3] sm:$0xff] %vm1055, %v1053
      %s1057 = scalar_lea.vmem [#allocation2], 19
      %v1058 = vld [vmem:[%s1057] ss:$2 sm:$0xff]
      %1060 = vrot.lane.b32.xlu0 %v1058, 64
      %v1061 = vpop.permute.xlu0 %1060
      %vm1063 = vcmask 654848
      %1064 = vst.msk [vmem:[#allocation3] sm:$0xff] %vm1063, %v1061
      %s1065 = scalar_lea.vmem [#allocation2], 20
      %v1066 = vld [vmem:[%s1065] ss:$2 sm:$0xff]
      %1068 = vrot.lane.b32.xlu0 %v1066, 80
      %v1069 = vpop.permute.xlu0 %1068
      %vm1071 = vcmask 786048
      %1072 = vst.msk [vmem:[#allocation3] sm:$0xff] %vm1071, %v1069
      %s1073 = scalar_lea.vmem [#allocation2], 36
      %v1074 = vld [vmem:[%s1073] ss:$2 sm:$0xff]
      %1076 = vrot.lane.b32.xlu0 %v1074, 96
      %v1077 = vpop.permute.xlu0 %1076
      %vm1079 = vcmask 917248
      %1080 = vst.msk [vmem:[#allocation3] sm:$0xff] %vm1079, %v1077
      %s1081 = scalar_lea.vmem [#allocation2], 37
      %v1082 = vld [vmem:[%s1081] ss:$2 sm:$0xff]
      %1084 = vrot.lane.b32.xlu0 %v1082, 112
      %v1085 = vpop.permute.xlu0 %1084
      %vm1087 = vcmask 1048448
      %1088 = vst.msk [vmem:[#allocation3] sm:$0xff] %vm1087, %v1085
      %s1089 = scalar_lea.vmem [#allocation2], 38
      %v1090 = vld [vmem:[%s1089] ss:$2 sm:$0xff]
      %1091 = vst.msk [vmem:[#allocation3 + $0x8] sm:$0xff] %vm521, %v1090
      %v1092 = vld [vmem:[%s1073] ss:$2 sm:$0xff]
      %1093 = vst.msk [vmem:[#allocation3 + $0x10] sm:$0xff] %vm521, %v1092
      %v1094 = vld [vmem:[%s1081] ss:$2 sm:$0xff]
      %1096 = vrot.lane.b32.xlu0 %v1094, 16
      %v1097 = vpop.permute.xlu0 %1096
      %1099 = vst.msk [vmem:[#allocation3 + $0x10] sm:$0xff] %vm1039, %v1097
      %v1100 = vld [vmem:[%s1089] ss:$2 sm:$0xff]
      %1102 = vrot.lane.b32.xlu0 %v1100, 32
      %v1103 = vpop.permute.xlu0 %1102
      %1105 = vst.msk [vmem:[#allocation3 + $0x10] sm:$0xff] %vm1047, %v1103
      %s1106 = scalar_lea.vmem [#allocation2], 54
      %v1107 = vld [vmem:[%s1106] ss:$2 sm:$0xff]
      %1109 = vrot.lane.b32.xlu0 %v1107, 48
      %v1110 = vpop.permute.xlu0 %1109
      %1112 = vst.msk [vmem:[#allocation3 + $0x10] sm:$0xff] %vm1055, %v1110
      %s1113 = scalar_lea.vmem [#allocation2], 55
      %v1114 = vld [vmem:[%s1113] ss:$2 sm:$0xff]
      %1116 = vrot.lane.b32.xlu0 %v1114, 64
      %v1117 = vpop.permute.xlu0 %1116
      %1119 = vst.msk [vmem:[#allocation3 + $0x10] sm:$0xff] %vm1063, %v1117
      %s1120 = scalar_lea.vmem [#allocation2], 56
      %v1121 = vld [vmem:[%s1120] ss:$2 sm:$0xff]
      %1123 = vrot.lane.b32.xlu0 %v1121, 80
      %v1124 = vpop.permute.xlu0 %1123
      %1126 = vst.msk [vmem:[#allocation3 + $0x10] sm:$0xff] %vm1071, %v1124
      %s1127 = scalar_lea.vmem [#allocation2], 72
      %v1128 = vld [vmem:[%s1127] ss:$2 sm:$0xff]
      %1130 = vrot.lane.b32.xlu0 %v1128, 96
      %v1131 = vpop.permute.xlu0 %1130
      %1133 = vst.msk [vmem:[#allocation3 + $0x10] sm:$0xff] %vm1079, %v1131
      %s1134 = scalar_lea.vmem [#allocation2], 73
      %v1135 = vld [vmem:[%s1134] ss:$2 sm:$0xff]
      %1137 = vrot.lane.b32.xlu0 %v1135, 112
      %v1138 = vpop.permute.xlu0 %1137
      %1140 = vst.msk [vmem:[#allocation3 + $0x10] sm:$0xff] %vm1087, %v1138
      %s1141 = scalar_lea.vmem [#allocation2], 74
      %v1142 = vld [vmem:[%s1141] ss:$2 sm:$0xff]
      %1143 = vst.msk [vmem:[#allocation3 + $0x18] sm:$0xff] %vm521, %v1142
      %v1144 = vld [vmem:[%s1127] ss:$2 sm:$0xff]
      %1145 = vst.msk [vmem:[#allocation3 + $0x20] sm:$0xff] %vm521, %v1144
      %v1146 = vld [vmem:[%s1134] ss:$2 sm:$0xff]
      %1148 = vrot.lane.b32.xlu0 %v1146, 16
      %v1149 = vpop.permute.xlu0 %1148
      %1151 = vst.msk [vmem:[#allocation3 + $0x20] sm:$0xff] %vm1039, %v1149
      %v1152 = vld [vmem:[%s1141] ss:$2 sm:$0xff]
      %1154 = vrot.lane.b32.xlu0 %v1152, 32
      %v1155 = vpop.permute.xlu0 %1154
      %1157 = vst.msk [vmem:[#allocation3 + $0x20] sm:$0xff] %vm1047, %v1155
      %s1158 = scalar_lea.vmem [#allocation2], 90
      %v1159 = vld [vmem:[%s1158] ss:$2 sm:$0xff]
      %1161 = vrot.lane.b32.xlu0 %v1159, 48
      %v1162 = vpop.permute.xlu0 %1161
      %1164 = vst.msk [vmem:[#allocation3 + $0x20] sm:$0xff] %vm1055, %v1162
      %s1165 = scalar_lea.vmem [#allocation2], 91
      %v1166 = vld [vmem:[%s1165] ss:$2 sm:$0xff]
      %1168 = vrot.lane.b32.xlu0 %v1166, 64
      %v1169 = vpop.permute.xlu0 %1168
      %1171 = vst.msk [vmem:[#allocation3 + $0x20] sm:$0xff] %vm1063, %v1169
      %s1172 = scalar_lea.vmem [#allocation2], 92
      %v1173 = vld [vmem:[%s1172] ss:$2 sm:$0xff]
      %1175 = vrot.lane.b32.xlu0 %v1173, 80
      %v1176 = vpop.permute.xlu0 %1175
      %1178 = vst.msk [vmem:[#allocation3 + $0x20] sm:$0xff] %vm1071, %v1176
      %s1179 = scalar_lea.vmem [#allocation2], 108
      %v1180 = vld [vmem:[%s1179] ss:$2 sm:$0xff]
      %1182 = vrot.lane.b32.xlu0 %v1180, 96
      %v1183 = vpop.permute.xlu0 %1182
      %1185 = vst.msk [vmem:[#allocation3 + $0x20] sm:$0xff] %vm1079, %v1183
      %s1186 = scalar_lea.vmem [#allocation2], 109
      %v1187 = vld [vmem:[%s1186] ss:$2 sm:$0xff]
      %1189 = vrot.lane.b32.xlu0 %v1187, 112
      %v1190 = vpop.permute.xlu0 %1189
      %1192 = vst.msk [vmem:[#allocation3 + $0x20] sm:$0xff] %vm1087, %v1190
      %s1193 = scalar_lea.vmem [#allocation2], 110
      %v1194 = vld [vmem:[%s1193] ss:$2 sm:$0xff]
      %1195 = vst.msk [vmem:[#allocation3 + $0x28] sm:$0xff] %vm521, %v1194
      %v1196 = vld [vmem:[%s1179] ss:$2 sm:$0xff]
      %1197 = vst.msk [vmem:[#allocation3 + $0x30] sm:$0xff] %vm521, %v1196
      %v1198 = vld [vmem:[%s1186] ss:$2 sm:$0xff]
      %1200 = vrot.lane.b32.xlu0 %v1198, 16
      %v1201 = vpop.permute.xlu0 %1200
      %1203 = vst.msk [vmem:[#allocation3 + $0x30] sm:$0xff] %vm1039, %v1201
      %v1204 = vld [vmem:[%s1193] ss:$2 sm:$0xff]
      %1206 = vrot.lane.b32.xlu0 %v1204, 32
      %v1207 = vpop.permute.xlu0 %1206
      %1209 = vst.msk [vmem:[#allocation3 + $0x30] sm:$0xff] %vm1047, %v1207
      %s1210 = scalar_lea.vmem [#allocation2], 126
      %v1211 = vld [vmem:[%s1210] ss:$2 sm:$0xff]
      %1213 = vrot.lane.b32.xlu0 %v1211, 48
      %v1214 = vpop.permute.xlu0 %1213
      %1216 = vst.msk [vmem:[#allocation3 + $0x30] sm:$0xff] %vm1055, %v1214
      %s1217 = scalar_lea.vmem [#allocation2], 127
      %v1218 = vld [vmem:[%s1217] ss:$2 sm:$0xff]
      %1220 = vrot.lane.b32.xlu0 %v1218, 64
      %v1221 = vpop.permute.xlu0 %1220
      %1223 = vst.msk [vmem:[#allocation3 + $0x30] sm:$0xff] %vm1063, %v1221
      %s1224 = scalar_lea.vmem [#allocation2], 128
      %v1225 = vld [vmem:[%s1224] ss:$2 sm:$0xff]
      %1227 = vrot.lane.b32.xlu0 %v1225, 80
      %v1228 = vpop.permute.xlu0 %1227
      %1230 = vst.msk [vmem:[#allocation3 + $0x30] sm:$0xff] %vm1071, %v1228
      %s1231 = scalar_lea.vmem [#allocation2], 144
      %v1232 = vld [vmem:[%s1231] ss:$2 sm:$0xff]
      %1234 = vrot.lane.b32.xlu0 %v1232, 96
      %v1235 = vpop.permute.xlu0 %1234
      %1237 = vst.msk [vmem:[#allocation3 + $0x30] sm:$0xff] %vm1079, %v1235
      %s1238 = scalar_lea.vmem [#allocation2], 145
      %v1239 = vld [vmem:[%s1238] ss:$2 sm:$0xff]
      %1241 = vrot.lane.b32.xlu0 %v1239, 112
      %v1242 = vpop.permute.xlu0 %1241
      %1244 = vst.msk [vmem:[#allocation3 + $0x30] sm:$0xff] %vm1087, %v1242
      %s1245 = scalar_lea.vmem [#allocation2], 146
      %v1246 = vld [vmem:[%s1245] ss:$2 sm:$0xff]
      %1247 = vst.msk [vmem:[#allocation3 + $0x38] sm:$0xff] %vm521, %v1246
      %v1248 = vld [vmem:[%s1231] ss:$2 sm:$0xff]
      %1249 = vst.msk [vmem:[#allocation3 + $0x40] sm:$0xff] %vm521, %v1248
      %v1250 = vld [vmem:[%s1238] ss:$2 sm:$0xff]
      %1252 = vrot.lane.b32.xlu0 %v1250, 16
      %v1253 = vpop.permute.xlu0 %1252
      %1255 = vst.msk [vmem:[#allocation3 + $0x40] sm:$0xff] %vm1039, %v1253
      %v1256 = vld [vmem:[%s1245] ss:$2 sm:$0xff]
      %1258 = vrot.lane.b32.xlu0 %v1256, 32
      %v1259 = vpop.permute.xlu0 %1258
      %1261 = vst.msk [vmem:[#allocation3 + $0x40] sm:$0xff] %vm1047, %v1259
      %s1262 = scalar_lea.vmem [#allocation2], 162
      %v1263 = vld [vmem:[%s1262] ss:$2 sm:$0xff]
      %1265 = vrot.lane.b32.xlu0 %v1263, 48
      %v1266 = vpop.permute.xlu0 %1265
      %1268 = vst.msk [vmem:[#allocation3 + $0x40] sm:$0xff] %vm1055, %v1266
      %s1269 = scalar_lea.vmem [#allocation2], 163
      %v1270 = vld [vmem:[%s1269] ss:$2 sm:$0xff]
      %1272 = vrot.lane.b32.xlu0 %v1270, 64
      %v1273 = vpop.permute.xlu0 %1272
      %1275 = vst.msk [vmem:[#allocation3 + $0x40] sm:$0xff] %vm1063, %v1273
      %s1276 = scalar_lea.vmem [#allocation2], 164
      %v1277 = vld [vmem:[%s1276] ss:$2 sm:$0xff]
      %1279 = vrot.lane.b32.xlu0 %v1277, 80
      %v1280 = vpop.permute.xlu0 %1279
      %1282 = vst.msk [vmem:[#allocation3 + $0x40] sm:$0xff] %vm1071, %v1280
      %s1283 = scalar_lea.vmem [#allocation2], 180
      %v1284 = vld [vmem:[%s1283] ss:$2 sm:$0xff]
      %1286 = vrot.lane.b32.xlu0 %v1284, 96
      %v1287 = vpop.permute.xlu0 %1286
      %1289 = vst.msk [vmem:[#allocation3 + $0x40] sm:$0xff] %vm1079, %v1287
      %s1290 = scalar_lea.vmem [#allocation2], 181
      %v1291 = vld [vmem:[%s1290] ss:$2 sm:$0xff]
      %1293 = vrot.lane.b32.xlu0 %v1291, 112
      %v1294 = vpop.permute.xlu0 %1293
      %1296 = vst.msk [vmem:[#allocation3 + $0x40] sm:$0xff] %vm1087, %v1294
      %s1297 = scalar_lea.vmem [#allocation2], 182
      %v1298 = vld [vmem:[%s1297] ss:$2 sm:$0xff]
      %1299 = vst.msk [vmem:[#allocation3 + $0x48] sm:$0xff] %vm521, %v1298
      %v1300 = vld [vmem:[%s1283] ss:$2 sm:$0xff]
      %1301 = vst.msk [vmem:[#allocation3 + $0x50] sm:$0xff] %vm521, %v1300
      %v1302 = vld [vmem:[%s1290] ss:$2 sm:$0xff]
      %1304 = vrot.lane.b32.xlu0 %v1302, 16
      %v1305 = vpop.permute.xlu0 %1304
      %1307 = vst.msk [vmem:[#allocation3 + $0x50] sm:$0xff] %vm1039, %v1305
      %v1308 = vld [vmem:[%s1297] ss:$2 sm:$0xff]
      %1310 = vrot.lane.b32.xlu0 %v1308, 32
      %v1311 = vpop.permute.xlu0 %1310
      %1313 = vst.msk [vmem:[#allocation3 + $0x50] sm:$0xff] %vm1047, %v1311
      %s1314 = scalar_lea.vmem [#allocation2], 198
      %v1315 = vld [vmem:[%s1314] ss:$2 sm:$0xff]
      %1317 = vrot.lane.b32.xlu0 %v1315, 48
      %v1318 = vpop.permute.xlu0 %1317
      %1320 = vst.msk [vmem:[#allocation3 + $0x50] sm:$0xff] %vm1055, %v1318
      %s1321 = scalar_lea.vmem [#allocation2], 199
      %v1322 = vld [vmem:[%s1321] ss:$2 sm:$0xff]
      %1324 = vrot.lane.b32.xlu0 %v1322, 64
      %v1325 = vpop.permute.xlu0 %1324
      %1327 = vst.msk [vmem:[#allocation3 + $0x50] sm:$0xff] %vm1063, %v1325
      %s1328 = scalar_lea.vmem [#allocation2], 200
      %v1329 = vld [vmem:[%s1328] ss:$2 sm:$0xff]
      %1331 = vrot.lane.b32.xlu0 %v1329, 80
      %v1332 = vpop.permute.xlu0 %1331
      %1334 = vst.msk [vmem:[#allocation3 + $0x50] sm:$0xff] %vm1071, %v1332
      %s1335 = scalar_lea.vmem [#allocation2], 216
      %v1336 = vld [vmem:[%s1335] ss:$2 sm:$0xff]
      %1338 = vrot.lane.b32.xlu0 %v1336, 96
      %v1339 = vpop.permute.xlu0 %1338
      %1341 = vst.msk [vmem:[#allocation3 + $0x50] sm:$0xff] %vm1079, %v1339
      %s1342 = scalar_lea.vmem [#allocation2], 217
      %v1343 = vld [vmem:[%s1342] ss:$2 sm:$0xff]
      %1345 = vrot.lane.b32.xlu0 %v1343, 112
      %v1346 = vpop.permute.xlu0 %1345
      %1348 = vst.msk [vmem:[#allocation3 + $0x50] sm:$0xff] %vm1087, %v1346
      %s1349 = scalar_lea.vmem [#allocation2], 218
      %v1350 = vld [vmem:[%s1349] ss:$2 sm:$0xff]
      %1351 = vst.msk [vmem:[#allocation3 + $0x58] sm:$0xff] %vm521, %v1350
      %v1352 = vld [vmem:[%s1335] ss:$2 sm:$0xff]
      %1353 = vst.msk [vmem:[#allocation3 + $0x60] sm:$0xff] %vm521, %v1352
      %v1354 = vld [vmem:[%s1342] ss:$2 sm:$0xff]
      %1356 = vrot.lane.b32.xlu0 %v1354, 16
      %v1357 = vpop.permute.xlu0 %1356
      %1359 = vst.msk [vmem:[#allocation3 + $0x60] sm:$0xff] %vm1039, %v1357
      %v1360 = vld [vmem:[%s1349] ss:$2 sm:$0xff]
      %1362 = vrot.lane.b32.xlu0 %v1360, 32
      %v1363 = vpop.permute.xlu0 %1362
      %1365 = vst.msk [vmem:[#allocation3 + $0x60] sm:$0xff] %vm1047, %v1363
      %s1366 = scalar_lea.vmem [#allocation2], 234
      %v1367 = vld [vmem:[%s1366] ss:$2 sm:$0xff]
      %1369 = vrot.lane.b32.xlu0 %v1367, 48
      %v1370 = vpop.permute.xlu0 %1369
      %1372 = vst.msk [vmem:[#allocation3 + $0x60] sm:$0xff] %vm1055, %v1370
      %s1373 = scalar_lea.vmem [#allocation2], 235
      %v1374 = vld [vmem:[%s1373] ss:$2 sm:$0xff]
      %1376 = vrot.lane.b32.xlu0 %v1374, 64
      %v1377 = vpop.permute.xlu0 %1376
      %1379 = vst.msk [vmem:[#allocation3 + $0x60] sm:$0xff] %vm1063, %v1377
      %s1380 = scalar_lea.vmem [#allocation2], 236
      %v1381 = vld [vmem:[%s1380] ss:$2 sm:$0xff]
      %1383 = vrot.lane.b32.xlu0 %v1381, 80
      %v1384 = vpop.permute.xlu0 %1383
      %1386 = vst.msk [vmem:[#allocation3 + $0x60] sm:$0xff] %vm1071, %v1384
      %s1387 = scalar_lea.vmem [#allocation2], 252
      %v1388 = vld [vmem:[%s1387] ss:$2 sm:$0xff]
      %1390 = vrot.lane.b32.xlu0 %v1388, 96
      %v1391 = vpop.permute.xlu0 %1390
      %1393 = vst.msk [vmem:[#allocation3 + $0x60] sm:$0xff] %vm1079, %v1391
      %s1394 = scalar_lea.vmem [#allocation2], 253
      %v1395 = vld [vmem:[%s1394] ss:$2 sm:$0xff]
      %1397 = vrot.lane.b32.xlu0 %v1395, 112
      %v1398 = vpop.permute.xlu0 %1397
      %1400 = vst.msk [vmem:[#allocation3 + $0x60] sm:$0xff] %vm1087, %v1398
      %s1401 = scalar_lea.vmem [#allocation2], 254
      %v1402 = vld [vmem:[%s1401] ss:$2 sm:$0xff]
      %1403 = vst.msk [vmem:[#allocation3 + $0x68] sm:$0xff] %vm521, %v1402
      %v1404 = vld [vmem:[%s1387] ss:$2 sm:$0xff]
      %1405 = vst.msk [vmem:[#allocation3 + $0x70] sm:$0xff] %vm521, %v1404
      %v1406 = vld [vmem:[%s1394] ss:$2 sm:$0xff]
      %1408 = vrot.lane.b32.xlu0 %v1406, 16
      %v1409 = vpop.permute.xlu0 %1408
      %1411 = vst.msk [vmem:[#allocation3 + $0x70] sm:$0xff] %vm1039, %v1409
      %v1412 = vld [vmem:[%s1401] ss:$2 sm:$0xff]
      %1414 = vrot.lane.b32.xlu0 %v1412, 32
      %v1415 = vpop.permute.xlu0 %1414
      %1417 = vst.msk [vmem:[#allocation3 + $0x70] sm:$0xff] %vm1047, %v1415
      %s1418 = scalar_lea.vmem [#allocation2], 270
      %v1419 = vld [vmem:[%s1418] ss:$2 sm:$0xff]
      %1421 = vrot.lane.b32.xlu0 %v1419, 48
      %v1422 = vpop.permute.xlu0 %1421
      %1424 = vst.msk [vmem:[#allocation3 + $0x70] sm:$0xff] %vm1055, %v1422
      %s1425 = scalar_lea.vmem [#allocation2], 271
      %v1426 = vld [vmem:[%s1425] ss:$2 sm:$0xff]
      %1428 = vrot.lane.b32.xlu0 %v1426, 64
      %v1429 = vpop.permute.xlu0 %1428
      %1431 = vst.msk [vmem:[#allocation3 + $0x70] sm:$0xff] %vm1063, %v1429
      %s1432 = scalar_lea.vmem [#allocation2], 272
      %v1433 = vld [vmem:[%s1432] ss:$2 sm:$0xff]
      %1435 = vrot.lane.b32.xlu0 %v1433, 80
      %v1436 = vpop.permute.xlu0 %1435
      %1438 = vst.msk [vmem:[#allocation3 + $0x70] sm:$0xff] %vm1071, %v1436
      %s1439 = scalar_lea.vmem [#allocation2], 288
      %v1440 = vld [vmem:[%s1439] ss:$2 sm:$0xff]
      %1442 = vrot.lane.b32.xlu0 %v1440, 96
      %v1443 = vpop.permute.xlu0 %1442
      %1445 = vst.msk [vmem:[#allocation3 + $0x70] sm:$0xff] %vm1079, %v1443
      %s1446 = scalar_lea.vmem [#allocation2], 289
      %v1447 = vld [vmem:[%s1446] ss:$2 sm:$0xff]
      %1449 = vrot.lane.b32.xlu0 %v1447, 112
      %v1450 = vpop.permute.xlu0 %1449
      %1452 = vst.msk [vmem:[#allocation3 + $0x70] sm:$0xff] %vm1087, %v1450
      %s1453 = scalar_lea.vmem [#allocation2], 290
      %v1454 = vld [vmem:[%s1453] ss:$2 sm:$0xff]
      %1455 = vst.msk [vmem:[#allocation3 + $0x78] sm:$0xff] %vm521, %v1454
      %v1456 = vld [vmem:[#allocation3] sm:$0xff]
      %v1457 = vld [vmem:[#allocation3 + $0x8] sm:$0xff]
      %v1458 = vld [vmem:[#allocation3 + $0x10] sm:$0xff]
      %v1459 = vld [vmem:[#allocation3 + $0x18] sm:$0xff]
      %v1460 = vld [vmem:[#allocation3 + $0x20] sm:$0xff]
      %v1461 = vld [vmem:[#allocation3 + $0x28] sm:$0xff]
      %v1462 = vld [vmem:[#allocation3 + $0x30] sm:$0xff]
      %v1463 = vld [vmem:[#allocation3 + $0x38] sm:$0xff]
      %v1464 = vld [vmem:[#allocation3 + $0x40] sm:$0xff]
      %v1465 = vld [vmem:[#allocation3 + $0x48] sm:$0xff]
      %v1466 = vld [vmem:[#allocation3 + $0x50] sm:$0xff]
      %v1467 = vld [vmem:[#allocation3 + $0x58] sm:$0xff]
      %v1468 = vld [vmem:[#allocation3 + $0x60] sm:$0xff]
      %v1469 = vld [vmem:[#allocation3 + $0x68] sm:$0xff]
      %v1470 = vld [vmem:[#allocation3 + $0x70] sm:$0xff]
      %v1471 = vld [vmem:[#allocation3 + $0x78] sm:$0xff]
      %v1472 = vpack.c.bf16 %v1458, %v1456
      %v1473 = vpack.c.bf16 %v1459, %v1457
      %v1474 = vpack.c.bf16 %v1462, %v1460
      %v1475 = vpack.c.bf16 %v1463, %v1461
      %v1476 = vpack.c.bf16 %v1466, %v1464
      %v1477 = vpack.c.bf16 %v1467, %v1465
      %v1478 = vpack.c.bf16 %v1470, %v1468
      %v1479 = vpack.c.bf16 %v1471, %v1469
      %v1498 = vunpack.c.l.b16 %v491
      %v1499 = vunpack.c.l.b16 %v492
      %v1500 = vunpack.c.l.b16 %v493
      %v1501 = vunpack.c.l.b16 %v494
      %v1502 = vunpack.c.l.b16 %v495
      %v1503 = vunpack.c.l.b16 %v496
      %v1504 = vunpack.c.l.b16 %v497
      %v1505 = vunpack.c.l.b16 %v498
      %v1506 = vunpack.c.l.b16 %v499
      %v1507 = vunpack.c.l.b16 %v500
      %v1508 = vunpack.c.l.b16 %v501
      %v1509 = vunpack.c.l.b16 %v502
      %v1510 = vunpack.c.l.b16 %v503
      %v1511 = vunpack.c.l.b16 %v504
      %v1512 = vunpack.c.l.b16 %v505
      %v1513 = vunpack.c.l.b16 %v506
      %v1514 = vunpack.c.l.b16 %v507
      %v1515 = vunpack.c.l.b16 %v508
      %v1516 = vpack.c.b16 %v1499, %v1498
      %v1517 = vpack.c.b16 %v1501, %v1500
      %v1518 = vpack.c.b16 %v1503, %v1502
      %v1519 = vpack.c.b16 %v1505, %v1504
      %v1520 = vpack.c.b16 %v1507, %v1506
      %v1521 = vpack.c.b16 %v1509, %v1508
      %v1522 = vpack.c.b16 %v1511, %v1510
      %v1523 = vpack.c.b16 %v1513, %v1512
      %v1524 = vpack.c.b16 %v1515, %v1514
      %v1535 = vsel %vm521, %v1473, 0
      %v1538 = vsel %vm521, %v1475, 0
      %v1541 = vsel %vm521, %v1477, 0
      %v1544 = vsel %vm521, %v1479, 0
      %1546 = vmatprep.subr.bf16.mxu0 0
      %1547 = vmatpush1.bf16.msra.mxu0 %v1516
      %1548 = vmatprep.subr.bf16.mxu0 0
      %1549 = vmatpush1.bf16.msra.mxu0 %v1517
      %1550 = vmatprep.subr.bf16.mxu0 0
      %1551 = vmatpush1.bf16.msra.mxu0 %v1518
      %1552 = vmatprep.subr.bf16.mxu0 0
      %1553 = vmatpush1.bf16.msra.mxu0 %v1519
      %1554 = vmatprep.subr.bf16.mxu0 0
      %1555 = vmatpush1.bf16.msra.mxu0 %v1520
      %1556 = vmatprep.subr.bf16.mxu0 0
      %1557 = vmatpush1.bf16.msra.mxu0 %v1521
      %1558 = vmatprep.subr.bf16.mxu0 0
      %1559 = vmatpush1.bf16.msra.mxu0 %v1522
      %1560 = vmatprep.subr.bf16.mxu0 0
      %1561 = vmatpush1.bf16.msra.mxu0 %v1523
      %1562 = vmatprep.subr.bf16.mxu0 0
      %1563 = vmatpush1.bf16.msra.mxu0 %v1524
      %1564 = vmatprep.subr.bf16.mxu0 0
      %1565 = vmatpush1.bf16.msra.mxu0 0
      %1566 = vmatprep.subr.bf16.mxu0 0
      %1567 = vmatpush1.bf16.msra.mxu0 0
      %1568 = vmatprep.subr.bf16.mxu0 0
      %1569 = vmatpush1.bf16.msra.mxu0 0
      %1570 = vmatprep.subr.bf16.mxu0 0
      %1571 = vmatpush1.bf16.msra.mxu0 0
      %1572 = vmatprep.subr.bf16.mxu0 0
      %1573 = vmatpush1.bf16.msra.mxu0 0
      %1574 = vmatprep.subr.bf16.mxu0 0
      %1575 = vmatpush1.bf16.msra.mxu0 0
      %1576 = vmatprep.subr.bf16.mxu0 0
      %1577 = vmatpush1.bf16.msra.mxu0 0
      %1578 = vmatprep.mubr.bf16.mxu0 %v1535
      %1579 = vmatmul.mubr.bf16.gmra.mrb[0].mxu0 %v1472
      %v1580 = vpop.f32.mrb[0].mxu0
      %v1581 = vadd.f32 0.0, %v1580
      %v1582 = vpop.f32.mrb[0].mxu0
      %v1583 = vpop.f32.mrb[0].mxu0
      %v1584 = vadd.f32 0.0, %v1583
      %v1585 = vpop.f32.mrb[0].mxu0
      %1586 = vmatprep.mubr.bf16.mxu0 %v1538
      %1587 = vmatmul.mubr.bf16.gmra.mrb[0].mxu0 %v1474
      %v1588 = vpop.f32.mrb[0].mxu0
      %v1589 = vadd.f32 0.0, %v1588
      %v1590 = vpop.f32.mrb[0].mxu0
      %v1591 = vpop.f32.mrb[0].mxu0
      %v1592 = vadd.f32 0.0, %v1591
      %v1593 = vpop.f32.mrb[0].mxu0
      %1594 = vmatprep.mubr.bf16.mxu0 %v1541
      %1595 = vmatmul.mubr.bf16.gmra.mrb[0].mxu0 %v1476
      %v1596 = vpop.f32.mrb[0].mxu0
      %v1597 = vadd.f32 0.0, %v1596
      %v1598 = vpop.f32.mrb[0].mxu0
      %v1599 = vpop.f32.mrb[0].mxu0
      %v1600 = vadd.f32 0.0, %v1599
      %v1601 = vpop.f32.mrb[0].mxu0
      %1602 = vmatprep.mubr.bf16.mxu0 %v1544
      %1603 = vmatmul.mubr.bf16.gmra.mrb[0].mxu0 %v1478
      %v1604 = vpop.f32.mrb[0].mxu0
      %v1605 = vadd.f32 0.0, %v1604
      %v1606 = vpop.f32.mrb[0].mxu0
      %v1607 = vpop.f32.mrb[0].mxu0
      %v1608 = vadd.f32 0.0, %v1607
      %v1609 = vpop.f32.mrb[0].mxu0
      %1610 = vdwg.mxu0
      %v1612 = vlaneseq
      %v1613 = vshrl.u32 %v1612, 7
      %v1614 = vsub.s32 0, %v1613
      %v1615 = vrot.slane %v513, %v1614
      %v1617 = vmul.f32 %v1581, %v1615
      %v1618 = vmul.f32 %v1584, %v1615
      %v1619 = vmul.f32 %v1589, %v1615
      %v1620 = vmul.f32 %v1592, %v1615
      %v1621 = vmul.f32 %v1597, %v1615
      %v1622 = vmul.f32 %v1600, %v1615
      %v1623 = vmul.f32 %v1605, %v1615
      %v1624 = vmul.f32 %v1608, %v1615
      %v1626 = vlaneseq
      %v1627 = vshrl.u32 %v1626, 7
      %v1628 = vsub.s32 0, %v1627
      %v1629 = vrot.slane %v514, %v1628
      %v1631 = vadd.f32 %v1617, %v1629
      %v1632 = vadd.f32 %v1618, %v1629
      %v1633 = vadd.f32 %v1619, %v1629
      %v1634 = vadd.f32 %v1620, %v1629
      %v1635 = vadd.f32 %v1621, %v1629
      %v1636 = vadd.f32 %v1622, %v1629
      %v1637 = vadd.f32 %v1623, %v1629
      %v1638 = vadd.f32 %v1624, %v1629
      %v1639 = vmax.f32 %v1631, 0.0
      %v1640 = vmax.f32 %v1632, 0.0
      %v1641 = vmax.f32 %v1633, 0.0
      %v1642 = vmax.f32 %v1634, 0.0
      %v1643 = vmax.f32 %v1635, 0.0
      %v1644 = vmax.f32 %v1636, 0.0
      %v1645 = vmax.f32 %v1637, 0.0
      %v1646 = vmax.f32 %v1638, 0.0
      %v1647 = vpack.c.bf16 %v1640, %v1639
      %v1648 = vpack.c.bf16 %v1642, %v1641
      %v1649 = vpack.c.bf16 %v1644, %v1643
      %v1650 = vpack.c.bf16 %v1646, %v1645
      %v1653 = vunpack.c.l.b16 %v509
      %v1654 = vunpack.c.l.b16 %v510
      %v1655 = vpack.c.b16 %v1654, %v1653
      %v1658 = vsel %vm521, %v1647, 0
      %v1661 = vsel %vm521, %v1648, 0
      %v1664 = vsel %vm521, %v1649, 0
      %v1667 = vsel %vm521, %v1650, 0
      %1669 = vmatprep.subr.bf16.mxu0 0
      %1670 = vmatpush1.bf16.msra.mxu0 %v1655
      %1671 = vmatprep.subr.bf16.mxu0 0
      %1672 = vmatpush1.bf16.msra.mxu0 0
      %1673 = vmatprep.subr.bf16.mxu0 0
      %1674 = vmatpush1.bf16.msra.mxu0 0
      %1675 = vmatprep.subr.bf16.mxu0 0
      %1676 = vmatpush1.bf16.msra.mxu0 0
      %1677 = vmatprep.subr.bf16.mxu0 0
      %1678 = vmatpush1.bf16.msra.mxu0 0
      %1679 = vmatprep.subr.bf16.mxu0 0
      %1680 = vmatpush1.bf16.msra.mxu0 0
      %1681 = vmatprep.subr.bf16.mxu0 0
      %1682 = vmatpush1.bf16.msra.mxu0 0
      %1683 = vmatprep.subr.bf16.mxu0 0
      %1684 = vmatpush1.bf16.msra.mxu0 0
      %1685 = vmatprep.subr.bf16.mxu0 0
      %1686 = vmatpush1.bf16.msra.mxu0 0
      %1687 = vmatprep.subr.bf16.mxu0 0
      %1688 = vmatpush1.bf16.msra.mxu0 0
      %1689 = vmatprep.subr.bf16.mxu0 0
      %1690 = vmatpush1.bf16.msra.mxu0 0
      %1691 = vmatprep.subr.bf16.mxu0 0
      %1692 = vmatpush1.bf16.msra.mxu0 0
      %1693 = vmatprep.subr.bf16.mxu0 0
      %1694 = vmatpush1.bf16.msra.mxu0 0
      %1695 = vmatprep.subr.bf16.mxu0 0
      %1696 = vmatpush1.bf16.msra.mxu0 0
      %1697 = vmatprep.subr.bf16.mxu0 0
      %1698 = vmatpush1.bf16.msra.mxu0 0
      %1699 = vmatprep.subr.bf16.mxu0 0
      %1700 = vmatpush1.bf16.msra.mxu0 0
      %1701 = vmatprep.mubr.bf16.mxu0 0
      %1702 = vmatmul.mubr.bf16.gmra.mrb[0].mxu0 %v1658
      %v1703 = vpop.f32.mrb[0].mxu0
      %v1704 = vadd.f32 0.0, %v1703
      %v1705 = vpop.f32.mrb[0].mxu0
      %v1706 = vpop.f32.mrb[0].mxu0
      %v1707 = vadd.f32 0.0, %v1706
      %v1708 = vpop.f32.mrb[0].mxu0
      %1709 = vmatprep.mubr.bf16.mxu0 0
      %1710 = vmatmul.mubr.bf16.gmra.mrb[0].mxu0 %v1661
      %v1711 = vpop.f32.mrb[0].mxu0
      %v1712 = vadd.f32 0.0, %v1711
      %v1713 = vpop.f32.mrb[0].mxu0
      %v1714 = vpop.f32.mrb[0].mxu0
      %v1715 = vadd.f32 0.0, %v1714
      %v1716 = vpop.f32.mrb[0].mxu0
      %1717 = vmatprep.mubr.bf16.mxu0 0
      %1718 = vmatmul.mubr.bf16.gmra.mrb[0].mxu0 %v1664
      %v1719 = vpop.f32.mrb[0].mxu0
      %v1720 = vadd.f32 0.0, %v1719
      %v1721 = vpop.f32.mrb[0].mxu0
      %v1722 = vpop.f32.mrb[0].mxu0
      %v1723 = vadd.f32 0.0, %v1722
      %v1724 = vpop.f32.mrb[0].mxu0
      %1725 = vmatprep.mubr.bf16.mxu0 0
      %1726 = vmatmul.mubr.bf16.gmra.mrb[0].mxu0 %v1667
      %v1727 = vpop.f32.mrb[0].mxu0
      %v1728 = vadd.f32 0.0, %v1727
      %v1729 = vpop.f32.mrb[0].mxu0
      %v1730 = vpop.f32.mrb[0].mxu0
      %v1731 = vadd.f32 0.0, %v1730
      %v1732 = vpop.f32.mrb[0].mxu0
      %1733 = vdwg.mxu0
      %v1735 = vlaneseq
      %v1736 = vshrl.u32 %v1735, 7
      %v1737 = vsub.s32 0, %v1736
      %v1738 = vrot.slane %v515, %v1737
      %v1740 = vmul.f32 %v1704, %v1738
      %v1741 = vmul.f32 %v1707, %v1738
      %v1742 = vmul.f32 %v1712, %v1738
      %v1743 = vmul.f32 %v1715, %v1738
      %v1744 = vmul.f32 %v1720, %v1738
      %v1745 = vmul.f32 %v1723, %v1738
      %v1746 = vmul.f32 %v1728, %v1738
      %v1747 = vmul.f32 %v1731, %v1738
      %v1749 = vlaneseq
      %v1750 = vshrl.u32 %v1749, 7
      %v1751 = vsub.s32 0, %v1750
      %v1752 = vrot.slane %v516, %v1751
      %v1754 = vadd.f32 %v1740, %v1752
      %v1755 = vadd.f32 %v1741, %v1752
      %v1756 = vadd.f32 %v1742, %v1752
      %v1757 = vadd.f32 %v1743, %v1752
      %v1758 = vadd.f32 %v1744, %v1752
      %v1759 = vadd.f32 %v1745, %v1752
      %v1760 = vadd.f32 %v1746, %v1752
      %v1761 = vadd.f32 %v1747, %v1752
      %v1762 = vld [vmem:[%s482] sm:$0xf]
      %v1763 = vld [vmem:[%s482 + $0x4] sm:$0xf]
      %v1764 = vld [vmem:[%s482 + $0x8] sm:$0xf]
      %v1765 = vld [vmem:[%s482 + $0xc] sm:$0xf]
      %v1766 = vld [vmem:[%s482 + $0x10] sm:$0xf]
      %v1767 = vld [vmem:[%s482 + $0x14] sm:$0xf]
      %v1768 = vld [vmem:[%s482 + $0x18] sm:$0xf]
      %v1769 = vld [vmem:[%s482 + $0x1c] sm:$0xf]
      %v1778 = vunpack.c.l.b16 %v1762
      %v1779 = vunpack.c.l.b16 %v1763
      %v1780 = vunpack.c.l.b16 %v1764
      %v1781 = vunpack.c.l.b16 %v1765
      %v1782 = vunpack.c.l.b16 %v1766
      %v1783 = vunpack.c.l.b16 %v1767
      %v1784 = vunpack.c.l.b16 %v1768
      %v1785 = vunpack.c.l.b16 %v1769
      %v1786 = vpack.c.b16 %v1779, %v1778
      %v1787 = vpack.c.b16 %v1781, %v1780
      %v1788 = vpack.c.b16 %v1783, %v1782
      %v1789 = vpack.c.b16 %v1785, %v1784
      %v1792 = vunpack.c.l.b16 %v517
      %v1793 = vunpack.c.l.b16 %v518
      %v1794 = vpack.c.b16 %v1793, %v1792
      %v1797 = vsel %vm521, %v1786, 0
      %v1800 = vsel %vm521, %v1787, 0
      %v1803 = vsel %vm521, %v1788, 0
      %v1806 = vsel %vm521, %v1789, 0
      %1808 = vmatprep.subr.bf16.mxu0 0
      %1809 = vmatpush1.bf16.msra.mxu0 %v1794
      %1810 = vmatprep.subr.bf16.mxu0 0
      %1811 = vmatpush1.bf16.msra.mxu0 0
      %1812 = vmatprep.subr.bf16.mxu0 0
      %1813 = vmatpush1.bf16.msra.mxu0 0
      %1814 = vmatprep.subr.bf16.mxu0 0
      %1815 = vmatpush1.bf16.msra.mxu0 0
      %1816 = vmatprep.subr.bf16.mxu0 0
      %1817 = vmatpush1.bf16.msra.mxu0 0
      %1818 = vmatprep.subr.bf16.mxu0 0
      %1819 = vmatpush1.bf16.msra.mxu0 0
      %1820 = vmatprep.subr.bf16.mxu0 0
      %1821 = vmatpush1.bf16.msra.mxu0 0
      %1822 = vmatprep.subr.bf16.mxu0 0
      %1823 = vmatpush1.bf16.msra.mxu0 0
      %1824 = vmatprep.subr.bf16.mxu0 0
      %1825 = vmatpush1.bf16.msra.mxu0 0
      %1826 = vmatprep.subr.bf16.mxu0 0
      %1827 = vmatpush1.bf16.msra.mxu0 0
      %1828 = vmatprep.subr.bf16.mxu0 0
      %1829 = vmatpush1.bf16.msra.mxu0 0
      %1830 = vmatprep.subr.bf16.mxu0 0
      %1831 = vmatpush1.bf16.msra.mxu0 0
      %1832 = vmatprep.subr.bf16.mxu0 0
      %1833 = vmatpush1.bf16.msra.mxu0 0
      %1834 = vmatprep.subr.bf16.mxu0 0
      %1835 = vmatpush1.bf16.msra.mxu0 0
      %1836 = vmatprep.subr.bf16.mxu0 0
      %1837 = vmatpush1.bf16.msra.mxu0 0
      %1838 = vmatprep.subr.bf16.mxu0 0
      %1839 = vmatpush1.bf16.msra.mxu0 0
      %1840 = vmatprep.mubr.bf16.mxu0 0
      %1841 = vmatmul.mubr.bf16.gmra.mrb[0].mxu0 %v1797
      %v1842 = vpop.f32.mrb[0].mxu0
      %v1843 = vadd.f32 0.0, %v1842
      %v1844 = vpop.f32.mrb[0].mxu0
      %v1845 = vpop.f32.mrb[0].mxu0
      %v1846 = vadd.f32 0.0, %v1845
      %v1847 = vpop.f32.mrb[0].mxu0
      %1848 = vmatprep.mubr.bf16.mxu0 0
      %1849 = vmatmul.mubr.bf16.gmra.mrb[0].mxu0 %v1800
      %v1850 = vpop.f32.mrb[0].mxu0
      %v1851 = vadd.f32 0.0, %v1850
      %v1852 = vpop.f32.mrb[0].mxu0
      %v1853 = vpop.f32.mrb[0].mxu0
      %v1854 = vadd.f32 0.0, %v1853
      %v1855 = vpop.f32.mrb[0].mxu0
      %1856 = vmatprep.mubr.bf16.mxu0 0
      %1857 = vmatmul.mubr.bf16.gmra.mrb[0].mxu0 %v1803
      %v1858 = vpop.f32.mrb[0].mxu0
      %v1859 = vadd.f32 0.0, %v1858
      %v1860 = vpop.f32.mrb[0].mxu0
      %v1861 = vpop.f32.mrb[0].mxu0
      %v1862 = vadd.f32 0.0, %v1861
      %v1863 = vpop.f32.mrb[0].mxu0
      %1864 = vmatprep.mubr.bf16.mxu0 0
      %1865 = vmatmul.mubr.bf16.gmra.mrb[0].mxu0 %v1806
      %v1866 = vpop.f32.mrb[0].mxu0
      %v1867 = vadd.f32 0.0, %v1866
      %v1868 = vpop.f32.mrb[0].mxu0
      %v1869 = vpop.f32.mrb[0].mxu0
      %v1870 = vadd.f32 0.0, %v1869
      %v1871 = vpop.f32.mrb[0].mxu0
      %1872 = vdwg.mxu0
      %v1874 = vlaneseq
      %v1875 = vshrl.u32 %v1874, 7
      %v1876 = vsub.s32 0, %v1875
      %v1877 = vrot.slane %v519, %v1876
      %v1879 = vmul.f32 %v1843, %v1877
      %v1880 = vmul.f32 %v1846, %v1877
      %v1881 = vmul.f32 %v1851, %v1877
      %v1882 = vmul.f32 %v1854, %v1877
      %v1883 = vmul.f32 %v1859, %v1877
      %v1884 = vmul.f32 %v1862, %v1877
      %v1885 = vmul.f32 %v1867, %v1877
      %v1886 = vmul.f32 %v1870, %v1877
      %v1888 = vlaneseq
      %v1889 = vshrl.u32 %v1888, 7
      %v1890 = vsub.s32 0, %v1889
      %v1891 = vrot.slane %v520, %v1890
      %v1893 = vadd.f32 %v1879, %v1891
      %v1894 = vadd.f32 %v1880, %v1891
      %v1895 = vadd.f32 %v1881, %v1891
      %v1896 = vadd.f32 %v1882, %v1891
      %v1897 = vadd.f32 %v1883, %v1891
      %v1898 = vadd.f32 %v1884, %v1891
      %v1899 = vadd.f32 %v1885, %v1891
      %v1900 = vadd.f32 %v1886, %v1891
      %v1901 = vadd.f32 %v1754, %v1893
      %v1902 = vadd.f32 %v1755, %v1894
      %v1903 = vadd.f32 %v1756, %v1895
      %v1904 = vadd.f32 %v1757, %v1896
      %v1905 = vadd.f32 %v1758, %v1897
      %v1906 = vadd.f32 %v1759, %v1898
      %v1907 = vadd.f32 %v1760, %v1899
      %v1908 = vadd.f32 %v1761, %v1900
      %v1909 = vmax.f32 %v1901, 0.0
      %v1910 = vmax.f32 %v1902, 0.0
      %v1911 = vmax.f32 %v1903, 0.0
      %v1912 = vmax.f32 %v1904, 0.0
      %v1913 = vmax.f32 %v1905, 0.0
      %v1914 = vmax.f32 %v1906, 0.0
      %v1915 = vmax.f32 %v1907, 0.0
      %v1916 = vmax.f32 %v1908, 0.0
      %v1917 = vpack.c.bf16 %v1910, %v1909
      %v1918 = vpack.c.bf16 %v1912, %v1911
      %v1919 = vpack.c.bf16 %v1914, %v1913
      %v1920 = vpack.c.bf16 %v1916, %v1915
      %v1925 = vunpack.c.l.b16 %v1917
      %v1926 = vunpack.c.h.b16 %v1917
      %v1927 = vunpack.c.l.b16 %v1918
      %v1928 = vunpack.c.h.b16 %v1918
      %v1929 = vunpack.c.l.b16 %v1919
      %v1930 = vunpack.c.h.b16 %v1919
      %v1931 = vunpack.c.l.b16 %v1920
      %v1932 = vunpack.c.h.b16 %v1920
      %v1933 = vpack.c.b16 %v1925, %v1925
      %v1934 = vpack.c.b16 %v1926, %v1926
      %v1935 = vpack.c.b16 %v1927, %v1927
      %v1936 = vpack.c.b16 %v1928, %v1928
      %v1937 = vpack.c.b16 %v1929, %v1929
      %v1938 = vpack.c.b16 %v1930, %v1930
      %v1939 = vpack.c.b16 %v1931, %v1931
      %v1940 = vpack.c.b16 %v1932, %v1932
      %vm1949 = vcmask 519168
      %1950 = vst.msk [vmem:[%s487] sm:$0xf] %vm1949, %v1933
      %1951 = vst.msk [vmem:[%s487 + $0x4] sm:$0xf] %vm1949, %v1934
      %1952 = vst.msk [vmem:[%s487 + $0x8] sm:$0xf] %vm1949, %v1935
      %1953 = vst.msk [vmem:[%s487 + $0xc] sm:$0xf] %vm1949, %v1936
      %1954 = vst.msk [vmem:[%s487 + $0x10] sm:$0xf] %vm1949, %v1937
      %1955 = vst.msk [vmem:[%s487 + $0x14] sm:$0xf] %vm1949, %v1938
      %1956 = vst.msk [vmem:[%s487 + $0x18] sm:$0xf] %vm1949, %v1939
      %1957 = vst.msk [vmem:[%s487 + $0x1c] sm:$0xf] %vm1949, %v1940
      %p1958 = scmp.lt.s32.totalorder %s25, 1
      %s1959 = scalar_select %p1958, %s25, 1
      %s1960 = smul.addr %s1959, 8
      %s1961 = smul.addr %s1960, 4
      %s1962 = scalar_lea.vmem %s14, %s1961
      // Predicated region
      $region77: #{_bottleneck_forward.1} parent=75 // pred_check
        %p1963 = pneg %p347
      $region78: #{_bottleneck_forward.1} parent=75 // pred_check_branch
        %1965 = sbr.rel (%p1963) target = $region80
      $region79: #{_bottleneck_forward.1} parent=75 // pred_region
        _
      $region80: #{_bottleneck_forward.1} parent=75 // pred_fallthru
        _
    $region76: #{_bottleneck_forward.1} parent=5 // pred_fallthru
      _
    %p1966 = scmp.le.s32.totalorder 2, %s20
    // Predicated region
    $region81: #{_bottleneck_forward.1} parent=5 // pred_check
      %p1967 = pneg %p1966
    $region82: #{_bottleneck_forward.1} parent=5 // pred_check_branch
      %1969 = sbr.rel (%p1967) target = $region84
    $region83: #{_bottleneck_forward.1} parent=5 // pred_region
      %s1970 = ssub.s32 %s20, 2
      // Predicated region
      $region85: #{_bottleneck_forward.1} parent=83 // pred_check
        %p1971 = pneg %p353
      $region86: #{_bottleneck_forward.1} parent=83 // pred_check_branch
        %1973 = sbr.rel (%p1971) target = $region88
      $region87: #{_bottleneck_forward.1} parent=83 // pred_region
        %p1974 = scmp.lt.s32.totalorder %s26, 1
        %s1975 = scalar_select %p1974, %s26, 1
        %s1976 = smul.addr %s1975, 8
        %s1977 = smul.addr %s1976, 4
        %s1978 = scalar_lea.vmem %s14, %s1977
      $region88: #{_bottleneck_forward.1} parent=83 // pred_fallthru
        _
    $region84: #{_bottleneck_forward.1} parent=5 // pred_fallthru
      _
  $region6: #{_bottleneck_forward.1} parent=0 // loop_footer
    %s24 = sadd.s32 1, %s20
  $region7: #{_bottleneck_forward.1} parent=0 // loop_footer_branch
    %19 = sbr.rel target = $region3
  $region8: #{_bottleneck_forward.1} parent=0 // loop_exit
    _

</llo_original>
